<compile_context>
chip_gen: v7x
topology: tpu7x:2x2x1
jax: 0.10.0
libtpu: 0.0.40
codegen_flags: <defaults>
</compile_context>

<pallas_src>
import functools

import jax
import jax.numpy as jnp
import numpy as np
from jax.experimental import pallas as pl
from jax.experimental.pallas import tpu as pltpu

EPS = 1e-5


# --------------------------------------------------------------------------- geometry
def _geom(H, W):
    Wp = W + 2                      # padded row stride
    L = (H + 2) * Wp                # padded-flat length of one sample
    Lx = L + 2 * (Wp + 1)           # + zero guards: every 3x3 tap is a static lane window
    return Wp, L, Lx


def _tap_offsets(Wp):
    # lane offset of tap (dy, dx) window inside a sample's zero-extended slab
    return [dy * Wp + dx for dy in range(3) for dx in range(3)]


def _zero_segments(B, H, W):
    """Lanes of the batched extended slab never overwritten by data rows (must stay 0)."""
    Wp, L, Lx = _geom(H, W)
    data = [(b * Lx + (i + 2) * Wp + 2, b * Lx + (i + 2) * Wp + 2 + W)
            for b in range(B) for i in range(H)]
    segs, pos = [], 0
    for s, e in data:               # already sorted ascending
        if s > pos:
            segs.append((pos, s - pos))
        pos = e
    if pos < B * Lx:
        segs.append((pos, B * Lx - pos))
    return tuple(segs)


def _pick_block_batch(n, hw, max_b=8):
    """Samples per grid step: big enough to amortize step overhead, but keep >=2 steps
    (megacore) when possible, and keep the intermediate block lane-dense."""
    cands = [b for b in range(1, min(n, max_b) + 1)
             if n % b == 0 and (b == n or (b * hw) % 128 == 0)]
    multi = [b for b in cands if n // b >= 2]
    if multi:
        return max(multi)
    return max(cands) if cands else n


# --------------------------------------------------------------------------- kernels
def _conv_core(get_rows, w_ref, b_ref, ext, stk, yin, zero_segs, *, B, H, W):
    """Shared conv3x3 core for one grid step of B samples.

    get_rows(b) -> (C, H*W) slab (already in ext.dtype) for sample b of this step.
    ext: (C, B*Lx) zero-extended halo'd slab (bf16), per-sample stride Lx.
    stk: (9*C, Lout) stacked tap windows (bf16) -- the single MXU RHS.
    yin: (C, B*H*W) f32 valid interior of the conv output (bias added).
    """
    Wp, L, Lx = _geom(H, W)
    HW = H * W
    C = ext.shape[0]
    Lout = (B - 1) * Lx + L

    # Zero only the guard / gap lanes (never covered by data rows).
    for s, ln in zero_segs:
        ext[:, s:s + ln] = jnp.zeros((C, ln), ext.dtype)

    # Interior data rows of the batched slab (in-kernel halo, no wrapper jnp.pad).
    for b in range(B):
        rows_b = get_rows(b)                                   # (C, HW)
        for i in range(H):
            dst = b * Lx + (i + 2) * Wp + 2
            ext[:, dst:dst + W] = rows_b[:, i * W:(i + 1) * W]

    # Stack the 9 statically shifted tap windows along the contraction axis.
    # (Per-sample guards keep tap windows from reading across sample boundaries.)
    # NOTE: row offsets k*C are even for even C, so bf16 packed-sublane stores stay aligned.
    for k, off in enumerate(_tap_offsets(Wp)):
        stk[k * C:(k + 1) * C, :] = ext[:, off:off + Lout]

    # One folded MXU matmul: (Cout, 9*Cin) x (9*Cin, Lout), f32 accumulation.
    acc = jnp.dot(w_ref[...], stk[...], preferred_element_type=jnp.float32) + b_ref[...]

    # Pull the valid HxW interior out of the padded output frame (lane-dense result).
    for b in range(B):
        for i in range(H):
            src = b * Lx + (i + 1) * Wp + 1
            yin[:, b * HW + i * W: b * HW + (i + 1) * W] = acc[:, src:src + W]


def _write_stats(st_ref, yv):
    # per-step, per-channel sum and sum-of-squares (all lanes of yv are valid pixels)
    st_ref[0, :, 0:1] = jnp.sum(yv, axis=1, keepdims=True)
    st_ref[0, :, 1:2] = jnp.sum(yv * yv, axis=1, keepdims=True)


def conv1_kernel(x_ref, w_ref, b_ref, y_ref, st_ref, ext, stk, yin,
                 *, B, H, W, zero_segs):
    _conv_core(lambda b: x_ref[b].astype(ext.dtype),
               w_ref, b_ref, ext, stk, yin, zero_segs, B=B, H=H, W=W)
    yv = yin[...]                                  # f32 conv1 output (unpadded)
    _write_stats(st_ref, yv)                       # BN1 partial sums from f32
    y_ref[...] = yv.astype(y_ref.dtype)            # bf16 intermediate to HBM


def conv2_kernel(y1_ref, w_ref, b_ref, sc_ref, sh_ref, y2_ref, st_ref, ext, stk, yin,
                 *, B, H, W, zero_segs):
    HW = H * W
    # BN1 (precomputed global affine) + ReLU on the whole lane-dense slab, then bf16
    # so the conv2 MXU operand is native-rate.
    hb = jnp.maximum(y1_ref[...].astype(jnp.float32) * sc_ref[...] + sh_ref[...],
                     0.0).astype(ext.dtype)
    _conv_core(lambda b: hb[:, b * HW:(b + 1) * HW],
               w_ref, b_ref, ext, stk, yin, zero_segs, B=B, H=H, W=W)
    yv = yin[...]
    _write_stats(st_ref, yv)                       # BN2 partial sums from f32
    y2_ref[...] = yv.astype(y2_ref.dtype)


def bn_add_relu_kernel(x_ref, y2_ref, sc_ref, sh_ref, o_ref, *, B, HW):
    # BN2 affine on the whole (C, B*HW) slab, then per-sample residual add + ReLU.
    y2n = y2_ref[...].astype(jnp.float32) * sc_ref[...] + sh_ref[...]
    for b in range(B):
        o_ref[b] = jnp.maximum(x_ref[b].astype(jnp.float32)
                               + y2n[:, b * HW:(b + 1) * HW], 0.0).astype(o_ref.dtype)


# --------------------------------------------------------------------------- wrapper
def _bn_affine(stats, gamma, beta, count):
    tot = jnp.sum(stats, axis=0)                   # (C, 2): tiny JAX reduction
    mean = tot[:, 0] / count
    var = tot[:, 1] / count - mean * mean          # biased (training-mode) variance
    scale = gamma * jax.lax.rsqrt(var + EPS)
    shift = beta - mean * scale
    return scale.reshape(-1, 1), shift.reshape(-1, 1)


@jax.jit
def residual_block_pallas(x_nchw, params):
    N, C, H, W = x_nchw.shape
    HW = H * W
    Wp, L, Lx = _geom(H, W)
    B = _pick_block_batch(N, HW)                   # samples per grid step
    steps = N // B
    Lout = (B - 1) * Lx + L
    f32, bf16 = jnp.float32, jnp.bfloat16

    # Free reshape: lane-dense (N, C, H*W) view of the NCHW input; residual path stays f32.
    x = x_nchw.reshape(N, C, HW)

    def fold_w(w):                                 # (O, I, 3, 3) -> (O, 9*I), k = dy*3+dx
        return jnp.transpose(w, (0, 2, 3, 1)).reshape(C, 9 * C).astype(bf16)

    wf1, wf2 = fold_w(params["w1"]), fold_w(params["w2"])
    b1 = params["b1"].reshape(C, 1).astype(f32)
    b2 = params["b2"].reshape(C, 1).astype(f32)
    count = jnp.float32(N * HW)
    zsegs = _zero_segments(B, H, W)

    cparams = pltpu.CompilerParams(
        dimension_semantics=("parallel",),         # batch-step axis, race-free outputs
        vmem_limit_bytes=32 * 1024 * 1024,         # fits v7x 64MiB physical, raises v5e default
    )

    x_spec = pl.BlockSpec((B, C, HW), lambda n: (n, 0, 0))
    yflat_spec = pl.BlockSpec((C, B * HW), lambda n: (0, n))   # 512-lane unmasked stores
    st_spec = pl.BlockSpec((1, C, 2), lambda n: (n, 0, 0))

    def full(shape):
        return pl.BlockSpec(shape, lambda n, _nd=len(shape): (0,) * _nd)

    conv_scratch = [pltpu.VMEM((C, B * Lx), bf16),     # halo'd zero-extended input slab
                    pltpu.VMEM((9 * C, Lout), bf16),   # stacked tap windows (MXU RHS)
                    pltpu.VMEM((C, B * HW), f32)]      # f32 interior (stats before bf16 cast)

    # ---- pass 1: conv1 -> y1 (bf16, unpadded) + per-step BN1 partial sums ----------
    y1, st1 = pl.pallas_call(
        functools.partial(conv1_kernel, B=B, H=H, W=W, zero_segs=zsegs),
        out_shape=(jax.ShapeDtypeStruct((C, N * HW), bf16),
                   jax.ShapeDtypeStruct((steps, C, 2), f32)),
        grid_spec=pltpu.PrefetchScalarGridSpec(
            num_scalar_prefetch=0, grid=(steps,),
            in_specs=[x_spec, full((C, 9 * C)), full((C, 1))],
            out_specs=[yflat_spec, st_spec],
            scratch_shapes=conv_scratch),
        compiler_params=cparams,
    )(x, wf1, b1)
    scale1, shift1 = _bn_affine(st1, params["g1"].astype(f32),
                                params["be1"].astype(f32), count)

    # ---- pass 2: bn1 + relu + conv2 -> y2 (bf16) + per-step BN2 partial sums -------
    y2, st2 = pl.pallas_call(
        functools.partial(conv2_kernel, B=B, H=H, W=W, zero_segs=zsegs),
        out_shape=(jax.ShapeDtypeStruct((C, N * HW), bf16),
                   jax.ShapeDtypeStruct((steps, C, 2), f32)),
        grid_spec=pltpu.PrefetchScalarGridSpec(
            num_scalar_prefetch=0, grid=(steps,),
            in_specs=[yflat_spec, full((C, 9 * C)), full((C, 1)),
                      full((C, 1)), full((C, 1))],
            out_specs=[yflat_spec, st_spec],
            scratch_shapes=conv_scratch),
        compiler_params=cparams,
    )(y1, wf2, b2, scale1, shift1)
    scale2, shift2 = _bn_affine(st2, params["g2"].astype(f32),
                                params["be2"].astype(f32), count)

    # ---- pass 3: bn2 + residual add + relu, written back lane-dense ---------------
    out = pl.pallas_call(
        functools.partial(bn_add_relu_kernel, B=B, HW=HW),
        out_shape=jax.ShapeDtypeStruct((N, C, HW), x_nchw.dtype),
        grid_spec=pltpu.PrefetchScalarGridSpec(
            num_scalar_prefetch=0, grid=(steps,),
            in_specs=[x_spec, yflat_spec, full((C, 1)), full((C, 1))],
            out_specs=x_spec),
        compiler_params=cparams,
    )(x, y2, scale2, shift2)
    return out.reshape(N, C, H, W)


# --------------------------------------------------------------------------- reference
def residual_block_ref(x, params):
    """Pure-JAX reference mirroring the PyTorch module (training-mode BN)."""
    def conv(h, w, b):
        y = jax.lax.conv_general_dilated(
            h, w, window_strides=(1, 1), padding="SAME",
            dimension_numbers=("NCHW", "OIHW", "NCHW"))
        return y + b.reshape(1, -1, 1, 1)

    def bn(y, g, be):
        mean = jnp.mean(y, axis=(0, 2, 3), keepdims=True)
        var = jnp.mean(jnp.square(y - mean), axis=(0, 2, 3), keepdims=True)
        return (y - mean) * jax.lax.rsqrt(var + EPS) * g.reshape(1, -1, 1, 1) \
            + be.reshape(1, -1, 1, 1)

    h = jnp.maximum(bn(conv(x, params["w1"], params["b1"]), params["g1"], params["be1"]), 0.0)
    h = bn(conv(h, params["w2"], params["b2"]), params["g2"], params["be2"])
    return jnp.maximum(x + h, 0.0)


if __name__ == "__main__":
    key = jax.random.PRNGKey(0)
    # N=4 so the kernel exercises both multi-sample blocks (B=2) and multiple grid steps.
    N, C, H, W = 4, 4, 16, 16

    ks = jax.random.split(key, 9)
    x = jax.random.normal(ks[0], (N, C, H, W), jnp.float32)

    params = {
        "w1": 0.2 * jax.random.normal(ks[1], (C, C, 3, 3), jnp.float32),   # OIHW, like nn.Conv2d
        "b1": 0.1 * jax.random.normal(ks[2], (C,), jnp.float32),
        "g1": 1.0 + 0.1 * jax.random.normal(ks[3], (C,), jnp.float32),     # BN weight
        "be1": 0.1 * jax.random.normal(ks[4], (C,), jnp.float32),          # BN bias
        "w2": 0.2 * jax.random.normal(ks[5], (C, C, 3, 3), jnp.float32),
        "b2": 0.1 * jax.random.normal(ks[6], (C,), jnp.float32),
        "g2": 1.0 + 0.1 * jax.random.normal(ks[7], (C,), jnp.float32),
        "be2": 0.1 * jax.random.normal(ks[8], (C,), jnp.float32),
    }

    out = jax.block_until_ready(residual_block_pallas(x, params))
    ref = jax.block_until_ready(residual_block_ref(x, params))

    assert out.shape == (N, C, H, W)
    # bf16 intermediates / bf16 MXU operands -> ~1e-2-level agreement with the f32 reference.
    np.testing.assert_allclose(np.asarray(out), np.asarray(ref), rtol=2e-2, atol=2e-2)
    print("KERNEL_OK")
</pallas_src>

<mosaic_0001>
module attributes {stable_mosaic.version = 11 : i64} {
  func.func @conv1_kernel(%arg0: i32, %arg1: memref<2x4x256xf32, #tpu.memory_space<vmem>>, %arg2: memref<4x36xbf16, #tpu.memory_space<vmem>>, %arg3: memref<4x1xf32, #tpu.memory_space<vmem>>, %arg4: memref<4x512xbf16, #tpu.memory_space<vmem>>, %arg5: memref<1x4x2xf32, #tpu.memory_space<vmem>>, %arg6: memref<4x724xbf16, #tpu.memory_space<vmem>>, %arg7: memref<36x686xbf16, #tpu.memory_space<vmem>>, %arg8: memref<4x512xf32, #tpu.memory_space<vmem>>) attributes {dimension_semantics = [#tpu.dimension_semantics<parallel>], iteration_bounds = array<i64: 2>, scalar_prefetch = 0 : i64, scratch_operands = 3 : i64, tpu.core_type = #tpu.core_type<tc>, window_params = [{transform_indices = @transform_0, window_bounds = array<i64: 2, 4, 256>}, {pipeline_mode = #tpu.pipeline_mode<synchronous>, transform_indices = @transform_1, window_bounds = array<i64: 4, 36>}, {pipeline_mode = #tpu.pipeline_mode<synchronous>, transform_indices = @transform_2, window_bounds = array<i64: 4, 1>}, {transform_indices = @transform_3, window_bounds = array<i64: 4, 512>}, {transform_indices = @transform_4, window_bounds = array<i64: 1, 4, 2>}]} {
    %cst = arith.constant 0.000000e+00 : bf16
    %0 = vector.broadcast %cst : bf16 to vector<4x38xbf16>
    %c0 = arith.constant 0 : index
    %c0_0 = arith.constant 0 : index
    %1 = vector.load %arg6[%c0, %c0_0] : memref<4x724xbf16, #tpu.memory_space<vmem>>, vector<4x38xbf16>
    tpu.vector_store %arg6[%c0, %c0_0], %0 {strides = array<i32>} : memref<4x724xbf16, #tpu.memory_space<vmem>>, vector<4x38xbf16>,
    %cst_1 = arith.constant 0.000000e+00 : bf16
    %2 = vector.broadcast %cst_1 : bf16 to vector<4x2xbf16>
    %c0_2 = arith.constant 0 : index
    %c54 = arith.constant 54 : index
    %3 = vector.load %arg6[%c0_2, %c54] : memref<4x724xbf16, #tpu.memory_space<vmem>>, vector<4x2xbf16>
    tpu.vector_store %arg6[%c0_2, %c54], %2 {strides = array<i32>} : memref<4x724xbf16, #tpu.memory_space<vmem>>, vector<4x2xbf16>,
    %cst_3 = arith.constant 0.000000e+00 : bf16
    %4 = vector.broadcast %cst_3 : bf16 to vector<4x2xbf16>
    %c0_4 = arith.constant 0 : index
    %c72 = arith.constant 72 : index
    %5 = vector.load %arg6[%c0_4, %c72] : memref<4x724xbf16, #tpu.memory_space<vmem>>, vector<4x2xbf16>
    tpu.vector_store %arg6[%c0_4, %c72], %4 {strides = array<i32>} : memref<4x724xbf16, #tpu.memory_space<vmem>>, vector<4x2xbf16>,
    %cst_5 = arith.constant 0.000000e+00 : bf16
    %6 = vector.broadcast %cst_5 : bf16 to vector<4x2xbf16>
    %c0_6 = arith.constant 0 : index
    %c90 = arith.constant 90 : index
    %7 = vector.load %arg6[%c0_6, %c90] : memref<4x724xbf16, #tpu.memory_space<vmem>>, vector<4x2xbf16>
    tpu.vector_store %arg6[%c0_6, %c90], %6 {strides = array<i32>} : memref<4x724xbf16, #tpu.memory_space<vmem>>, vector<4x2xbf16>,
    %cst_7 = arith.constant 0.000000e+00 : bf16
    %8 = vector.broadcast %cst_7 : bf16 to vector<4x2xbf16>
    %c0_8 = arith.constant 0 : index
    %c108 = arith.constant 108 : index
    %9 = vector.load %arg6[%c0_8, %c108] : memref<4x724xbf16, #tpu.memory_space<vmem>>, vector<4x2xbf16>
    tpu.vector_store %arg6[%c0_8, %c108], %8 {strides = array<i32>} : memref<4x724xbf16, #tpu.memory_space<vmem>>, vector<4x2xbf16>,
    %cst_9 = arith.constant 0.000000e+00 : bf16
    %10 = vector.broadcast %cst_9 : bf16 to vector<4x2xbf16>
    %c0_10 = arith.constant 0 : index
    %c126 = arith.constant 126 : index
    %11 = vector.load %arg6[%c0_10, %c126] : memref<4x724xbf16, #tpu.memory_space<vmem>>, vector<4x2xbf16>
    tpu.vector_store %arg6[%c0_10, %c126], %10 {strides = array<i32>} : memref<4x724xbf16, #tpu.memory_space<vmem>>, vector<4x2xbf16>,
    %cst_11 = arith.constant 0.000000e+00 : bf16
    %12 = vector.broadcast %cst_11 : bf16 to vector<4x2xbf16>
    %c0_12 = arith.constant 0 : index
    %c144 = arith.constant 144 : index
    %13 = vector.load %arg6[%c0_12, %c144] : memref<4x724xbf16, #tpu.memory_space<vmem>>, vector<4x2xbf16>
    tpu.vector_store %arg6[%c0_12, %c144], %12 {strides = array<i32>} : memref<4x724xbf16, #tpu.memory_space<vmem>>, vector<4x2xbf16>,
    %cst_13 = arith.constant 0.000000e+00 : bf16
    %14 = vector.broadcast %cst_13 : bf16 to vector<4x2xbf16>
    %c0_14 = arith.constant 0 : index
    %c162 = arith.constant 162 : index
    %15 = vector.load %arg6[%c0_14, %c162] : memref<4x724xbf16, #tpu.memory_space<vmem>>, vector<4x2xbf16>
    tpu.vector_store %arg6[%c0_14, %c162], %14 {strides = array<i32>} : memref<4x724xbf16, #tpu.memory_space<vmem>>, vector<4x2xbf16>,
    %cst_15 = arith.constant 0.000000e+00 : bf16
    %16 = vector.broadcast %cst_15 : bf16 to vector<4x2xbf16>
    %c0_16 = arith.constant 0 : index
    %c180 = arith.constant 180 : index
    %17 = vector.load %arg6[%c0_16, %c180] : memref<4x724xbf16, #tpu.memory_space<vmem>>, vector<4x2xbf16>
    tpu.vector_store %arg6[%c0_16, %c180], %16 {strides = array<i32>} : memref<4x724xbf16, #tpu.memory_space<vmem>>, vector<4x2xbf16>,
    %cst_17 = arith.constant 0.000000e+00 : bf16
    %18 = vector.broadcast %cst_17 : bf16 to vector<4x2xbf16>
    %c0_18 = arith.constant 0 : index
    %c198 = arith.constant 198 : index
    %19 = vector.load %arg6[%c0_18, %c198] : memref<4x724xbf16, #tpu.memory_space<vmem>>, vector<4x2xbf16>
    tpu.vector_store %arg6[%c0_18, %c198], %18 {strides = array<i32>} : memref<4x724xbf16, #tpu.memory_space<vmem>>, vector<4x2xbf16>,
    %cst_19 = arith.constant 0.000000e+00 : bf16
    %20 = vector.broadcast %cst_19 : bf16 to vector<4x2xbf16>
    %c0_20 = arith.constant 0 : index
    %c216 = arith.constant 216 : index
    %21 = vector.load %arg6[%c0_20, %c216] : memref<4x724xbf16, #tpu.memory_space<vmem>>, vector<4x2xbf16>
    tpu.vector_store %arg6[%c0_20, %c216], %20 {strides = array<i32>} : memref<4x724xbf16, #tpu.memory_space<vmem>>, vector<4x2xbf16>,
    %cst_21 = arith.constant 0.000000e+00 : bf16
    %22 = vector.broadcast %cst_21 : bf16 to vector<4x2xbf16>
    %c0_22 = arith.constant 0 : index
    %c234 = arith.constant 234 : index
    %23 = vector.load %arg6[%c0_22, %c234] : memref<4x724xbf16, #tpu.memory_space<vmem>>, vector<4x2xbf16>
    tpu.vector_store %arg6[%c0_22, %c234], %22 {strides = array<i32>} : memref<4x724xbf16, #tpu.memory_space<vmem>>, vector<4x2xbf16>,
    %cst_23 = arith.constant 0.000000e+00 : bf16
    %24 = vector.broadcast %cst_23 : bf16 to vector<4x2xbf16>
    %c0_24 = arith.constant 0 : index
    %c252 = arith.constant 252 : index
    %25 = vector.load %arg6[%c0_24, %c252] : memref<4x724xbf16, #tpu.memory_space<vmem>>, vector<4x2xbf16>
    tpu.vector_store %arg6[%c0_24, %c252], %24 {strides = array<i32>} : memref<4x724xbf16, #tpu.memory_space<vmem>>, vector<4x2xbf16>,
    %cst_25 = arith.constant 0.000000e+00 : bf16
    %26 = vector.broadcast %cst_25 : bf16 to vector<4x2xbf16>
    %c0_26 = arith.constant 0 : index
    %c270 = arith.constant 270 : index
    %27 = vector.load %arg6[%c0_26, %c270] : memref<4x724xbf16, #tpu.memory_space<vmem>>, vector<4x2xbf16>
    tpu.vector_store %arg6[%c0_26, %c270], %26 {strides = array<i32>} : memref<4x724xbf16, #tpu.memory_space<vmem>>, vector<4x2xbf16>,
    %cst_27 = arith.constant 0.000000e+00 : bf16
    %28 = vector.broadcast %cst_27 : bf16 to vector<4x2xbf16>
    %c0_28 = arith.constant 0 : index
    %c288 = arith.constant 288 : index
    %29 = vector.load %arg6[%c0_28, %c288] : memref<4x724xbf16, #tpu.memory_space<vmem>>, vector<4x2xbf16>
    tpu.vector_store %arg6[%c0_28, %c288], %28 {strides = array<i32>} : memref<4x724xbf16, #tpu.memory_space<vmem>>, vector<4x2xbf16>,
    %cst_29 = arith.constant 0.000000e+00 : bf16
    %30 = vector.broadcast %cst_29 : bf16 to vector<4x2xbf16>
    %c0_30 = arith.constant 0 : index
    %c306 = arith.constant 306 : index
    %31 = vector.load %arg6[%c0_30, %c306] : memref<4x724xbf16, #tpu.memory_space<vmem>>, vector<4x2xbf16>
    tpu.vector_store %arg6[%c0_30, %c306], %30 {strides = array<i32>} : memref<4x724xbf16, #tpu.memory_space<vmem>>, vector<4x2xbf16>,
    %cst_31 = arith.constant 0.000000e+00 : bf16
    %32 = vector.broadcast %cst_31 : bf16 to vector<4x76xbf16>
    %c0_32 = arith.constant 0 : index
    %c324 = arith.constant 324 : index
    %33 = vector.load %arg6[%c0_32, %c324] : memref<4x724xbf16, #tpu.memory_space<vmem>>, vector<4x76xbf16>
    tpu.vector_store %arg6[%c0_32, %c324], %32 {strides = array<i32>} : memref<4x724xbf16, #tpu.memory_space<vmem>>, vector<4x76xbf16>,
    %cst_33 = arith.constant 0.000000e+00 : bf16
    %34 = vector.broadcast %cst_33 : bf16 to vector<4x2xbf16>
    %c0_34 = arith.constant 0 : index
    %c416 = arith.constant 416 : index
    %35 = vector.load %arg6[%c0_34, %c416] : memref<4x724xbf16, #tpu.memory_space<vmem>>, vector<4x2xbf16>
    tpu.vector_store %arg6[%c0_34, %c416], %34 {strides = array<i32>} : memref<4x724xbf16, #tpu.memory_space<vmem>>, vector<4x2xbf16>,
    %cst_35 = arith.constant 0.000000e+00 : bf16
    %36 = vector.broadcast %cst_35 : bf16 to vector<4x2xbf16>
    %c0_36 = arith.constant 0 : index
    %c434 = arith.constant 434 : index
    %37 = vector.load %arg6[%c0_36, %c434] : memref<4x724xbf16, #tpu.memory_space<vmem>>, vector<4x2xbf16>
    tpu.vector_store %arg6[%c0_36, %c434], %36 {strides = array<i32>} : memref<4x724xbf16, #tpu.memory_space<vmem>>, vector<4x2xbf16>,
    %cst_37 = arith.constant 0.000000e+00 : bf16
    %38 = vector.broadcast %cst_37 : bf16 to vector<4x2xbf16>
    %c0_38 = arith.constant 0 : index
    %c452 = arith.constant 452 : index
    %39 = vector.load %arg6[%c0_38, %c452] : memref<4x724xbf16, #tpu.memory_space<vmem>>, vector<4x2xbf16>
    tpu.vector_store %arg6[%c0_38, %c452], %38 {strides = array<i32>} : memref<4x724xbf16, #tpu.memory_space<vmem>>, vector<4x2xbf16>,
    %cst_39 = arith.constant 0.000000e+00 : bf16
    %40 = vector.broadcast %cst_39 : bf16 to vector<4x2xbf16>
    %c0_40 = arith.constant 0 : index
    %c470 = arith.constant 470 : index
    %41 = vector.load %arg6[%c0_40, %c470] : memref<4x724xbf16, #tpu.memory_space<vmem>>, vector<4x2xbf16>
    tpu.vector_store %arg6[%c0_40, %c470], %40 {strides = array<i32>} : memref<4x724xbf16, #tpu.memory_space<vmem>>, vector<4x2xbf16>,
    %cst_41 = arith.constant 0.000000e+00 : bf16
    %42 = vector.broadcast %cst_41 : bf16 to vector<4x2xbf16>
    %c0_42 = arith.constant 0 : index
    %c488 = arith.constant 488 : index
    %43 = vector.load %arg6[%c0_42, %c488] : memref<4x724xbf16, #tpu.memory_space<vmem>>, vector<4x2xbf16>
    tpu.vector_store %arg6[%c0_42, %c488], %42 {strides = array<i32>} : memref<4x724xbf16, #tpu.memory_space<vmem>>, vector<4x2xbf16>,
    %cst_43 = arith.constant 0.000000e+00 : bf16
    %44 = vector.broadcast %cst_43 : bf16 to vector<4x2xbf16>
    %c0_44 = arith.constant 0 : index
    %c506 = arith.constant 506 : index
    %45 = vector.load %arg6[%c0_44, %c506] : memref<4x724xbf16, #tpu.memory_space<vmem>>, vector<4x2xbf16>
    tpu.vector_store %arg6[%c0_44, %c506], %44 {strides = array<i32>} : memref<4x724xbf16, #tpu.memory_space<vmem>>, vector<4x2xbf16>,
    %cst_45 = arith.constant 0.000000e+00 : bf16
    %46 = vector.broadcast %cst_45 : bf16 to vector<4x2xbf16>
    %c0_46 = arith.constant 0 : index
    %c524 = arith.constant 524 : index
    %47 = vector.load %arg6[%c0_46, %c524] : memref<4x724xbf16, #tpu.memory_space<vmem>>, vector<4x2xbf16>
    tpu.vector_store %arg6[%c0_46, %c524], %46 {strides = array<i32>} : memref<4x724xbf16, #tpu.memory_space<vmem>>, vector<4x2xbf16>,
    %cst_47 = arith.constant 0.000000e+00 : bf16
    %48 = vector.broadcast %cst_47 : bf16 to vector<4x2xbf16>
    %c0_48 = arith.constant 0 : index
    %c542 = arith.constant 542 : index
    %49 = vector.load %arg6[%c0_48, %c542] : memref<4x724xbf16, #tpu.memory_space<vmem>>, vector<4x2xbf16>
    tpu.vector_store %arg6[%c0_48, %c542], %48 {strides = array<i32>} : memref<4x724xbf16, #tpu.memory_space<vmem>>, vector<4x2xbf16>,
    %cst_49 = arith.constant 0.000000e+00 : bf16
    %50 = vector.broadcast %cst_49 : bf16 to vector<4x2xbf16>
    %c0_50 = arith.constant 0 : index
    %c560 = arith.constant 560 : index
    %51 = vector.load %arg6[%c0_50, %c560] : memref<4x724xbf16, #tpu.memory_space<vmem>>, vector<4x2xbf16>
    tpu.vector_store %arg6[%c0_50, %c560], %50 {strides = array<i32>} : memref<4x724xbf16, #tpu.memory_space<vmem>>, vector<4x2xbf16>,
    %cst_51 = arith.constant 0.000000e+00 : bf16
    %52 = vector.broadcast %cst_51 : bf16 to vector<4x2xbf16>
    %c0_52 = arith.constant 0 : index
    %c578 = arith.constant 578 : index
    %53 = vector.load %arg6[%c0_52, %c578] : memref<4x724xbf16, #tpu.memory_space<vmem>>, vector<4x2xbf16>
    tpu.vector_store %arg6[%c0_52, %c578], %52 {strides = array<i32>} : memref<4x724xbf16, #tpu.memory_space<vmem>>, vector<4x2xbf16>,
    %cst_53 = arith.constant 0.000000e+00 : bf16
    %54 = vector.broadcast %cst_53 : bf16 to vector<4x2xbf16>
    %c0_54 = arith.constant 0 : index
    %c596 = arith.constant 596 : index
    %55 = vector.load %arg6[%c0_54, %c596] : memref<4x724xbf16, #tpu.memory_space<vmem>>, vector<4x2xbf16>
    tpu.vector_store %arg6[%c0_54, %c596], %54 {strides = array<i32>} : memref<4x724xbf16, #tpu.memory_space<vmem>>, vector<4x2xbf16>,
    %cst_55 = arith.constant 0.000000e+00 : bf16
    %56 = vector.broadcast %cst_55 : bf16 to vector<4x2xbf16>
    %c0_56 = arith.constant 0 : index
    %c614 = arith.constant 614 : index
    %57 = vector.load %arg6[%c0_56, %c614] : memref<4x724xbf16, #tpu.memory_space<vmem>>, vector<4x2xbf16>
    tpu.vector_store %arg6[%c0_56, %c614], %56 {strides = array<i32>} : memref<4x724xbf16, #tpu.memory_space<vmem>>, vector<4x2xbf16>,
    %cst_57 = arith.constant 0.000000e+00 : bf16
    %58 = vector.broadcast %cst_57 : bf16 to vector<4x2xbf16>
    %c0_58 = arith.constant 0 : index
    %c632 = arith.constant 632 : index
    %59 = vector.load %arg6[%c0_58, %c632] : memref<4x724xbf16, #tpu.memory_space<vmem>>, vector<4x2xbf16>
    tpu.vector_store %arg6[%c0_58, %c632], %58 {strides = array<i32>} : memref<4x724xbf16, #tpu.memory_space<vmem>>, vector<4x2xbf16>,
    %cst_59 = arith.constant 0.000000e+00 : bf16
    %60 = vector.broadcast %cst_59 : bf16 to vector<4x2xbf16>
    %c0_60 = arith.constant 0 : index
    %c650 = arith.constant 650 : index
    %61 = vector.load %arg6[%c0_60, %c650] : memref<4x724xbf16, #tpu.memory_space<vmem>>, vector<4x2xbf16>
    tpu.vector_store %arg6[%c0_60, %c650], %60 {strides = array<i32>} : memref<4x724xbf16, #tpu.memory_space<vmem>>, vector<4x2xbf16>,
    %cst_61 = arith.constant 0.000000e+00 : bf16
    %62 = vector.broadcast %cst_61 : bf16 to vector<4x2xbf16>
    %c0_62 = arith.constant 0 : index
    %c668 = arith.constant 668 : index
    %63 = vector.load %arg6[%c0_62, %c668] : memref<4x724xbf16, #tpu.memory_space<vmem>>, vector<4x2xbf16>
    tpu.vector_store %arg6[%c0_62, %c668], %62 {strides = array<i32>} : memref<4x724xbf16, #tpu.memory_space<vmem>>, vector<4x2xbf16>,
    %cst_63 = arith.constant 0.000000e+00 : bf16
    %64 = vector.broadcast %cst_63 : bf16 to vector<4x38xbf16>
    %c0_64 = arith.constant 0 : index
    %c686 = arith.constant 686 : index
    %65 = vector.load %arg6[%c0_64, %c686] : memref<4x724xbf16, #tpu.memory_space<vmem>>, vector<4x38xbf16>
    tpu.vector_store %arg6[%c0_64, %c686], %64 {strides = array<i32>} : memref<4x724xbf16, #tpu.memory_space<vmem>>, vector<4x38xbf16>,
    %c0_65 = arith.constant 0 : index
    %c0_66 = arith.constant 0 : index
    %c0_67 = arith.constant 0 : index
    %66 = vector.load %arg1[%c0_65, %c0_66, %c0_67] : memref<2x4x256xf32, #tpu.memory_space<vmem>>, vector<1x4x256xf32>
    %67 = vector.shape_cast %66 : vector<1x4x256xf32> to vector<4x256xf32>
    %68 = arith.truncf %67 : vector<4x256xf32> to vector<4x256xbf16>
    %69 = vector.extract_strided_slice %68 {offsets = [0, 0], sizes = [4, 16], strides = [1, 1]} : vector<4x256xbf16> to vector<4x16xbf16>
    %c0_68 = arith.constant 0 : index
    %c38 = arith.constant 38 : index
    %70 = vector.load %arg6[%c0_68, %c38] : memref<4x724xbf16, #tpu.memory_space<vmem>>, vector<4x16xbf16>
    tpu.vector_store %arg6[%c0_68, %c38], %69 {strides = array<i32>} : memref<4x724xbf16, #tpu.memory_space<vmem>>, vector<4x16xbf16>,
    %71 = vector.extract_strided_slice %68 {offsets = [0, 16], sizes = [4, 16], strides = [1, 1]} : vector<4x256xbf16> to vector<4x16xbf16>
    %c0_69 = arith.constant 0 : index
    %c56 = arith.constant 56 : index
    %72 = vector.load %arg6[%c0_69, %c56] : memref<4x724xbf16, #tpu.memory_space<vmem>>, vector<4x16xbf16>
    tpu.vector_store %arg6[%c0_69, %c56], %71 {strides = array<i32>} : memref<4x724xbf16, #tpu.memory_space<vmem>>, vector<4x16xbf16>,
    %73 = vector.extract_strided_slice %68 {offsets = [0, 32], sizes = [4, 16], strides = [1, 1]} : vector<4x256xbf16> to vector<4x16xbf16>
    %c0_70 = arith.constant 0 : index
    %c74 = arith.constant 74 : index
    %74 = vector.load %arg6[%c0_70, %c74] : memref<4x724xbf16, #tpu.memory_space<vmem>>, vector<4x16xbf16>
    tpu.vector_store %arg6[%c0_70, %c74], %73 {strides = array<i32>} : memref<4x724xbf16, #tpu.memory_space<vmem>>, vector<4x16xbf16>,
    %75 = vector.extract_strided_slice %68 {offsets = [0, 48], sizes = [4, 16], strides = [1, 1]} : vector<4x256xbf16> to vector<4x16xbf16>
    %c0_71 = arith.constant 0 : index
    %c92 = arith.constant 92 : index
    %76 = vector.load %arg6[%c0_71, %c92] : memref<4x724xbf16, #tpu.memory_space<vmem>>, vector<4x16xbf16>
    tpu.vector_store %arg6[%c0_71, %c92], %75 {strides = array<i32>} : memref<4x724xbf16, #tpu.memory_space<vmem>>, vector<4x16xbf16>,
    %77 = vector.extract_strided_slice %68 {offsets = [0, 64], sizes = [4, 16], strides = [1, 1]} : vector<4x256xbf16> to vector<4x16xbf16>
    %c0_72 = arith.constant 0 : index
    %c110 = arith.constant 110 : index
    %78 = vector.load %arg6[%c0_72, %c110] : memref<4x724xbf16, #tpu.memory_space<vmem>>, vector<4x16xbf16>
    tpu.vector_store %arg6[%c0_72, %c110], %77 {strides = array<i32>} : memref<4x724xbf16, #tpu.memory_space<vmem>>, vector<4x16xbf16>,
    %79 = vector.extract_strided_slice %68 {offsets = [0, 80], sizes = [4, 16], strides = [1, 1]} : vector<4x256xbf16> to vector<4x16xbf16>
    %c0_73 = arith.constant 0 : index
    %c128 = arith.constant 128 : index
    %80 = vector.load %arg6[%c0_73, %c128] : memref<4x724xbf16, #tpu.memory_space<vmem>>, vector<4x16xbf16>
    tpu.vector_store %arg6[%c0_73, %c128], %79 {strides = array<i32>} : memref<4x724xbf16, #tpu.memory_space<vmem>>, vector<4x16xbf16>,
    %81 = vector.extract_strided_slice %68 {offsets = [0, 96], sizes = [4, 16], strides = [1, 1]} : vector<4x256xbf16> to vector<4x16xbf16>
    %c0_74 = arith.constant 0 : index
    %c146 = arith.constant 146 : index
    %82 = vector.load %arg6[%c0_74, %c146] : memref<4x724xbf16, #tpu.memory_space<vmem>>, vector<4x16xbf16>
    tpu.vector_store %arg6[%c0_74, %c146], %81 {strides = array<i32>} : memref<4x724xbf16, #tpu.memory_space<vmem>>, vector<4x16xbf16>,
    %83 = vector.extract_strided_slice %68 {offsets = [0, 112], sizes = [4, 16], strides = [1, 1]} : vector<4x256xbf16> to vector<4x16xbf16>
    %c0_75 = arith.constant 0 : index
    %c164 = arith.constant 164 : index
    %84 = vector.load %arg6[%c0_75, %c164] : memref<4x724xbf16, #tpu.memory_space<vmem>>, vector<4x16xbf16>
    tpu.vector_store %arg6[%c0_75, %c164], %83 {strides = array<i32>} : memref<4x724xbf16, #tpu.memory_space<vmem>>, vector<4x16xbf16>,
    %85 = vector.extract_strided_slice %68 {offsets = [0, 128], sizes = [4, 16], strides = [1, 1]} : vector<4x256xbf16> to vector<4x16xbf16>
    %c0_76 = arith.constant 0 : index
    %c182 = arith.constant 182 : index
    %86 = vector.load %arg6[%c0_76, %c182] : memref<4x724xbf16, #tpu.memory_space<vmem>>, vector<4x16xbf16>
    tpu.vector_store %arg6[%c0_76, %c182], %85 {strides = array<i32>} : memref<4x724xbf16, #tpu.memory_space<vmem>>, vector<4x16xbf16>,
    %87 = vector.extract_strided_slice %68 {offsets = [0, 144], sizes = [4, 16], strides = [1, 1]} : vector<4x256xbf16> to vector<4x16xbf16>
    %c0_77 = arith.constant 0 : index
    %c200 = arith.constant 200 : index
    %88 = vector.load %arg6[%c0_77, %c200] : memref<4x724xbf16, #tpu.memory_space<vmem>>, vector<4x16xbf16>
    tpu.vector_store %arg6[%c0_77, %c200], %87 {strides = array<i32>} : memref<4x724xbf16, #tpu.memory_space<vmem>>, vector<4x16xbf16>,
    %89 = vector.extract_strided_slice %68 {offsets = [0, 160], sizes = [4, 16], strides = [1, 1]} : vector<4x256xbf16> to vector<4x16xbf16>
    %c0_78 = arith.constant 0 : index
    %c218 = arith.constant 218 : index
    %90 = vector.load %arg6[%c0_78, %c218] : memref<4x724xbf16, #tpu.memory_space<vmem>>, vector<4x16xbf16>
    tpu.vector_store %arg6[%c0_78, %c218], %89 {strides = array<i32>} : memref<4x724xbf16, #tpu.memory_space<vmem>>, vector<4x16xbf16>,
    %91 = vector.extract_strided_slice %68 {offsets = [0, 176], sizes = [4, 16], strides = [1, 1]} : vector<4x256xbf16> to vector<4x16xbf16>
    %c0_79 = arith.constant 0 : index
    %c236 = arith.constant 236 : index
    %92 = vector.load %arg6[%c0_79, %c236] : memref<4x724xbf16, #tpu.memory_space<vmem>>, vector<4x16xbf16>
    tpu.vector_store %arg6[%c0_79, %c236], %91 {strides = array<i32>} : memref<4x724xbf16, #tpu.memory_space<vmem>>, vector<4x16xbf16>,
    %93 = vector.extract_strided_slice %68 {offsets = [0, 192], sizes = [4, 16], strides = [1, 1]} : vector<4x256xbf16> to vector<4x16xbf16>
    %c0_80 = arith.constant 0 : index
    %c254 = arith.constant 254 : index
    %94 = vector.load %arg6[%c0_80, %c254] : memref<4x724xbf16, #tpu.memory_space<vmem>>, vector<4x16xbf16>
    tpu.vector_store %arg6[%c0_80, %c254], %93 {strides = array<i32>} : memref<4x724xbf16, #tpu.memory_space<vmem>>, vector<4x16xbf16>,
    %95 = vector.extract_strided_slice %68 {offsets = [0, 208], sizes = [4, 16], strides = [1, 1]} : vector<4x256xbf16> to vector<4x16xbf16>
    %c0_81 = arith.constant 0 : index
    %c272 = arith.constant 272 : index
    %96 = vector.load %arg6[%c0_81, %c272] : memref<4x724xbf16, #tpu.memory_space<vmem>>, vector<4x16xbf16>
    tpu.vector_store %arg6[%c0_81, %c272], %95 {strides = array<i32>} : memref<4x724xbf16, #tpu.memory_space<vmem>>, vector<4x16xbf16>,
    %97 = vector.extract_strided_slice %68 {offsets = [0, 224], sizes = [4, 16], strides = [1, 1]} : vector<4x256xbf16> to vector<4x16xbf16>
    %c0_82 = arith.constant 0 : index
    %c290 = arith.constant 290 : index
    %98 = vector.load %arg6[%c0_82, %c290] : memref<4x724xbf16, #tpu.memory_space<vmem>>, vector<4x16xbf16>
    tpu.vector_store %arg6[%c0_82, %c290], %97 {strides = array<i32>} : memref<4x724xbf16, #tpu.memory_space<vmem>>, vector<4x16xbf16>,
    %99 = vector.extract_strided_slice %68 {offsets = [0, 240], sizes = [4, 16], strides = [1, 1]} : vector<4x256xbf16> to vector<4x16xbf16>
    %c0_83 = arith.constant 0 : index
    %c308 = arith.constant 308 : index
    %100 = vector.load %arg6[%c0_83, %c308] : memref<4x724xbf16, #tpu.memory_space<vmem>>, vector<4x16xbf16>
    tpu.vector_store %arg6[%c0_83, %c308], %99 {strides = array<i32>} : memref<4x724xbf16, #tpu.memory_space<vmem>>, vector<4x16xbf16>,
    %c1 = arith.constant 1 : index
    %c0_84 = arith.constant 0 : index
    %c0_85 = arith.constant 0 : index
    %101 = vector.load %arg1[%c1, %c0_84, %c0_85] : memref<2x4x256xf32, #tpu.memory_space<vmem>>, vector<1x4x256xf32>
    %102 = vector.shape_cast %101 : vector<1x4x256xf32> to vector<4x256xf32>
    %103 = arith.truncf %102 : vector<4x256xf32> to vector<4x256xbf16>
    %104 = vector.extract_strided_slice %103 {offsets = [0, 0], sizes = [4, 16], strides = [1, 1]} : vector<4x256xbf16> to vector<4x16xbf16>
    %c0_86 = arith.constant 0 : index
    %c400 = arith.constant 400 : index
    %105 = vector.load %arg6[%c0_86, %c400] : memref<4x724xbf16, #tpu.memory_space<vmem>>, vector<4x16xbf16>
    tpu.vector_store %arg6[%c0_86, %c400], %104 {strides = array<i32>} : memref<4x724xbf16, #tpu.memory_space<vmem>>, vector<4x16xbf16>,
    %106 = vector.extract_strided_slice %103 {offsets = [0, 16], sizes = [4, 16], strides = [1, 1]} : vector<4x256xbf16> to vector<4x16xbf16>
    %c0_87 = arith.constant 0 : index
    %c418 = arith.constant 418 : index
    %107 = vector.load %arg6[%c0_87, %c418] : memref<4x724xbf16, #tpu.memory_space<vmem>>, vector<4x16xbf16>
    tpu.vector_store %arg6[%c0_87, %c418], %106 {strides = array<i32>} : memref<4x724xbf16, #tpu.memory_space<vmem>>, vector<4x16xbf16>,
    %108 = vector.extract_strided_slice %103 {offsets = [0, 32], sizes = [4, 16], strides = [1, 1]} : vector<4x256xbf16> to vector<4x16xbf16>
    %c0_88 = arith.constant 0 : index
    %c436 = arith.constant 436 : index
    %109 = vector.load %arg6[%c0_88, %c436] : memref<4x724xbf16, #tpu.memory_space<vmem>>, vector<4x16xbf16>
    tpu.vector_store %arg6[%c0_88, %c436], %108 {strides = array<i32>} : memref<4x724xbf16, #tpu.memory_space<vmem>>, vector<4x16xbf16>,
    %110 = vector.extract_strided_slice %103 {offsets = [0, 48], sizes = [4, 16], strides = [1, 1]} : vector<4x256xbf16> to vector<4x16xbf16>
    %c0_89 = arith.constant 0 : index
    %c454 = arith.constant 454 : index
    %111 = vector.load %arg6[%c0_89, %c454] : memref<4x724xbf16, #tpu.memory_space<vmem>>, vector<4x16xbf16>
    tpu.vector_store %arg6[%c0_89, %c454], %110 {strides = array<i32>} : memref<4x724xbf16, #tpu.memory_space<vmem>>, vector<4x16xbf16>,
    %112 = vector.extract_strided_slice %103 {offsets = [0, 64], sizes = [4, 16], strides = [1, 1]} : vector<4x256xbf16> to vector<4x16xbf16>
    %c0_90 = arith.constant 0 : index
    %c472 = arith.constant 472 : index
    %113 = vector.load %arg6[%c0_90, %c472] : memref<4x724xbf16, #tpu.memory_space<vmem>>, vector<4x16xbf16>
    tpu.vector_store %arg6[%c0_90, %c472], %112 {strides = array<i32>} : memref<4x724xbf16, #tpu.memory_space<vmem>>, vector<4x16xbf16>,
    %114 = vector.extract_strided_slice %103 {offsets = [0, 80], sizes = [4, 16], strides = [1, 1]} : vector<4x256xbf16> to vector<4x16xbf16>
    %c0_91 = arith.constant 0 : index
    %c490 = arith.constant 490 : index
    %115 = vector.load %arg6[%c0_91, %c490] : memref<4x724xbf16, #tpu.memory_space<vmem>>, vector<4x16xbf16>
    tpu.vector_store %arg6[%c0_91, %c490], %114 {strides = array<i32>} : memref<4x724xbf16, #tpu.memory_space<vmem>>, vector<4x16xbf16>,
    %116 = vector.extract_strided_slice %103 {offsets = [0, 96], sizes = [4, 16], strides = [1, 1]} : vector<4x256xbf16> to vector<4x16xbf16>
    %c0_92 = arith.constant 0 : index
    %c508 = arith.constant 508 : index
    %117 = vector.load %arg6[%c0_92, %c508] : memref<4x724xbf16, #tpu.memory_space<vmem>>, vector<4x16xbf16>
    tpu.vector_store %arg6[%c0_92, %c508], %116 {strides = array<i32>} : memref<4x724xbf16, #tpu.memory_space<vmem>>, vector<4x16xbf16>,
    %118 = vector.extract_strided_slice %103 {offsets = [0, 112], sizes = [4, 16], strides = [1, 1]} : vector<4x256xbf16> to vector<4x16xbf16>
    %c0_93 = arith.constant 0 : index
    %c526 = arith.constant 526 : index
    %119 = vector.load %arg6[%c0_93, %c526] : memref<4x724xbf16, #tpu.memory_space<vmem>>, vector<4x16xbf16>
    tpu.vector_store %arg6[%c0_93, %c526], %118 {strides = array<i32>} : memref<4x724xbf16, #tpu.memory_space<vmem>>, vector<4x16xbf16>,
    %120 = vector.extract_strided_slice %103 {offsets = [0, 128], sizes = [4, 16], strides = [1, 1]} : vector<4x256xbf16> to vector<4x16xbf16>
    %c0_94 = arith.constant 0 : index
    %c544 = arith.constant 544 : index
    %121 = vector.load %arg6[%c0_94, %c544] : memref<4x724xbf16, #tpu.memory_space<vmem>>, vector<4x16xbf16>
    tpu.vector_store %arg6[%c0_94, %c544], %120 {strides = array<i32>} : memref<4x724xbf16, #tpu.memory_space<vmem>>, vector<4x16xbf16>,
    %122 = vector.extract_strided_slice %103 {offsets = [0, 144], sizes = [4, 16], strides = [1, 1]} : vector<4x256xbf16> to vector<4x16xbf16>
    %c0_95 = arith.constant 0 : index
    %c562 = arith.constant 562 : index
    %123 = vector.load %arg6[%c0_95, %c562] : memref<4x724xbf16, #tpu.memory_space<vmem>>, vector<4x16xbf16>
    tpu.vector_store %arg6[%c0_95, %c562], %122 {strides = array<i32>} : memref<4x724xbf16, #tpu.memory_space<vmem>>, vector<4x16xbf16>,
    %124 = vector.extract_strided_slice %103 {offsets = [0, 160], sizes = [4, 16], strides = [1, 1]} : vector<4x256xbf16> to vector<4x16xbf16>
    %c0_96 = arith.constant 0 : index
    %c580 = arith.constant 580 : index
    %125 = vector.load %arg6[%c0_96, %c580] : memref<4x724xbf16, #tpu.memory_space<vmem>>, vector<4x16xbf16>
    tpu.vector_store %arg6[%c0_96, %c580], %124 {strides = array<i32>} : memref<4x724xbf16, #tpu.memory_space<vmem>>, vector<4x16xbf16>,
    %126 = vector.extract_strided_slice %103 {offsets = [0, 176], sizes = [4, 16], strides = [1, 1]} : vector<4x256xbf16> to vector<4x16xbf16>
    %c0_97 = arith.constant 0 : index
    %c598 = arith.constant 598 : index
    %127 = vector.load %arg6[%c0_97, %c598] : memref<4x724xbf16, #tpu.memory_space<vmem>>, vector<4x16xbf16>
    tpu.vector_store %arg6[%c0_97, %c598], %126 {strides = array<i32>} : memref<4x724xbf16, #tpu.memory_space<vmem>>, vector<4x16xbf16>,
    %128 = vector.extract_strided_slice %103 {offsets = [0, 192], sizes = [4, 16], strides = [1, 1]} : vector<4x256xbf16> to vector<4x16xbf16>
    %c0_98 = arith.constant 0 : index
    %c616 = arith.constant 616 : index
    %129 = vector.load %arg6[%c0_98, %c616] : memref<4x724xbf16, #tpu.memory_space<vmem>>, vector<4x16xbf16>
    tpu.vector_store %arg6[%c0_98, %c616], %128 {strides = array<i32>} : memref<4x724xbf16, #tpu.memory_space<vmem>>, vector<4x16xbf16>,
    %130 = vector.extract_strided_slice %103 {offsets = [0, 208], sizes = [4, 16], strides = [1, 1]} : vector<4x256xbf16> to vector<4x16xbf16>
    %c0_99 = arith.constant 0 : index
    %c634 = arith.constant 634 : index
    %131 = vector.load %arg6[%c0_99, %c634] : memref<4x724xbf16, #tpu.memory_space<vmem>>, vector<4x16xbf16>
    tpu.vector_store %arg6[%c0_99, %c634], %130 {strides = array<i32>} : memref<4x724xbf16, #tpu.memory_space<vmem>>, vector<4x16xbf16>,
    %132 = vector.extract_strided_slice %103 {offsets = [0, 224], sizes = [4, 16], strides = [1, 1]} : vector<4x256xbf16> to vector<4x16xbf16>
    %c0_100 = arith.constant 0 : index
    %c652 = arith.constant 652 : index
    %133 = vector.load %arg6[%c0_100, %c652] : memref<4x724xbf16, #tpu.memory_space<vmem>>, vector<4x16xbf16>
    tpu.vector_store %arg6[%c0_100, %c652], %132 {strides = array<i32>} : memref<4x724xbf16, #tpu.memory_space<vmem>>, vector<4x16xbf16>,
    %134 = vector.extract_strided_slice %103 {offsets = [0, 240], sizes = [4, 16], strides = [1, 1]} : vector<4x256xbf16> to vector<4x16xbf16>
    %c0_101 = arith.constant 0 : index
    %c670 = arith.constant 670 : index
    %135 = vector.load %arg6[%c0_101, %c670] : memref<4x724xbf16, #tpu.memory_space<vmem>>, vector<4x16xbf16>
    tpu.vector_store %arg6[%c0_101, %c670], %134 {strides = array<i32>} : memref<4x724xbf16, #tpu.memory_space<vmem>>, vector<4x16xbf16>,
    %c0_102 = arith.constant 0 : index
    %c0_103 = arith.constant 0 : index
    %136 = vector.load %arg6[%c0_102, %c0_103] : memref<4x724xbf16, #tpu.memory_space<vmem>>, vector<4x686xbf16>
    %c0_104 = arith.constant 0 : index
    %c0_105 = arith.constant 0 : index
    %137 = vector.load %arg7[%c0_104, %c0_105] : memref<36x686xbf16, #tpu.memory_space<vmem>>, vector<4x686xbf16>
    tpu.vector_store %arg7[%c0_104, %c0_105], %136 {strides = array<i32>} : memref<36x686xbf16, #tpu.memory_space<vmem>>, vector<4x686xbf16>,
    %c0_106 = arith.constant 0 : index
    %c1_107 = arith.constant 1 : index
    %138 = vector.load %arg6[%c0_106, %c1_107] : memref<4x724xbf16, #tpu.memory_space<vmem>>, vector<4x686xbf16>
    %c4 = arith.constant 4 : index
    %c0_108 = arith.constant 0 : index
    %139 = vector.load %arg7[%c4, %c0_108] : memref<36x686xbf16, #tpu.memory_space<vmem>>, vector<4x686xbf16>
    tpu.vector_store %arg7[%c4, %c0_108], %138 {strides = array<i32>} : memref<36x686xbf16, #tpu.memory_space<vmem>>, vector<4x686xbf16>,
    %c0_109 = arith.constant 0 : index
    %c2 = arith.constant 2 : index
    %140 = vector.load %arg6[%c0_109, %c2] : memref<4x724xbf16, #tpu.memory_space<vmem>>, vector<4x686xbf16>
    %c8 = arith.constant 8 : index
    %c0_110 = arith.constant 0 : index
    %141 = vector.load %arg7[%c8, %c0_110] : memref<36x686xbf16, #tpu.memory_space<vmem>>, vector<4x686xbf16>
    tpu.vector_store %arg7[%c8, %c0_110], %140 {strides = array<i32>} : memref<36x686xbf16, #tpu.memory_space<vmem>>, vector<4x686xbf16>,
    %c0_111 = arith.constant 0 : index
    %c18 = arith.constant 18 : index
    %142 = vector.load %arg6[%c0_111, %c18] : memref<4x724xbf16, #tpu.memory_space<vmem>>, vector<4x686xbf16>
    %c12 = arith.constant 12 : index
    %c0_112 = arith.constant 0 : index
    %143 = vector.load %arg7[%c12, %c0_112] : memref<36x686xbf16, #tpu.memory_space<vmem>>, vector<4x686xbf16>
    tpu.vector_store %arg7[%c12, %c0_112], %142 {strides = array<i32>} : memref<36x686xbf16, #tpu.memory_space<vmem>>, vector<4x686xbf16>,
    %c0_113 = arith.constant 0 : index
    %c19 = arith.constant 19 : index
    %144 = vector.load %arg6[%c0_113, %c19] : memref<4x724xbf16, #tpu.memory_space<vmem>>, vector<4x686xbf16>
    %c16 = arith.constant 16 : index
    %c0_114 = arith.constant 0 : index
    %145 = vector.load %arg7[%c16, %c0_114] : memref<36x686xbf16, #tpu.memory_space<vmem>>, vector<4x686xbf16>
    tpu.vector_store %arg7[%c16, %c0_114], %144 {strides = array<i32>} : memref<36x686xbf16, #tpu.memory_space<vmem>>, vector<4x686xbf16>,
    %c0_115 = arith.constant 0 : index
    %c20 = arith.constant 20 : index
    %146 = vector.load %arg6[%c0_115, %c20] : memref<4x724xbf16, #tpu.memory_space<vmem>>, vector<4x686xbf16>
    %c20_116 = arith.constant 20 : index
    %c0_117 = arith.constant 0 : index
    %147 = vector.load %arg7[%c20_116, %c0_117] : memref<36x686xbf16, #tpu.memory_space<vmem>>, vector<4x686xbf16>
    tpu.vector_store %arg7[%c20_116, %c0_117], %146 {strides = array<i32>} : memref<36x686xbf16, #tpu.memory_space<vmem>>, vector<4x686xbf16>,
    %c0_118 = arith.constant 0 : index
    %c36 = arith.constant 36 : index
    %148 = vector.load %arg6[%c0_118, %c36] : memref<4x724xbf16, #tpu.memory_space<vmem>>, vector<4x686xbf16>
    %c24 = arith.constant 24 : index
    %c0_119 = arith.constant 0 : index
    %149 = vector.load %arg7[%c24, %c0_119] : memref<36x686xbf16, #tpu.memory_space<vmem>>, vector<4x686xbf16>
    tpu.vector_store %arg7[%c24, %c0_119], %148 {strides = array<i32>} : memref<36x686xbf16, #tpu.memory_space<vmem>>, vector<4x686xbf16>,
    %c0_120 = arith.constant 0 : index
    %c37 = arith.constant 37 : index
    %150 = vector.load %arg6[%c0_120, %c37] : memref<4x724xbf16, #tpu.memory_space<vmem>>, vector<4x686xbf16>
    %c28 = arith.constant 28 : index
    %c0_121 = arith.constant 0 : index
    %151 = vector.load %arg7[%c28, %c0_121] : memref<36x686xbf16, #tpu.memory_space<vmem>>, vector<4x686xbf16>
    tpu.vector_store %arg7[%c28, %c0_121], %150 {strides = array<i32>} : memref<36x686xbf16, #tpu.memory_space<vmem>>, vector<4x686xbf16>,
    %c0_122 = arith.constant 0 : index
    %c38_123 = arith.constant 38 : index
    %152 = vector.load %arg6[%c0_122, %c38_123] : memref<4x724xbf16, #tpu.memory_space<vmem>>, vector<4x686xbf16>
    %c32 = arith.constant 32 : index
    %c0_124 = arith.constant 0 : index
    %153 = vector.load %arg7[%c32, %c0_124] : memref<36x686xbf16, #tpu.memory_space<vmem>>, vector<4x686xbf16>
    tpu.vector_store %arg7[%c32, %c0_124], %152 {strides = array<i32>} : memref<36x686xbf16, #tpu.memory_space<vmem>>, vector<4x686xbf16>,
    %c0_125 = arith.constant 0 : index
    %c0_126 = arith.constant 0 : index
    %154 = vector.load %arg2[%c0_125, %c0_126] : memref<4x36xbf16, #tpu.memory_space<vmem>>, vector<4x36xbf16>
    %c0_127 = arith.constant 0 : index
    %c0_128 = arith.constant 0 : index
    %155 = vector.load %arg7[%c0_127, %c0_128] : memref<36x686xbf16, #tpu.memory_space<vmem>>, vector<36x686xbf16>
    %cst_129 = arith.constant dense<0.000000e+00> : vector<4x686xf32>
    %156 = tpu.matmul %154, %155, %cst_129 {dimension_numbers = #tpu.dot_dimension_numbers<[1], [0], [0], [1], [0, 0, 1, 1], [], []>} : vector<4x36xbf16>, vector<36x686xbf16>, vector<4x686xf32> -> vector<4x686xf32>
    %c0_130 = arith.constant 0 : index
    %c0_131 = arith.constant 0 : index
    %157 = vector.load %arg3[%c0_130, %c0_131] : memref<4x1xf32, #tpu.memory_space<vmem>>, vector<4x1xf32>
    %158 = vector.broadcast %157 : vector<4x1xf32> to vector<4x686xf32>
    %159 = arith.addf %156, %158 : vector<4x686xf32>
    %160 = vector.extract_strided_slice %159 {offsets = [0, 19], sizes = [4, 16], strides = [1, 1]} : vector<4x686xf32> to vector<4x16xf32>
    %c0_132 = arith.constant 0 : index
    %c0_133 = arith.constant 0 : index
    %161 = vector.load %arg8[%c0_132, %c0_133] : memref<4x512xf32, #tpu.memory_space<vmem>>, vector<4x16xf32>
    tpu.vector_store %arg8[%c0_132, %c0_133], %160 {strides = array<i32>} : memref<4x512xf32, #tpu.memory_space<vmem>>, vector<4x16xf32>,
    %162 = vector.extract_strided_slice %159 {offsets = [0, 37], sizes = [4, 16], strides = [1, 1]} : vector<4x686xf32> to vector<4x16xf32>
    %c0_134 = arith.constant 0 : index
    %c16_135 = arith.constant 16 : index
    %163 = vector.load %arg8[%c0_134, %c16_135] : memref<4x512xf32, #tpu.memory_space<vmem>>, vector<4x16xf32>
    tpu.vector_store %arg8[%c0_134, %c16_135], %162 {strides = array<i32>} : memref<4x512xf32, #tpu.memory_space<vmem>>, vector<4x16xf32>,
    %164 = vector.extract_strided_slice %159 {offsets = [0, 55], sizes = [4, 16], strides = [1, 1]} : vector<4x686xf32> to vector<4x16xf32>
    %c0_136 = arith.constant 0 : index
    %c32_137 = arith.constant 32 : index
    %165 = vector.load %arg8[%c0_136, %c32_137] : memref<4x512xf32, #tpu.memory_space<vmem>>, vector<4x16xf32>
    tpu.vector_store %arg8[%c0_136, %c32_137], %164 {strides = array<i32>} : memref<4x512xf32, #tpu.memory_space<vmem>>, vector<4x16xf32>,
    %166 = vector.extract_strided_slice %159 {offsets = [0, 73], sizes = [4, 16], strides = [1, 1]} : vector<4x686xf32> to vector<4x16xf32>
    %c0_138 = arith.constant 0 : index
    %c48 = arith.constant 48 : index
    %167 = vector.load %arg8[%c0_138, %c48] : memref<4x512xf32, #tpu.memory_space<vmem>>, vector<4x16xf32>
    tpu.vector_store %arg8[%c0_138, %c48], %166 {strides = array<i32>} : memref<4x512xf32, #tpu.memory_space<vmem>>, vector<4x16xf32>,
    %168 = vector.extract_strided_slice %159 {offsets = [0, 91], sizes = [4, 16], strides = [1, 1]} : vector<4x686xf32> to vector<4x16xf32>
    %c0_139 = arith.constant 0 : index
    %c64 = arith.constant 64 : index
    %169 = vector.load %arg8[%c0_139, %c64] : memref<4x512xf32, #tpu.memory_space<vmem>>, vector<4x16xf32>
    tpu.vector_store %arg8[%c0_139, %c64], %168 {strides = array<i32>} : memref<4x512xf32, #tpu.memory_space<vmem>>, vector<4x16xf32>,
    %170 = vector.extract_strided_slice %159 {offsets = [0, 109], sizes = [4, 16], strides = [1, 1]} : vector<4x686xf32> to vector<4x16xf32>
    %c0_140 = arith.constant 0 : index
    %c80 = arith.constant 80 : index
    %171 = vector.load %arg8[%c0_140, %c80] : memref<4x512xf32, #tpu.memory_space<vmem>>, vector<4x16xf32>
    tpu.vector_store %arg8[%c0_140, %c80], %170 {strides = array<i32>} : memref<4x512xf32, #tpu.memory_space<vmem>>, vector<4x16xf32>,
    %172 = vector.extract_strided_slice %159 {offsets = [0, 127], sizes = [4, 16], strides = [1, 1]} : vector<4x686xf32> to vector<4x16xf32>
    %c0_141 = arith.constant 0 : index
    %c96 = arith.constant 96 : index
    %173 = vector.load %arg8[%c0_141, %c96] : memref<4x512xf32, #tpu.memory_space<vmem>>, vector<4x16xf32>
    tpu.vector_store %arg8[%c0_141, %c96], %172 {strides = array<i32>} : memref<4x512xf32, #tpu.memory_space<vmem>>, vector<4x16xf32>,
    %174 = vector.extract_strided_slice %159 {offsets = [0, 145], sizes = [4, 16], strides = [1, 1]} : vector<4x686xf32> to vector<4x16xf32>
    %c0_142 = arith.constant 0 : index
    %c112 = arith.constant 112 : index
    %175 = vector.load %arg8[%c0_142, %c112] : memref<4x512xf32, #tpu.memory_space<vmem>>, vector<4x16xf32>
    tpu.vector_store %arg8[%c0_142, %c112], %174 {strides = array<i32>} : memref<4x512xf32, #tpu.memory_space<vmem>>, vector<4x16xf32>,
    %176 = vector.extract_strided_slice %159 {offsets = [0, 163], sizes = [4, 16], strides = [1, 1]} : vector<4x686xf32> to vector<4x16xf32>
    %c0_143 = arith.constant 0 : index
    %c128_144 = arith.constant 128 : index
    %177 = vector.load %arg8[%c0_143, %c128_144] : memref<4x512xf32, #tpu.memory_space<vmem>>, vector<4x16xf32>
    tpu.vector_store %arg8[%c0_143, %c128_144], %176 {strides = array<i32>} : memref<4x512xf32, #tpu.memory_space<vmem>>, vector<4x16xf32>,
    %178 = vector.extract_strided_slice %159 {offsets = [0, 181], sizes = [4, 16], strides = [1, 1]} : vector<4x686xf32> to vector<4x16xf32>
    %c0_145 = arith.constant 0 : index
    %c144_146 = arith.constant 144 : index
    %179 = vector.load %arg8[%c0_145, %c144_146] : memref<4x512xf32, #tpu.memory_space<vmem>>, vector<4x16xf32>
    tpu.vector_store %arg8[%c0_145, %c144_146], %178 {strides = array<i32>} : memref<4x512xf32, #tpu.memory_space<vmem>>, vector<4x16xf32>,
    %180 = vector.extract_strided_slice %159 {offsets = [0, 199], sizes = [4, 16], strides = [1, 1]} : vector<4x686xf32> to vector<4x16xf32>
    %c0_147 = arith.constant 0 : index
    %c160 = arith.constant 160 : index
    %181 = vector.load %arg8[%c0_147, %c160] : memref<4x512xf32, #tpu.memory_space<vmem>>, vector<4x16xf32>
    tpu.vector_store %arg8[%c0_147, %c160], %180 {strides = array<i32>} : memref<4x512xf32, #tpu.memory_space<vmem>>, vector<4x16xf32>,
    %182 = vector.extract_strided_slice %159 {offsets = [0, 217], sizes = [4, 16], strides = [1, 1]} : vector<4x686xf32> to vector<4x16xf32>
    %c0_148 = arith.constant 0 : index
    %c176 = arith.constant 176 : index
    %183 = vector.load %arg8[%c0_148, %c176] : memref<4x512xf32, #tpu.memory_space<vmem>>, vector<4x16xf32>
    tpu.vector_store %arg8[%c0_148, %c176], %182 {strides = array<i32>} : memref<4x512xf32, #tpu.memory_space<vmem>>, vector<4x16xf32>,
    %184 = vector.extract_strided_slice %159 {offsets = [0, 235], sizes = [4, 16], strides = [1, 1]} : vector<4x686xf32> to vector<4x16xf32>
    %c0_149 = arith.constant 0 : index
    %c192 = arith.constant 192 : index
    %185 = vector.load %arg8[%c0_149, %c192] : memref<4x512xf32, #tpu.memory_space<vmem>>, vector<4x16xf32>
    tpu.vector_store %arg8[%c0_149, %c192], %184 {strides = array<i32>} : memref<4x512xf32, #tpu.memory_space<vmem>>, vector<4x16xf32>,
    %186 = vector.extract_strided_slice %159 {offsets = [0, 253], sizes = [4, 16], strides = [1, 1]} : vector<4x686xf32> to vector<4x16xf32>
    %c0_150 = arith.constant 0 : index
    %c208 = arith.constant 208 : index
    %187 = vector.load %arg8[%c0_150, %c208] : memref<4x512xf32, #tpu.memory_space<vmem>>, vector<4x16xf32>
    tpu.vector_store %arg8[%c0_150, %c208], %186 {strides = array<i32>} : memref<4x512xf32, #tpu.memory_space<vmem>>, vector<4x16xf32>,
    %188 = vector.extract_strided_slice %159 {offsets = [0, 271], sizes = [4, 16], strides = [1, 1]} : vector<4x686xf32> to vector<4x16xf32>
    %c0_151 = arith.constant 0 : index
    %c224 = arith.constant 224 : index
    %189 = vector.load %arg8[%c0_151, %c224] : memref<4x512xf32, #tpu.memory_space<vmem>>, vector<4x16xf32>
    tpu.vector_store %arg8[%c0_151, %c224], %188 {strides = array<i32>} : memref<4x512xf32, #tpu.memory_space<vmem>>, vector<4x16xf32>,
    %190 = vector.extract_strided_slice %159 {offsets = [0, 289], sizes = [4, 16], strides = [1, 1]} : vector<4x686xf32> to vector<4x16xf32>
    %c0_152 = arith.constant 0 : index
    %c240 = arith.constant 240 : index
    %191 = vector.load %arg8[%c0_152, %c240] : memref<4x512xf32, #tpu.memory_space<vmem>>, vector<4x16xf32>
    tpu.vector_store %arg8[%c0_152, %c240], %190 {strides = array<i32>} : memref<4x512xf32, #tpu.memory_space<vmem>>, vector<4x16xf32>,
    %192 = vector.extract_strided_slice %159 {offsets = [0, 381], sizes = [4, 16], strides = [1, 1]} : vector<4x686xf32> to vector<4x16xf32>
    %c0_153 = arith.constant 0 : index
    %c256 = arith.constant 256 : index
    %193 = vector.load %arg8[%c0_153, %c256] : memref<4x512xf32, #tpu.memory_space<vmem>>, vector<4x16xf32>
    tpu.vector_store %arg8[%c0_153, %c256], %192 {strides = array<i32>} : memref<4x512xf32, #tpu.memory_space<vmem>>, vector<4x16xf32>,
    %194 = vector.extract_strided_slice %159 {offsets = [0, 399], sizes = [4, 16], strides = [1, 1]} : vector<4x686xf32> to vector<4x16xf32>
    %c0_154 = arith.constant 0 : index
    %c272_155 = arith.constant 272 : index
    %195 = vector.load %arg8[%c0_154, %c272_155] : memref<4x512xf32, #tpu.memory_space<vmem>>, vector<4x16xf32>
    tpu.vector_store %arg8[%c0_154, %c272_155], %194 {strides = array<i32>} : memref<4x512xf32, #tpu.memory_space<vmem>>, vector<4x16xf32>,
    %196 = vector.extract_strided_slice %159 {offsets = [0, 417], sizes = [4, 16], strides = [1, 1]} : vector<4x686xf32> to vector<4x16xf32>
    %c0_156 = arith.constant 0 : index
    %c288_157 = arith.constant 288 : index
    %197 = vector.load %arg8[%c0_156, %c288_157] : memref<4x512xf32, #tpu.memory_space<vmem>>, vector<4x16xf32>
    tpu.vector_store %arg8[%c0_156, %c288_157], %196 {strides = array<i32>} : memref<4x512xf32, #tpu.memory_space<vmem>>, vector<4x16xf32>,
    %198 = vector.extract_strided_slice %159 {offsets = [0, 435], sizes = [4, 16], strides = [1, 1]} : vector<4x686xf32> to vector<4x16xf32>
    %c0_158 = arith.constant 0 : index
    %c304 = arith.constant 304 : index
    %199 = vector.load %arg8[%c0_158, %c304] : memref<4x512xf32, #tpu.memory_space<vmem>>, vector<4x16xf32>
    tpu.vector_store %arg8[%c0_158, %c304], %198 {strides = array<i32>} : memref<4x512xf32, #tpu.memory_space<vmem>>, vector<4x16xf32>,
    %200 = vector.extract_strided_slice %159 {offsets = [0, 453], sizes = [4, 16], strides = [1, 1]} : vector<4x686xf32> to vector<4x16xf32>
    %c0_159 = arith.constant 0 : index
    %c320 = arith.constant 320 : index
    %201 = vector.load %arg8[%c0_159, %c320] : memref<4x512xf32, #tpu.memory_space<vmem>>, vector<4x16xf32>
    tpu.vector_store %arg8[%c0_159, %c320], %200 {strides = array<i32>} : memref<4x512xf32, #tpu.memory_space<vmem>>, vector<4x16xf32>,
    %202 = vector.extract_strided_slice %159 {offsets = [0, 471], sizes = [4, 16], strides = [1, 1]} : vector<4x686xf32> to vector<4x16xf32>
    %c0_160 = arith.constant 0 : index
    %c336 = arith.constant 336 : index
    %203 = vector.load %arg8[%c0_160, %c336] : memref<4x512xf32, #tpu.memory_space<vmem>>, vector<4x16xf32>
    tpu.vector_store %arg8[%c0_160, %c336], %202 {strides = array<i32>} : memref<4x512xf32, #tpu.memory_space<vmem>>, vector<4x16xf32>,
    %204 = vector.extract_strided_slice %159 {offsets = [0, 489], sizes = [4, 16], strides = [1, 1]} : vector<4x686xf32> to vector<4x16xf32>
    %c0_161 = arith.constant 0 : index
    %c352 = arith.constant 352 : index
    %205 = vector.load %arg8[%c0_161, %c352] : memref<4x512xf32, #tpu.memory_space<vmem>>, vector<4x16xf32>
    tpu.vector_store %arg8[%c0_161, %c352], %204 {strides = array<i32>} : memref<4x512xf32, #tpu.memory_space<vmem>>, vector<4x16xf32>,
    %206 = vector.extract_strided_slice %159 {offsets = [0, 507], sizes = [4, 16], strides = [1, 1]} : vector<4x686xf32> to vector<4x16xf32>
    %c0_162 = arith.constant 0 : index
    %c368 = arith.constant 368 : index
    %207 = vector.load %arg8[%c0_162, %c368] : memref<4x512xf32, #tpu.memory_space<vmem>>, vector<4x16xf32>
    tpu.vector_store %arg8[%c0_162, %c368], %206 {strides = array<i32>} : memref<4x512xf32, #tpu.memory_space<vmem>>, vector<4x16xf32>,
    %208 = vector.extract_strided_slice %159 {offsets = [0, 525], sizes = [4, 16], strides = [1, 1]} : vector<4x686xf32> to vector<4x16xf32>
    %c0_163 = arith.constant 0 : index
    %c384 = arith.constant 384 : index
    %209 = vector.load %arg8[%c0_163, %c384] : memref<4x512xf32, #tpu.memory_space<vmem>>, vector<4x16xf32>
    tpu.vector_store %arg8[%c0_163, %c384], %208 {strides = array<i32>} : memref<4x512xf32, #tpu.memory_space<vmem>>, vector<4x16xf32>,
    %210 = vector.extract_strided_slice %159 {offsets = [0, 543], sizes = [4, 16], strides = [1, 1]} : vector<4x686xf32> to vector<4x16xf32>
    %c0_164 = arith.constant 0 : index
    %c400_165 = arith.constant 400 : index
    %211 = vector.load %arg8[%c0_164, %c400_165] : memref<4x512xf32, #tpu.memory_space<vmem>>, vector<4x16xf32>
    tpu.vector_store %arg8[%c0_164, %c400_165], %210 {strides = array<i32>} : memref<4x512xf32, #tpu.memory_space<vmem>>, vector<4x16xf32>,
    %212 = vector.extract_strided_slice %159 {offsets = [0, 561], sizes = [4, 16], strides = [1, 1]} : vector<4x686xf32> to vector<4x16xf32>
    %c0_166 = arith.constant 0 : index
    %c416_167 = arith.constant 416 : index
    %213 = vector.load %arg8[%c0_166, %c416_167] : memref<4x512xf32, #tpu.memory_space<vmem>>, vector<4x16xf32>
    tpu.vector_store %arg8[%c0_166, %c416_167], %212 {strides = array<i32>} : memref<4x512xf32, #tpu.memory_space<vmem>>, vector<4x16xf32>,
    %214 = vector.extract_strided_slice %159 {offsets = [0, 579], sizes = [4, 16], strides = [1, 1]} : vector<4x686xf32> to vector<4x16xf32>
    %c0_168 = arith.constant 0 : index
    %c432 = arith.constant 432 : index
    %215 = vector.load %arg8[%c0_168, %c432] : memref<4x512xf32, #tpu.memory_space<vmem>>, vector<4x16xf32>
    tpu.vector_store %arg8[%c0_168, %c432], %214 {strides = array<i32>} : memref<4x512xf32, #tpu.memory_space<vmem>>, vector<4x16xf32>,
    %216 = vector.extract_strided_slice %159 {offsets = [0, 597], sizes = [4, 16], strides = [1, 1]} : vector<4x686xf32> to vector<4x16xf32>
    %c0_169 = arith.constant 0 : index
    %c448 = arith.constant 448 : index
    %217 = vector.load %arg8[%c0_169, %c448] : memref<4x512xf32, #tpu.memory_space<vmem>>, vector<4x16xf32>
    tpu.vector_store %arg8[%c0_169, %c448], %216 {strides = array<i32>} : memref<4x512xf32, #tpu.memory_space<vmem>>, vector<4x16xf32>,
    %218 = vector.extract_strided_slice %159 {offsets = [0, 615], sizes = [4, 16], strides = [1, 1]} : vector<4x686xf32> to vector<4x16xf32>
    %c0_170 = arith.constant 0 : index
    %c464 = arith.constant 464 : index
    %219 = vector.load %arg8[%c0_170, %c464] : memref<4x512xf32, #tpu.memory_space<vmem>>, vector<4x16xf32>
    tpu.vector_store %arg8[%c0_170, %c464], %218 {strides = array<i32>} : memref<4x512xf32, #tpu.memory_space<vmem>>, vector<4x16xf32>,
    %220 = vector.extract_strided_slice %159 {offsets = [0, 633], sizes = [4, 16], strides = [1, 1]} : vector<4x686xf32> to vector<4x16xf32>
    %c0_171 = arith.constant 0 : index
    %c480 = arith.constant 480 : index
    %221 = vector.load %arg8[%c0_171, %c480] : memref<4x512xf32, #tpu.memory_space<vmem>>, vector<4x16xf32>
    tpu.vector_store %arg8[%c0_171, %c480], %220 {strides = array<i32>} : memref<4x512xf32, #tpu.memory_space<vmem>>, vector<4x16xf32>,
    %222 = vector.extract_strided_slice %159 {offsets = [0, 651], sizes = [4, 16], strides = [1, 1]} : vector<4x686xf32> to vector<4x16xf32>
    %c0_172 = arith.constant 0 : index
    %c496 = arith.constant 496 : index
    %223 = vector.load %arg8[%c0_172, %c496] : memref<4x512xf32, #tpu.memory_space<vmem>>, vector<4x16xf32>
    tpu.vector_store %arg8[%c0_172, %c496], %222 {strides = array<i32>} : memref<4x512xf32, #tpu.memory_space<vmem>>, vector<4x16xf32>,
    %c0_173 = arith.constant 0 : index
    %c0_174 = arith.constant 0 : index
    %224 = vector.load %arg8[%c0_173, %c0_174] : memref<4x512xf32, #tpu.memory_space<vmem>>, vector<4x512xf32>
    %cst_175 = arith.constant dense<0.000000e+00> : vector<4xf32>
    %225 = vector.multi_reduction <add>, %224, %cst_175 [1] : vector<4x512xf32> to vector<4xf32>
    %226 = vector.shape_cast %225 : vector<4xf32> to vector<4x1xf32>
    %c0_176 = arith.constant 0 : index
    %c0_177 = arith.constant 0 : index
    %c0_178 = arith.constant 0 : index
    %227 = vector.load %arg5[%c0_176, %c0_177, %c0_178] : memref<1x4x2xf32, #tpu.memory_space<vmem>>, vector<1x4x1xf32>
    %228 = vector.shape_cast %227 : vector<1x4x1xf32> to vector<4x1xf32>
    %229 = vector.shape_cast %226 : vector<4x1xf32> to vector<1x4x1xf32>
    tpu.vector_store %arg5[%c0_176, %c0_177, %c0_178], %229 {strides = array<i32>} : memref<1x4x2xf32, #tpu.memory_space<vmem>>, vector<1x4x1xf32>,
    %230 = arith.mulf %224, %224 : vector<4x512xf32>
    %cst_179 = arith.constant dense<0.000000e+00> : vector<4xf32>
    %231 = vector.multi_reduction <add>, %230, %cst_179 [1] : vector<4x512xf32> to vector<4xf32>
    %232 = vector.shape_cast %231 : vector<4xf32> to vector<4x1xf32>
    %c0_180 = arith.constant 0 : index
    %c0_181 = arith.constant 0 : index
    %c1_182 = arith.constant 1 : index
    %233 = vector.load %arg5[%c0_180, %c0_181, %c1_182] : memref<1x4x2xf32, #tpu.memory_space<vmem>>, vector<1x4x1xf32>
    %234 = vector.shape_cast %233 : vector<1x4x1xf32> to vector<4x1xf32>
    %235 = vector.shape_cast %232 : vector<4x1xf32> to vector<1x4x1xf32>
    tpu.vector_store %arg5[%c0_180, %c0_181, %c1_182], %235 {strides = array<i32>} : memref<1x4x2xf32, #tpu.memory_space<vmem>>, vector<1x4x1xf32>,
    %236 = arith.truncf %224 : vector<4x512xf32> to vector<4x512xbf16>
    %c0_183 = arith.constant 0 : index
    %c0_184 = arith.constant 0 : index
    %237 = vector.load %arg4[%c0_183, %c0_184] : memref<4x512xbf16, #tpu.memory_space<vmem>>, vector<4x512xbf16>
    tpu.vector_store %arg4[%c0_183, %c0_184], %236 {strides = array<i32>} : memref<4x512xbf16, #tpu.memory_space<vmem>>, vector<4x512xbf16>,
    return
  }
  func.func @transform_0(%arg0: i32) -> (i32, i32, i32) {
    %c0_i32 = arith.constant 0 : i32
    %c0_i32_0 = arith.constant 0 : i32
    %c0_i32_1 = arith.constant 0 : i32
    return %arg0, %c0_i32, %c0_i32_0 : i32, i32, i32
  }
  func.func @transform_1(%arg0: i32) -> (i32, i32) {
    %c0_i32 = arith.constant 0 : i32
    %c0_i32_0 = arith.constant 0 : i32
    %c0_i32_1 = arith.constant 0 : i32
    return %c0_i32, %c0_i32_0 : i32, i32
  }
  func.func @transform_2(%arg0: i32) -> (i32, i32) {
    %c0_i32 = arith.constant 0 : i32
    %c0_i32_0 = arith.constant 0 : i32
    %c0_i32_1 = arith.constant 0 : i32
    return %c0_i32, %c0_i32_0 : i32, i32
  }
  func.func @transform_3(%arg0: i32) -> (i32, i32) {
    %c0_i32 = arith.constant 0 : i32
    %c0_i32_0 = arith.constant 0 : i32
    return %c0_i32, %arg0 : i32, i32
  }
  func.func @transform_4(%arg0: i32) -> (i32, i32, i32) {
    %c0_i32 = arith.constant 0 : i32
    %c0_i32_0 = arith.constant 0 : i32
    %c0_i32_1 = arith.constant 0 : i32
    return %arg0, %c0_i32, %c0_i32_0 : i32, i32, i32
  }
}

module attributes {stable_mosaic.version = 11 : i64} {
  func.func @bn_add_relu_kernel(%arg0: i32, %arg1: memref<2x4x256xf32, #tpu.memory_space<vmem>>, %arg2: memref<4x512xbf16, #tpu.memory_space<vmem>>, %arg3: memref<4x1xf32, #tpu.memory_space<vmem>>, %arg4: memref<4x1xf32, #tpu.memory_space<vmem>>, %arg5: memref<2x4x256xf32, #tpu.memory_space<vmem>>) attributes {dimension_semantics = [#tpu.dimension_semantics<parallel>], iteration_bounds = array<i64: 2>, scalar_prefetch = 0 : i64, scratch_operands = 0 : i64, tpu.core_type = #tpu.core_type<tc>, window_params = [{transform_indices = @transform_0, window_bounds = array<i64: 2, 4, 256>}, {transform_indices = @transform_1, window_bounds = array<i64: 4, 512>}, {pipeline_mode = #tpu.pipeline_mode<synchronous>, transform_indices = @transform_2, window_bounds = array<i64: 4, 1>}, {pipeline_mode = #tpu.pipeline_mode<synchronous>, transform_indices = @transform_3, window_bounds = array<i64: 4, 1>}, {transform_indices = @transform_4, window_bounds = array<i64: 2, 4, 256>}]} {
    %c0 = arith.constant 0 : index
    %c0_0 = arith.constant 0 : index
    %0 = vector.load %arg2[%c0, %c0_0] : memref<4x512xbf16, #tpu.memory_space<vmem>>, vector<4x512xbf16>
    %1 = arith.extf %0 : vector<4x512xbf16> to vector<4x512xf32>
    %c0_1 = arith.constant 0 : index
    %c0_2 = arith.constant 0 : index
    %2 = vector.load %arg3[%c0_1, %c0_2] : memref<4x1xf32, #tpu.memory_space<vmem>>, vector<4x1xf32>
    %3 = vector.broadcast %2 : vector<4x1xf32> to vector<4x512xf32>
    %4 = arith.mulf %1, %3 : vector<4x512xf32>
    %c0_3 = arith.constant 0 : index
    %c0_4 = arith.constant 0 : index
    %5 = vector.load %arg4[%c0_3, %c0_4] : memref<4x1xf32, #tpu.memory_space<vmem>>, vector<4x1xf32>
    %6 = vector.broadcast %5 : vector<4x1xf32> to vector<4x512xf32>
    %7 = arith.addf %4, %6 : vector<4x512xf32>
    %c0_5 = arith.constant 0 : index
    %c0_6 = arith.constant 0 : index
    %c0_7 = arith.constant 0 : index
    %8 = vector.load %arg1[%c0_5, %c0_6, %c0_7] : memref<2x4x256xf32, #tpu.memory_space<vmem>>, vector<1x4x256xf32>
    %9 = vector.shape_cast %8 : vector<1x4x256xf32> to vector<4x256xf32>
    %10 = vector.extract_strided_slice %7 {offsets = [0, 0], sizes = [4, 256], strides = [1, 1]} : vector<4x512xf32> to vector<4x256xf32>
    %11 = arith.addf %9, %10 : vector<4x256xf32>
    %cst = arith.constant 0.000000e+00 : f32
    %12 = vector.broadcast %cst : f32 to vector<4x256xf32>
    %13 = arith.maximumf %11, %12 : vector<4x256xf32>
    %c0_8 = arith.constant 0 : index
    %c0_9 = arith.constant 0 : index
    %c0_10 = arith.constant 0 : index
    %14 = vector.load %arg5[%c0_8, %c0_9, %c0_10] : memref<2x4x256xf32, #tpu.memory_space<vmem>>, vector<1x4x256xf32>
    %15 = vector.shape_cast %14 : vector<1x4x256xf32> to vector<4x256xf32>
    %16 = vector.shape_cast %13 : vector<4x256xf32> to vector<1x4x256xf32>
    tpu.vector_store %arg5[%c0_8, %c0_9, %c0_10], %16 {strides = array<i32>} : memref<2x4x256xf32, #tpu.memory_space<vmem>>, vector<1x4x256xf32>,
    %c1 = arith.constant 1 : index
    %c0_11 = arith.constant 0 : index
    %c0_12 = arith.constant 0 : index
    %17 = vector.load %arg1[%c1, %c0_11, %c0_12] : memref<2x4x256xf32, #tpu.memory_space<vmem>>, vector<1x4x256xf32>
    %18 = vector.shape_cast %17 : vector<1x4x256xf32> to vector<4x256xf32>
    %19 = vector.extract_strided_slice %7 {offsets = [0, 256], sizes = [4, 256], strides = [1, 1]} : vector<4x512xf32> to vector<4x256xf32>
    %20 = arith.addf %18, %19 : vector<4x256xf32>
    %cst_13 = arith.constant 0.000000e+00 : f32
    %21 = vector.broadcast %cst_13 : f32 to vector<4x256xf32>
    %22 = arith.maximumf %20, %21 : vector<4x256xf32>
    %c1_14 = arith.constant 1 : index
    %c0_15 = arith.constant 0 : index
    %c0_16 = arith.constant 0 : index
    %23 = vector.load %arg5[%c1_14, %c0_15, %c0_16] : memref<2x4x256xf32, #tpu.memory_space<vmem>>, vector<1x4x256xf32>
    %24 = vector.shape_cast %23 : vector<1x4x256xf32> to vector<4x256xf32>
    %25 = vector.shape_cast %22 : vector<4x256xf32> to vector<1x4x256xf32>
    tpu.vector_store %arg5[%c1_14, %c0_15, %c0_16], %25 {strides = array<i32>} : memref<2x4x256xf32, #tpu.memory_space<vmem>>, vector<1x4x256xf32>,
    return
  }
  func.func @transform_0(%arg0: i32) -> (i32, i32, i32) {
    %c0_i32 = arith.constant 0 : i32
    %c0_i32_0 = arith.constant 0 : i32
    %c0_i32_1 = arith.constant 0 : i32
    return %arg0, %c0_i32, %c0_i32_0 : i32, i32, i32
  }
  func.func @transform_1(%arg0: i32) -> (i32, i32) {
    %c0_i32 = arith.constant 0 : i32
    %c0_i32_0 = arith.constant 0 : i32
    return %c0_i32, %arg0 : i32, i32
  }
  func.func @transform_2(%arg0: i32) -> (i32, i32) {
    %c0_i32 = arith.constant 0 : i32
    %c0_i32_0 = arith.constant 0 : i32
    %c0_i32_1 = arith.constant 0 : i32
    return %c0_i32, %c0_i32_0 : i32, i32
  }
  func.func @transform_3(%arg0: i32) -> (i32, i32) {
    %c0_i32 = arith.constant 0 : i32
    %c0_i32_0 = arith.constant 0 : i32
    %c0_i32_1 = arith.constant 0 : i32
    return %c0_i32, %c0_i32_0 : i32, i32
  }
  func.func @transform_4(%arg0: i32) -> (i32, i32, i32) {
    %c0_i32 = arith.constant 0 : i32
    %c0_i32_0 = arith.constant 0 : i32
    %c0_i32_1 = arith.constant 0 : i32
    return %arg0, %c0_i32, %c0_i32_0 : i32, i32, i32
  }
}

module attributes {stable_mosaic.version = 11 : i64} {
  func.func @conv2_kernel(%arg0: i32, %arg1: memref<4x512xbf16, #tpu.memory_space<vmem>>, %arg2: memref<4x36xbf16, #tpu.memory_space<vmem>>, %arg3: memref<4x1xf32, #tpu.memory_space<vmem>>, %arg4: memref<4x1xf32, #tpu.memory_space<vmem>>, %arg5: memref<4x1xf32, #tpu.memory_space<vmem>>, %arg6: memref<4x512xbf16, #tpu.memory_space<vmem>>, %arg7: memref<1x4x2xf32, #tpu.memory_space<vmem>>, %arg8: memref<4x724xbf16, #tpu.memory_space<vmem>>, %arg9: memref<36x686xbf16, #tpu.memory_space<vmem>>, %arg10: memref<4x512xf32, #tpu.memory_space<vmem>>) attributes {dimension_semantics = [#tpu.dimension_semantics<parallel>], iteration_bounds = array<i64: 2>, scalar_prefetch = 0 : i64, scratch_operands = 3 : i64, tpu.core_type = #tpu.core_type<tc>, window_params = [{transform_indices = @transform_0, window_bounds = array<i64: 4, 512>}, {pipeline_mode = #tpu.pipeline_mode<synchronous>, transform_indices = @transform_1, window_bounds = array<i64: 4, 36>}, {pipeline_mode = #tpu.pipeline_mode<synchronous>, transform_indices = @transform_2, window_bounds = array<i64: 4, 1>}, {pipeline_mode = #tpu.pipeline_mode<synchronous>, transform_indices = @transform_3, window_bounds = array<i64: 4, 1>}, {pipeline_mode = #tpu.pipeline_mode<synchronous>, transform_indices = @transform_4, window_bounds = array<i64: 4, 1>}, {transform_indices = @transform_5, window_bounds = array<i64: 4, 512>}, {transform_indices = @transform_6, window_bounds = array<i64: 1, 4, 2>}]} {
    %c0 = arith.constant 0 : index
    %c0_0 = arith.constant 0 : index
    %0 = vector.load %arg1[%c0, %c0_0] : memref<4x512xbf16, #tpu.memory_space<vmem>>, vector<4x512xbf16>
    %1 = arith.extf %0 : vector<4x512xbf16> to vector<4x512xf32>
    %c0_1 = arith.constant 0 : index
    %c0_2 = arith.constant 0 : index
    %2 = vector.load %arg4[%c0_1, %c0_2] : memref<4x1xf32, #tpu.memory_space<vmem>>, vector<4x1xf32>
    %3 = vector.broadcast %2 : vector<4x1xf32> to vector<4x512xf32>
    %4 = arith.mulf %1, %3 : vector<4x512xf32>
    %c0_3 = arith.constant 0 : index
    %c0_4 = arith.constant 0 : index
    %5 = vector.load %arg5[%c0_3, %c0_4] : memref<4x1xf32, #tpu.memory_space<vmem>>, vector<4x1xf32>
    %6 = vector.broadcast %5 : vector<4x1xf32> to vector<4x512xf32>
    %7 = arith.addf %4, %6 : vector<4x512xf32>
    %cst = arith.constant 0.000000e+00 : f32
    %8 = vector.broadcast %cst : f32 to vector<4x512xf32>
    %9 = arith.maximumf %7, %8 : vector<4x512xf32>
    %10 = arith.truncf %9 : vector<4x512xf32> to vector<4x512xbf16>
    %cst_5 = arith.constant 0.000000e+00 : bf16
    %11 = vector.broadcast %cst_5 : bf16 to vector<4x38xbf16>
    %c0_6 = arith.constant 0 : index
    %c0_7 = arith.constant 0 : index
    %12 = vector.load %arg8[%c0_6, %c0_7] : memref<4x724xbf16, #tpu.memory_space<vmem>>, vector<4x38xbf16>
    tpu.vector_store %arg8[%c0_6, %c0_7], %11 {strides = array<i32>} : memref<4x724xbf16, #tpu.memory_space<vmem>>, vector<4x38xbf16>,
    %cst_8 = arith.constant 0.000000e+00 : bf16
    %13 = vector.broadcast %cst_8 : bf16 to vector<4x2xbf16>
    %c0_9 = arith.constant 0 : index
    %c54 = arith.constant 54 : index
    %14 = vector.load %arg8[%c0_9, %c54] : memref<4x724xbf16, #tpu.memory_space<vmem>>, vector<4x2xbf16>
    tpu.vector_store %arg8[%c0_9, %c54], %13 {strides = array<i32>} : memref<4x724xbf16, #tpu.memory_space<vmem>>, vector<4x2xbf16>,
    %cst_10 = arith.constant 0.000000e+00 : bf16
    %15 = vector.broadcast %cst_10 : bf16 to vector<4x2xbf16>
    %c0_11 = arith.constant 0 : index
    %c72 = arith.constant 72 : index
    %16 = vector.load %arg8[%c0_11, %c72] : memref<4x724xbf16, #tpu.memory_space<vmem>>, vector<4x2xbf16>
    tpu.vector_store %arg8[%c0_11, %c72], %15 {strides = array<i32>} : memref<4x724xbf16, #tpu.memory_space<vmem>>, vector<4x2xbf16>,
    %cst_12 = arith.constant 0.000000e+00 : bf16
    %17 = vector.broadcast %cst_12 : bf16 to vector<4x2xbf16>
    %c0_13 = arith.constant 0 : index
    %c90 = arith.constant 90 : index
    %18 = vector.load %arg8[%c0_13, %c90] : memref<4x724xbf16, #tpu.memory_space<vmem>>, vector<4x2xbf16>
    tpu.vector_store %arg8[%c0_13, %c90], %17 {strides = array<i32>} : memref<4x724xbf16, #tpu.memory_space<vmem>>, vector<4x2xbf16>,
    %cst_14 = arith.constant 0.000000e+00 : bf16
    %19 = vector.broadcast %cst_14 : bf16 to vector<4x2xbf16>
    %c0_15 = arith.constant 0 : index
    %c108 = arith.constant 108 : index
    %20 = vector.load %arg8[%c0_15, %c108] : memref<4x724xbf16, #tpu.memory_space<vmem>>, vector<4x2xbf16>
    tpu.vector_store %arg8[%c0_15, %c108], %19 {strides = array<i32>} : memref<4x724xbf16, #tpu.memory_space<vmem>>, vector<4x2xbf16>,
    %cst_16 = arith.constant 0.000000e+00 : bf16
    %21 = vector.broadcast %cst_16 : bf16 to vector<4x2xbf16>
    %c0_17 = arith.constant 0 : index
    %c126 = arith.constant 126 : index
    %22 = vector.load %arg8[%c0_17, %c126] : memref<4x724xbf16, #tpu.memory_space<vmem>>, vector<4x2xbf16>
    tpu.vector_store %arg8[%c0_17, %c126], %21 {strides = array<i32>} : memref<4x724xbf16, #tpu.memory_space<vmem>>, vector<4x2xbf16>,
    %cst_18 = arith.constant 0.000000e+00 : bf16
    %23 = vector.broadcast %cst_18 : bf16 to vector<4x2xbf16>
    %c0_19 = arith.constant 0 : index
    %c144 = arith.constant 144 : index
    %24 = vector.load %arg8[%c0_19, %c144] : memref<4x724xbf16, #tpu.memory_space<vmem>>, vector<4x2xbf16>
    tpu.vector_store %arg8[%c0_19, %c144], %23 {strides = array<i32>} : memref<4x724xbf16, #tpu.memory_space<vmem>>, vector<4x2xbf16>,
    %cst_20 = arith.constant 0.000000e+00 : bf16
    %25 = vector.broadcast %cst_20 : bf16 to vector<4x2xbf16>
    %c0_21 = arith.constant 0 : index
    %c162 = arith.constant 162 : index
    %26 = vector.load %arg8[%c0_21, %c162] : memref<4x724xbf16, #tpu.memory_space<vmem>>, vector<4x2xbf16>
    tpu.vector_store %arg8[%c0_21, %c162], %25 {strides = array<i32>} : memref<4x724xbf16, #tpu.memory_space<vmem>>, vector<4x2xbf16>,
    %cst_22 = arith.constant 0.000000e+00 : bf16
    %27 = vector.broadcast %cst_22 : bf16 to vector<4x2xbf16>
    %c0_23 = arith.constant 0 : index
    %c180 = arith.constant 180 : index
    %28 = vector.load %arg8[%c0_23, %c180] : memref<4x724xbf16, #tpu.memory_space<vmem>>, vector<4x2xbf16>
    tpu.vector_store %arg8[%c0_23, %c180], %27 {strides = array<i32>} : memref<4x724xbf16, #tpu.memory_space<vmem>>, vector<4x2xbf16>,
    %cst_24 = arith.constant 0.000000e+00 : bf16
    %29 = vector.broadcast %cst_24 : bf16 to vector<4x2xbf16>
    %c0_25 = arith.constant 0 : index
    %c198 = arith.constant 198 : index
    %30 = vector.load %arg8[%c0_25, %c198] : memref<4x724xbf16, #tpu.memory_space<vmem>>, vector<4x2xbf16>
    tpu.vector_store %arg8[%c0_25, %c198], %29 {strides = array<i32>} : memref<4x724xbf16, #tpu.memory_space<vmem>>, vector<4x2xbf16>,
    %cst_26 = arith.constant 0.000000e+00 : bf16
    %31 = vector.broadcast %cst_26 : bf16 to vector<4x2xbf16>
    %c0_27 = arith.constant 0 : index
    %c216 = arith.constant 216 : index
    %32 = vector.load %arg8[%c0_27, %c216] : memref<4x724xbf16, #tpu.memory_space<vmem>>, vector<4x2xbf16>
    tpu.vector_store %arg8[%c0_27, %c216], %31 {strides = array<i32>} : memref<4x724xbf16, #tpu.memory_space<vmem>>, vector<4x2xbf16>,
    %cst_28 = arith.constant 0.000000e+00 : bf16
    %33 = vector.broadcast %cst_28 : bf16 to vector<4x2xbf16>
    %c0_29 = arith.constant 0 : index
    %c234 = arith.constant 234 : index
    %34 = vector.load %arg8[%c0_29, %c234] : memref<4x724xbf16, #tpu.memory_space<vmem>>, vector<4x2xbf16>
    tpu.vector_store %arg8[%c0_29, %c234], %33 {strides = array<i32>} : memref<4x724xbf16, #tpu.memory_space<vmem>>, vector<4x2xbf16>,
    %cst_30 = arith.constant 0.000000e+00 : bf16
    %35 = vector.broadcast %cst_30 : bf16 to vector<4x2xbf16>
    %c0_31 = arith.constant 0 : index
    %c252 = arith.constant 252 : index
    %36 = vector.load %arg8[%c0_31, %c252] : memref<4x724xbf16, #tpu.memory_space<vmem>>, vector<4x2xbf16>
    tpu.vector_store %arg8[%c0_31, %c252], %35 {strides = array<i32>} : memref<4x724xbf16, #tpu.memory_space<vmem>>, vector<4x2xbf16>,
    %cst_32 = arith.constant 0.000000e+00 : bf16
    %37 = vector.broadcast %cst_32 : bf16 to vector<4x2xbf16>
    %c0_33 = arith.constant 0 : index
    %c270 = arith.constant 270 : index
    %38 = vector.load %arg8[%c0_33, %c270] : memref<4x724xbf16, #tpu.memory_space<vmem>>, vector<4x2xbf16>
    tpu.vector_store %arg8[%c0_33, %c270], %37 {strides = array<i32>} : memref<4x724xbf16, #tpu.memory_space<vmem>>, vector<4x2xbf16>,
    %cst_34 = arith.constant 0.000000e+00 : bf16
    %39 = vector.broadcast %cst_34 : bf16 to vector<4x2xbf16>
    %c0_35 = arith.constant 0 : index
    %c288 = arith.constant 288 : index
    %40 = vector.load %arg8[%c0_35, %c288] : memref<4x724xbf16, #tpu.memory_space<vmem>>, vector<4x2xbf16>
    tpu.vector_store %arg8[%c0_35, %c288], %39 {strides = array<i32>} : memref<4x724xbf16, #tpu.memory_space<vmem>>, vector<4x2xbf16>,
    %cst_36 = arith.constant 0.000000e+00 : bf16
    %41 = vector.broadcast %cst_36 : bf16 to vector<4x2xbf16>
    %c0_37 = arith.constant 0 : index
    %c306 = arith.constant 306 : index
    %42 = vector.load %arg8[%c0_37, %c306] : memref<4x724xbf16, #tpu.memory_space<vmem>>, vector<4x2xbf16>
    tpu.vector_store %arg8[%c0_37, %c306], %41 {strides = array<i32>} : memref<4x724xbf16, #tpu.memory_space<vmem>>, vector<4x2xbf16>,
    %cst_38 = arith.constant 0.000000e+00 : bf16
    %43 = vector.broadcast %cst_38 : bf16 to vector<4x76xbf16>
    %c0_39 = arith.constant 0 : index
    %c324 = arith.constant 324 : index
    %44 = vector.load %arg8[%c0_39, %c324] : memref<4x724xbf16, #tpu.memory_space<vmem>>, vector<4x76xbf16>
    tpu.vector_store %arg8[%c0_39, %c324], %43 {strides = array<i32>} : memref<4x724xbf16, #tpu.memory_space<vmem>>, vector<4x76xbf16>,
    %cst_40 = arith.constant 0.000000e+00 : bf16
    %45 = vector.broadcast %cst_40 : bf16 to vector<4x2xbf16>
    %c0_41 = arith.constant 0 : index
    %c416 = arith.constant 416 : index
    %46 = vector.load %arg8[%c0_41, %c416] : memref<4x724xbf16, #tpu.memory_space<vmem>>, vector<4x2xbf16>
    tpu.vector_store %arg8[%c0_41, %c416], %45 {strides = array<i32>} : memref<4x724xbf16, #tpu.memory_space<vmem>>, vector<4x2xbf16>,
    %cst_42 = arith.constant 0.000000e+00 : bf16
    %47 = vector.broadcast %cst_42 : bf16 to vector<4x2xbf16>
    %c0_43 = arith.constant 0 : index
    %c434 = arith.constant 434 : index
    %48 = vector.load %arg8[%c0_43, %c434] : memref<4x724xbf16, #tpu.memory_space<vmem>>, vector<4x2xbf16>
    tpu.vector_store %arg8[%c0_43, %c434], %47 {strides = array<i32>} : memref<4x724xbf16, #tpu.memory_space<vmem>>, vector<4x2xbf16>,
    %cst_44 = arith.constant 0.000000e+00 : bf16
    %49 = vector.broadcast %cst_44 : bf16 to vector<4x2xbf16>
    %c0_45 = arith.constant 0 : index
    %c452 = arith.constant 452 : index
    %50 = vector.load %arg8[%c0_45, %c452] : memref<4x724xbf16, #tpu.memory_space<vmem>>, vector<4x2xbf16>
    tpu.vector_store %arg8[%c0_45, %c452], %49 {strides = array<i32>} : memref<4x724xbf16, #tpu.memory_space<vmem>>, vector<4x2xbf16>,
    %cst_46 = arith.constant 0.000000e+00 : bf16
    %51 = vector.broadcast %cst_46 : bf16 to vector<4x2xbf16>
    %c0_47 = arith.constant 0 : index
    %c470 = arith.constant 470 : index
    %52 = vector.load %arg8[%c0_47, %c470] : memref<4x724xbf16, #tpu.memory_space<vmem>>, vector<4x2xbf16>
    tpu.vector_store %arg8[%c0_47, %c470], %51 {strides = array<i32>} : memref<4x724xbf16, #tpu.memory_space<vmem>>, vector<4x2xbf16>,
    %cst_48 = arith.constant 0.000000e+00 : bf16
    %53 = vector.broadcast %cst_48 : bf16 to vector<4x2xbf16>
    %c0_49 = arith.constant 0 : index
    %c488 = arith.constant 488 : index
    %54 = vector.load %arg8[%c0_49, %c488] : memref<4x724xbf16, #tpu.memory_space<vmem>>, vector<4x2xbf16>
    tpu.vector_store %arg8[%c0_49, %c488], %53 {strides = array<i32>} : memref<4x724xbf16, #tpu.memory_space<vmem>>, vector<4x2xbf16>,
    %cst_50 = arith.constant 0.000000e+00 : bf16
    %55 = vector.broadcast %cst_50 : bf16 to vector<4x2xbf16>
    %c0_51 = arith.constant 0 : index
    %c506 = arith.constant 506 : index
    %56 = vector.load %arg8[%c0_51, %c506] : memref<4x724xbf16, #tpu.memory_space<vmem>>, vector<4x2xbf16>
    tpu.vector_store %arg8[%c0_51, %c506], %55 {strides = array<i32>} : memref<4x724xbf16, #tpu.memory_space<vmem>>, vector<4x2xbf16>,
    %cst_52 = arith.constant 0.000000e+00 : bf16
    %57 = vector.broadcast %cst_52 : bf16 to vector<4x2xbf16>
    %c0_53 = arith.constant 0 : index
    %c524 = arith.constant 524 : index
    %58 = vector.load %arg8[%c0_53, %c524] : memref<4x724xbf16, #tpu.memory_space<vmem>>, vector<4x2xbf16>
    tpu.vector_store %arg8[%c0_53, %c524], %57 {strides = array<i32>} : memref<4x724xbf16, #tpu.memory_space<vmem>>, vector<4x2xbf16>,
    %cst_54 = arith.constant 0.000000e+00 : bf16
    %59 = vector.broadcast %cst_54 : bf16 to vector<4x2xbf16>
    %c0_55 = arith.constant 0 : index
    %c542 = arith.constant 542 : index
    %60 = vector.load %arg8[%c0_55, %c542] : memref<4x724xbf16, #tpu.memory_space<vmem>>, vector<4x2xbf16>
    tpu.vector_store %arg8[%c0_55, %c542], %59 {strides = array<i32>} : memref<4x724xbf16, #tpu.memory_space<vmem>>, vector<4x2xbf16>,
    %cst_56 = arith.constant 0.000000e+00 : bf16
    %61 = vector.broadcast %cst_56 : bf16 to vector<4x2xbf16>
    %c0_57 = arith.constant 0 : index
    %c560 = arith.constant 560 : index
    %62 = vector.load %arg8[%c0_57, %c560] : memref<4x724xbf16, #tpu.memory_space<vmem>>, vector<4x2xbf16>
    tpu.vector_store %arg8[%c0_57, %c560], %61 {strides = array<i32>} : memref<4x724xbf16, #tpu.memory_space<vmem>>, vector<4x2xbf16>,
    %cst_58 = arith.constant 0.000000e+00 : bf16
    %63 = vector.broadcast %cst_58 : bf16 to vector<4x2xbf16>
    %c0_59 = arith.constant 0 : index
    %c578 = arith.constant 578 : index
    %64 = vector.load %arg8[%c0_59, %c578] : memref<4x724xbf16, #tpu.memory_space<vmem>>, vector<4x2xbf16>
    tpu.vector_store %arg8[%c0_59, %c578], %63 {strides = array<i32>} : memref<4x724xbf16, #tpu.memory_space<vmem>>, vector<4x2xbf16>,
    %cst_60 = arith.constant 0.000000e+00 : bf16
    %65 = vector.broadcast %cst_60 : bf16 to vector<4x2xbf16>
    %c0_61 = arith.constant 0 : index
    %c596 = arith.constant 596 : index
    %66 = vector.load %arg8[%c0_61, %c596] : memref<4x724xbf16, #tpu.memory_space<vmem>>, vector<4x2xbf16>
    tpu.vector_store %arg8[%c0_61, %c596], %65 {strides = array<i32>} : memref<4x724xbf16, #tpu.memory_space<vmem>>, vector<4x2xbf16>,
    %cst_62 = arith.constant 0.000000e+00 : bf16
    %67 = vector.broadcast %cst_62 : bf16 to vector<4x2xbf16>
    %c0_63 = arith.constant 0 : index
    %c614 = arith.constant 614 : index
    %68 = vector.load %arg8[%c0_63, %c614] : memref<4x724xbf16, #tpu.memory_space<vmem>>, vector<4x2xbf16>
    tpu.vector_store %arg8[%c0_63, %c614], %67 {strides = array<i32>} : memref<4x724xbf16, #tpu.memory_space<vmem>>, vector<4x2xbf16>,
    %cst_64 = arith.constant 0.000000e+00 : bf16
    %69 = vector.broadcast %cst_64 : bf16 to vector<4x2xbf16>
    %c0_65 = arith.constant 0 : index
    %c632 = arith.constant 632 : index
    %70 = vector.load %arg8[%c0_65, %c632] : memref<4x724xbf16, #tpu.memory_space<vmem>>, vector<4x2xbf16>
    tpu.vector_store %arg8[%c0_65, %c632], %69 {strides = array<i32>} : memref<4x724xbf16, #tpu.memory_space<vmem>>, vector<4x2xbf16>,
    %cst_66 = arith.constant 0.000000e+00 : bf16
    %71 = vector.broadcast %cst_66 : bf16 to vector<4x2xbf16>
    %c0_67 = arith.constant 0 : index
    %c650 = arith.constant 650 : index
    %72 = vector.load %arg8[%c0_67, %c650] : memref<4x724xbf16, #tpu.memory_space<vmem>>, vector<4x2xbf16>
    tpu.vector_store %arg8[%c0_67, %c650], %71 {strides = array<i32>} : memref<4x724xbf16, #tpu.memory_space<vmem>>, vector<4x2xbf16>,
    %cst_68 = arith.constant 0.000000e+00 : bf16
    %73 = vector.broadcast %cst_68 : bf16 to vector<4x2xbf16>
    %c0_69 = arith.constant 0 : index
    %c668 = arith.constant 668 : index
    %74 = vector.load %arg8[%c0_69, %c668] : memref<4x724xbf16, #tpu.memory_space<vmem>>, vector<4x2xbf16>
    tpu.vector_store %arg8[%c0_69, %c668], %73 {strides = array<i32>} : memref<4x724xbf16, #tpu.memory_space<vmem>>, vector<4x2xbf16>,
    %cst_70 = arith.constant 0.000000e+00 : bf16
    %75 = vector.broadcast %cst_70 : bf16 to vector<4x38xbf16>
    %c0_71 = arith.constant 0 : index
    %c686 = arith.constant 686 : index
    %76 = vector.load %arg8[%c0_71, %c686] : memref<4x724xbf16, #tpu.memory_space<vmem>>, vector<4x38xbf16>
    tpu.vector_store %arg8[%c0_71, %c686], %75 {strides = array<i32>} : memref<4x724xbf16, #tpu.memory_space<vmem>>, vector<4x38xbf16>,
    %77 = vector.extract_strided_slice %10 {offsets = [0, 0], sizes = [4, 256], strides = [1, 1]} : vector<4x512xbf16> to vector<4x256xbf16>
    %78 = vector.extract_strided_slice %77 {offsets = [0, 0], sizes = [4, 16], strides = [1, 1]} : vector<4x256xbf16> to vector<4x16xbf16>
    %c0_72 = arith.constant 0 : index
    %c38 = arith.constant 38 : index
    %79 = vector.load %arg8[%c0_72, %c38] : memref<4x724xbf16, #tpu.memory_space<vmem>>, vector<4x16xbf16>
    tpu.vector_store %arg8[%c0_72, %c38], %78 {strides = array<i32>} : memref<4x724xbf16, #tpu.memory_space<vmem>>, vector<4x16xbf16>,
    %80 = vector.extract_strided_slice %77 {offsets = [0, 16], sizes = [4, 16], strides = [1, 1]} : vector<4x256xbf16> to vector<4x16xbf16>
    %c0_73 = arith.constant 0 : index
    %c56 = arith.constant 56 : index
    %81 = vector.load %arg8[%c0_73, %c56] : memref<4x724xbf16, #tpu.memory_space<vmem>>, vector<4x16xbf16>
    tpu.vector_store %arg8[%c0_73, %c56], %80 {strides = array<i32>} : memref<4x724xbf16, #tpu.memory_space<vmem>>, vector<4x16xbf16>,
    %82 = vector.extract_strided_slice %77 {offsets = [0, 32], sizes = [4, 16], strides = [1, 1]} : vector<4x256xbf16> to vector<4x16xbf16>
    %c0_74 = arith.constant 0 : index
    %c74 = arith.constant 74 : index
    %83 = vector.load %arg8[%c0_74, %c74] : memref<4x724xbf16, #tpu.memory_space<vmem>>, vector<4x16xbf16>
    tpu.vector_store %arg8[%c0_74, %c74], %82 {strides = array<i32>} : memref<4x724xbf16, #tpu.memory_space<vmem>>, vector<4x16xbf16>,
    %84 = vector.extract_strided_slice %77 {offsets = [0, 48], sizes = [4, 16], strides = [1, 1]} : vector<4x256xbf16> to vector<4x16xbf16>
    %c0_75 = arith.constant 0 : index
    %c92 = arith.constant 92 : index
    %85 = vector.load %arg8[%c0_75, %c92] : memref<4x724xbf16, #tpu.memory_space<vmem>>, vector<4x16xbf16>
    tpu.vector_store %arg8[%c0_75, %c92], %84 {strides = array<i32>} : memref<4x724xbf16, #tpu.memory_space<vmem>>, vector<4x16xbf16>,
    %86 = vector.extract_strided_slice %77 {offsets = [0, 64], sizes = [4, 16], strides = [1, 1]} : vector<4x256xbf16> to vector<4x16xbf16>
    %c0_76 = arith.constant 0 : index
    %c110 = arith.constant 110 : index
    %87 = vector.load %arg8[%c0_76, %c110] : memref<4x724xbf16, #tpu.memory_space<vmem>>, vector<4x16xbf16>
    tpu.vector_store %arg8[%c0_76, %c110], %86 {strides = array<i32>} : memref<4x724xbf16, #tpu.memory_space<vmem>>, vector<4x16xbf16>,
    %88 = vector.extract_strided_slice %77 {offsets = [0, 80], sizes = [4, 16], strides = [1, 1]} : vector<4x256xbf16> to vector<4x16xbf16>
    %c0_77 = arith.constant 0 : index
    %c128 = arith.constant 128 : index
    %89 = vector.load %arg8[%c0_77, %c128] : memref<4x724xbf16, #tpu.memory_space<vmem>>, vector<4x16xbf16>
    tpu.vector_store %arg8[%c0_77, %c128], %88 {strides = array<i32>} : memref<4x724xbf16, #tpu.memory_space<vmem>>, vector<4x16xbf16>,
    %90 = vector.extract_strided_slice %77 {offsets = [0, 96], sizes = [4, 16], strides = [1, 1]} : vector<4x256xbf16> to vector<4x16xbf16>
    %c0_78 = arith.constant 0 : index
    %c146 = arith.constant 146 : index
    %91 = vector.load %arg8[%c0_78, %c146] : memref<4x724xbf16, #tpu.memory_space<vmem>>, vector<4x16xbf16>
    tpu.vector_store %arg8[%c0_78, %c146], %90 {strides = array<i32>} : memref<4x724xbf16, #tpu.memory_space<vmem>>, vector<4x16xbf16>,
    %92 = vector.extract_strided_slice %77 {offsets = [0, 112], sizes = [4, 16], strides = [1, 1]} : vector<4x256xbf16> to vector<4x16xbf16>
    %c0_79 = arith.constant 0 : index
    %c164 = arith.constant 164 : index
    %93 = vector.load %arg8[%c0_79, %c164] : memref<4x724xbf16, #tpu.memory_space<vmem>>, vector<4x16xbf16>
    tpu.vector_store %arg8[%c0_79, %c164], %92 {strides = array<i32>} : memref<4x724xbf16, #tpu.memory_space<vmem>>, vector<4x16xbf16>,
    %94 = vector.extract_strided_slice %77 {offsets = [0, 128], sizes = [4, 16], strides = [1, 1]} : vector<4x256xbf16> to vector<4x16xbf16>
    %c0_80 = arith.constant 0 : index
    %c182 = arith.constant 182 : index
    %95 = vector.load %arg8[%c0_80, %c182] : memref<4x724xbf16, #tpu.memory_space<vmem>>, vector<4x16xbf16>
    tpu.vector_store %arg8[%c0_80, %c182], %94 {strides = array<i32>} : memref<4x724xbf16, #tpu.memory_space<vmem>>, vector<4x16xbf16>,
    %96 = vector.extract_strided_slice %77 {offsets = [0, 144], sizes = [4, 16], strides = [1, 1]} : vector<4x256xbf16> to vector<4x16xbf16>
    %c0_81 = arith.constant 0 : index
    %c200 = arith.constant 200 : index
    %97 = vector.load %arg8[%c0_81, %c200] : memref<4x724xbf16, #tpu.memory_space<vmem>>, vector<4x16xbf16>
    tpu.vector_store %arg8[%c0_81, %c200], %96 {strides = array<i32>} : memref<4x724xbf16, #tpu.memory_space<vmem>>, vector<4x16xbf16>,
    %98 = vector.extract_strided_slice %77 {offsets = [0, 160], sizes = [4, 16], strides = [1, 1]} : vector<4x256xbf16> to vector<4x16xbf16>
    %c0_82 = arith.constant 0 : index
    %c218 = arith.constant 218 : index
    %99 = vector.load %arg8[%c0_82, %c218] : memref<4x724xbf16, #tpu.memory_space<vmem>>, vector<4x16xbf16>
    tpu.vector_store %arg8[%c0_82, %c218], %98 {strides = array<i32>} : memref<4x724xbf16, #tpu.memory_space<vmem>>, vector<4x16xbf16>,
    %100 = vector.extract_strided_slice %77 {offsets = [0, 176], sizes = [4, 16], strides = [1, 1]} : vector<4x256xbf16> to vector<4x16xbf16>
    %c0_83 = arith.constant 0 : index
    %c236 = arith.constant 236 : index
    %101 = vector.load %arg8[%c0_83, %c236] : memref<4x724xbf16, #tpu.memory_space<vmem>>, vector<4x16xbf16>
    tpu.vector_store %arg8[%c0_83, %c236], %100 {strides = array<i32>} : memref<4x724xbf16, #tpu.memory_space<vmem>>, vector<4x16xbf16>,
    %102 = vector.extract_strided_slice %77 {offsets = [0, 192], sizes = [4, 16], strides = [1, 1]} : vector<4x256xbf16> to vector<4x16xbf16>
    %c0_84 = arith.constant 0 : index
    %c254 = arith.constant 254 : index
    %103 = vector.load %arg8[%c0_84, %c254] : memref<4x724xbf16, #tpu.memory_space<vmem>>, vector<4x16xbf16>
    tpu.vector_store %arg8[%c0_84, %c254], %102 {strides = array<i32>} : memref<4x724xbf16, #tpu.memory_space<vmem>>, vector<4x16xbf16>,
    %104 = vector.extract_strided_slice %77 {offsets = [0, 208], sizes = [4, 16], strides = [1, 1]} : vector<4x256xbf16> to vector<4x16xbf16>
    %c0_85 = arith.constant 0 : index
    %c272 = arith.constant 272 : index
    %105 = vector.load %arg8[%c0_85, %c272] : memref<4x724xbf16, #tpu.memory_space<vmem>>, vector<4x16xbf16>
    tpu.vector_store %arg8[%c0_85, %c272], %104 {strides = array<i32>} : memref<4x724xbf16, #tpu.memory_space<vmem>>, vector<4x16xbf16>,
    %106 = vector.extract_strided_slice %77 {offsets = [0, 224], sizes = [4, 16], strides = [1, 1]} : vector<4x256xbf16> to vector<4x16xbf16>
    %c0_86 = arith.constant 0 : index
    %c290 = arith.constant 290 : index
    %107 = vector.load %arg8[%c0_86, %c290] : memref<4x724xbf16, #tpu.memory_space<vmem>>, vector<4x16xbf16>
    tpu.vector_store %arg8[%c0_86, %c290], %106 {strides = array<i32>} : memref<4x724xbf16, #tpu.memory_space<vmem>>, vector<4x16xbf16>,
    %108 = vector.extract_strided_slice %77 {offsets = [0, 240], sizes = [4, 16], strides = [1, 1]} : vector<4x256xbf16> to vector<4x16xbf16>
    %c0_87 = arith.constant 0 : index
    %c308 = arith.constant 308 : index
    %109 = vector.load %arg8[%c0_87, %c308] : memref<4x724xbf16, #tpu.memory_space<vmem>>, vector<4x16xbf16>
    tpu.vector_store %arg8[%c0_87, %c308], %108 {strides = array<i32>} : memref<4x724xbf16, #tpu.memory_space<vmem>>, vector<4x16xbf16>,
    %110 = vector.extract_strided_slice %10 {offsets = [0, 256], sizes = [4, 256], strides = [1, 1]} : vector<4x512xbf16> to vector<4x256xbf16>
    %111 = vector.extract_strided_slice %110 {offsets = [0, 0], sizes = [4, 16], strides = [1, 1]} : vector<4x256xbf16> to vector<4x16xbf16>
    %c0_88 = arith.constant 0 : index
    %c400 = arith.constant 400 : index
    %112 = vector.load %arg8[%c0_88, %c400] : memref<4x724xbf16, #tpu.memory_space<vmem>>, vector<4x16xbf16>
    tpu.vector_store %arg8[%c0_88, %c400], %111 {strides = array<i32>} : memref<4x724xbf16, #tpu.memory_space<vmem>>, vector<4x16xbf16>,
    %113 = vector.extract_strided_slice %110 {offsets = [0, 16], sizes = [4, 16], strides = [1, 1]} : vector<4x256xbf16> to vector<4x16xbf16>
    %c0_89 = arith.constant 0 : index
    %c418 = arith.constant 418 : index
    %114 = vector.load %arg8[%c0_89, %c418] : memref<4x724xbf16, #tpu.memory_space<vmem>>, vector<4x16xbf16>
    tpu.vector_store %arg8[%c0_89, %c418], %113 {strides = array<i32>} : memref<4x724xbf16, #tpu.memory_space<vmem>>, vector<4x16xbf16>,
    %115 = vector.extract_strided_slice %110 {offsets = [0, 32], sizes = [4, 16], strides = [1, 1]} : vector<4x256xbf16> to vector<4x16xbf16>
    %c0_90 = arith.constant 0 : index
    %c436 = arith.constant 436 : index
    %116 = vector.load %arg8[%c0_90, %c436] : memref<4x724xbf16, #tpu.memory_space<vmem>>, vector<4x16xbf16>
    tpu.vector_store %arg8[%c0_90, %c436], %115 {strides = array<i32>} : memref<4x724xbf16, #tpu.memory_space<vmem>>, vector<4x16xbf16>,
    %117 = vector.extract_strided_slice %110 {offsets = [0, 48], sizes = [4, 16], strides = [1, 1]} : vector<4x256xbf16> to vector<4x16xbf16>
    %c0_91 = arith.constant 0 : index
    %c454 = arith.constant 454 : index
    %118 = vector.load %arg8[%c0_91, %c454] : memref<4x724xbf16, #tpu.memory_space<vmem>>, vector<4x16xbf16>
    tpu.vector_store %arg8[%c0_91, %c454], %117 {strides = array<i32>} : memref<4x724xbf16, #tpu.memory_space<vmem>>, vector<4x16xbf16>,
    %119 = vector.extract_strided_slice %110 {offsets = [0, 64], sizes = [4, 16], strides = [1, 1]} : vector<4x256xbf16> to vector<4x16xbf16>
    %c0_92 = arith.constant 0 : index
    %c472 = arith.constant 472 : index
    %120 = vector.load %arg8[%c0_92, %c472] : memref<4x724xbf16, #tpu.memory_space<vmem>>, vector<4x16xbf16>
    tpu.vector_store %arg8[%c0_92, %c472], %119 {strides = array<i32>} : memref<4x724xbf16, #tpu.memory_space<vmem>>, vector<4x16xbf16>,
    %121 = vector.extract_strided_slice %110 {offsets = [0, 80], sizes = [4, 16], strides = [1, 1]} : vector<4x256xbf16> to vector<4x16xbf16>
    %c0_93 = arith.constant 0 : index
    %c490 = arith.constant 490 : index
    %122 = vector.load %arg8[%c0_93, %c490] : memref<4x724xbf16, #tpu.memory_space<vmem>>, vector<4x16xbf16>
    tpu.vector_store %arg8[%c0_93, %c490], %121 {strides = array<i32>} : memref<4x724xbf16, #tpu.memory_space<vmem>>, vector<4x16xbf16>,
    %123 = vector.extract_strided_slice %110 {offsets = [0, 96], sizes = [4, 16], strides = [1, 1]} : vector<4x256xbf16> to vector<4x16xbf16>
    %c0_94 = arith.constant 0 : index
    %c508 = arith.constant 508 : index
    %124 = vector.load %arg8[%c0_94, %c508] : memref<4x724xbf16, #tpu.memory_space<vmem>>, vector<4x16xbf16>
    tpu.vector_store %arg8[%c0_94, %c508], %123 {strides = array<i32>} : memref<4x724xbf16, #tpu.memory_space<vmem>>, vector<4x16xbf16>,
    %125 = vector.extract_strided_slice %110 {offsets = [0, 112], sizes = [4, 16], strides = [1, 1]} : vector<4x256xbf16> to vector<4x16xbf16>
    %c0_95 = arith.constant 0 : index
    %c526 = arith.constant 526 : index
    %126 = vector.load %arg8[%c0_95, %c526] : memref<4x724xbf16, #tpu.memory_space<vmem>>, vector<4x16xbf16>
    tpu.vector_store %arg8[%c0_95, %c526], %125 {strides = array<i32>} : memref<4x724xbf16, #tpu.memory_space<vmem>>, vector<4x16xbf16>,
    %127 = vector.extract_strided_slice %110 {offsets = [0, 128], sizes = [4, 16], strides = [1, 1]} : vector<4x256xbf16> to vector<4x16xbf16>
    %c0_96 = arith.constant 0 : index
    %c544 = arith.constant 544 : index
    %128 = vector.load %arg8[%c0_96, %c544] : memref<4x724xbf16, #tpu.memory_space<vmem>>, vector<4x16xbf16>
    tpu.vector_store %arg8[%c0_96, %c544], %127 {strides = array<i32>} : memref<4x724xbf16, #tpu.memory_space<vmem>>, vector<4x16xbf16>,
    %129 = vector.extract_strided_slice %110 {offsets = [0, 144], sizes = [4, 16], strides = [1, 1]} : vector<4x256xbf16> to vector<4x16xbf16>
    %c0_97 = arith.constant 0 : index
    %c562 = arith.constant 562 : index
    %130 = vector.load %arg8[%c0_97, %c562] : memref<4x724xbf16, #tpu.memory_space<vmem>>, vector<4x16xbf16>
    tpu.vector_store %arg8[%c0_97, %c562], %129 {strides = array<i32>} : memref<4x724xbf16, #tpu.memory_space<vmem>>, vector<4x16xbf16>,
    %131 = vector.extract_strided_slice %110 {offsets = [0, 160], sizes = [4, 16], strides = [1, 1]} : vector<4x256xbf16> to vector<4x16xbf16>
    %c0_98 = arith.constant 0 : index
    %c580 = arith.constant 580 : index
    %132 = vector.load %arg8[%c0_98, %c580] : memref<4x724xbf16, #tpu.memory_space<vmem>>, vector<4x16xbf16>
    tpu.vector_store %arg8[%c0_98, %c580], %131 {strides = array<i32>} : memref<4x724xbf16, #tpu.memory_space<vmem>>, vector<4x16xbf16>,
    %133 = vector.extract_strided_slice %110 {offsets = [0, 176], sizes = [4, 16], strides = [1, 1]} : vector<4x256xbf16> to vector<4x16xbf16>
    %c0_99 = arith.constant 0 : index
    %c598 = arith.constant 598 : index
    %134 = vector.load %arg8[%c0_99, %c598] : memref<4x724xbf16, #tpu.memory_space<vmem>>, vector<4x16xbf16>
    tpu.vector_store %arg8[%c0_99, %c598], %133 {strides = array<i32>} : memref<4x724xbf16, #tpu.memory_space<vmem>>, vector<4x16xbf16>,
    %135 = vector.extract_strided_slice %110 {offsets = [0, 192], sizes = [4, 16], strides = [1, 1]} : vector<4x256xbf16> to vector<4x16xbf16>
    %c0_100 = arith.constant 0 : index
    %c616 = arith.constant 616 : index
    %136 = vector.load %arg8[%c0_100, %c616] : memref<4x724xbf16, #tpu.memory_space<vmem>>, vector<4x16xbf16>
    tpu.vector_store %arg8[%c0_100, %c616], %135 {strides = array<i32>} : memref<4x724xbf16, #tpu.memory_space<vmem>>, vector<4x16xbf16>,
    %137 = vector.extract_strided_slice %110 {offsets = [0, 208], sizes = [4, 16], strides = [1, 1]} : vector<4x256xbf16> to vector<4x16xbf16>
    %c0_101 = arith.constant 0 : index
    %c634 = arith.constant 634 : index
    %138 = vector.load %arg8[%c0_101, %c634] : memref<4x724xbf16, #tpu.memory_space<vmem>>, vector<4x16xbf16>
    tpu.vector_store %arg8[%c0_101, %c634], %137 {strides = array<i32>} : memref<4x724xbf16, #tpu.memory_space<vmem>>, vector<4x16xbf16>,
    %139 = vector.extract_strided_slice %110 {offsets = [0, 224], sizes = [4, 16], strides = [1, 1]} : vector<4x256xbf16> to vector<4x16xbf16>
    %c0_102 = arith.constant 0 : index
    %c652 = arith.constant 652 : index
    %140 = vector.load %arg8[%c0_102, %c652] : memref<4x724xbf16, #tpu.memory_space<vmem>>, vector<4x16xbf16>
    tpu.vector_store %arg8[%c0_102, %c652], %139 {strides = array<i32>} : memref<4x724xbf16, #tpu.memory_space<vmem>>, vector<4x16xbf16>,
    %141 = vector.extract_strided_slice %110 {offsets = [0, 240], sizes = [4, 16], strides = [1, 1]} : vector<4x256xbf16> to vector<4x16xbf16>
    %c0_103 = arith.constant 0 : index
    %c670 = arith.constant 670 : index
    %142 = vector.load %arg8[%c0_103, %c670] : memref<4x724xbf16, #tpu.memory_space<vmem>>, vector<4x16xbf16>
    tpu.vector_store %arg8[%c0_103, %c670], %141 {strides = array<i32>} : memref<4x724xbf16, #tpu.memory_space<vmem>>, vector<4x16xbf16>,
    %c0_104 = arith.constant 0 : index
    %c0_105 = arith.constant 0 : index
    %143 = vector.load %arg8[%c0_104, %c0_105] : memref<4x724xbf16, #tpu.memory_space<vmem>>, vector<4x686xbf16>
    %c0_106 = arith.constant 0 : index
    %c0_107 = arith.constant 0 : index
    %144 = vector.load %arg9[%c0_106, %c0_107] : memref<36x686xbf16, #tpu.memory_space<vmem>>, vector<4x686xbf16>
    tpu.vector_store %arg9[%c0_106, %c0_107], %143 {strides = array<i32>} : memref<36x686xbf16, #tpu.memory_space<vmem>>, vector<4x686xbf16>,
    %c0_108 = arith.constant 0 : index
    %c1 = arith.constant 1 : index
    %145 = vector.load %arg8[%c0_108, %c1] : memref<4x724xbf16, #tpu.memory_space<vmem>>, vector<4x686xbf16>
    %c4 = arith.constant 4 : index
    %c0_109 = arith.constant 0 : index
    %146 = vector.load %arg9[%c4, %c0_109] : memref<36x686xbf16, #tpu.memory_space<vmem>>, vector<4x686xbf16>
    tpu.vector_store %arg9[%c4, %c0_109], %145 {strides = array<i32>} : memref<36x686xbf16, #tpu.memory_space<vmem>>, vector<4x686xbf16>,
    %c0_110 = arith.constant 0 : index
    %c2 = arith.constant 2 : index
    %147 = vector.load %arg8[%c0_110, %c2] : memref<4x724xbf16, #tpu.memory_space<vmem>>, vector<4x686xbf16>
    %c8 = arith.constant 8 : index
    %c0_111 = arith.constant 0 : index
    %148 = vector.load %arg9[%c8, %c0_111] : memref<36x686xbf16, #tpu.memory_space<vmem>>, vector<4x686xbf16>
    tpu.vector_store %arg9[%c8, %c0_111], %147 {strides = array<i32>} : memref<36x686xbf16, #tpu.memory_space<vmem>>, vector<4x686xbf16>,
    %c0_112 = arith.constant 0 : index
    %c18 = arith.constant 18 : index
    %149 = vector.load %arg8[%c0_112, %c18] : memref<4x724xbf16, #tpu.memory_space<vmem>>, vector<4x686xbf16>
    %c12 = arith.constant 12 : index
    %c0_113 = arith.constant 0 : index
    %150 = vector.load %arg9[%c12, %c0_113] : memref<36x686xbf16, #tpu.memory_space<vmem>>, vector<4x686xbf16>
    tpu.vector_store %arg9[%c12, %c0_113], %149 {strides = array<i32>} : memref<36x686xbf16, #tpu.memory_space<vmem>>, vector<4x686xbf16>,
    %c0_114 = arith.constant 0 : index
    %c19 = arith.constant 19 : index
    %151 = vector.load %arg8[%c0_114, %c19] : memref<4x724xbf16, #tpu.memory_space<vmem>>, vector<4x686xbf16>
    %c16 = arith.constant 16 : index
    %c0_115 = arith.constant 0 : index
    %152 = vector.load %arg9[%c16, %c0_115] : memref<36x686xbf16, #tpu.memory_space<vmem>>, vector<4x686xbf16>
    tpu.vector_store %arg9[%c16, %c0_115], %151 {strides = array<i32>} : memref<36x686xbf16, #tpu.memory_space<vmem>>, vector<4x686xbf16>,
    %c0_116 = arith.constant 0 : index
    %c20 = arith.constant 20 : index
    %153 = vector.load %arg8[%c0_116, %c20] : memref<4x724xbf16, #tpu.memory_space<vmem>>, vector<4x686xbf16>
    %c20_117 = arith.constant 20 : index
    %c0_118 = arith.constant 0 : index
    %154 = vector.load %arg9[%c20_117, %c0_118] : memref<36x686xbf16, #tpu.memory_space<vmem>>, vector<4x686xbf16>
    tpu.vector_store %arg9[%c20_117, %c0_118], %153 {strides = array<i32>} : memref<36x686xbf16, #tpu.memory_space<vmem>>, vector<4x686xbf16>,
    %c0_119 = arith.constant 0 : index
    %c36 = arith.constant 36 : index
    %155 = vector.load %arg8[%c0_119, %c36] : memref<4x724xbf16, #tpu.memory_space<vmem>>, vector<4x686xbf16>
    %c24 = arith.constant 24 : index
    %c0_120 = arith.constant 0 : index
    %156 = vector.load %arg9[%c24, %c0_120] : memref<36x686xbf16, #tpu.memory_space<vmem>>, vector<4x686xbf16>
    tpu.vector_store %arg9[%c24, %c0_120], %155 {strides = array<i32>} : memref<36x686xbf16, #tpu.memory_space<vmem>>, vector<4x686xbf16>,
    %c0_121 = arith.constant 0 : index
    %c37 = arith.constant 37 : index
    %157 = vector.load %arg8[%c0_121, %c37] : memref<4x724xbf16, #tpu.memory_space<vmem>>, vector<4x686xbf16>
    %c28 = arith.constant 28 : index
    %c0_122 = arith.constant 0 : index
    %158 = vector.load %arg9[%c28, %c0_122] : memref<36x686xbf16, #tpu.memory_space<vmem>>, vector<4x686xbf16>
    tpu.vector_store %arg9[%c28, %c0_122], %157 {strides = array<i32>} : memref<36x686xbf16, #tpu.memory_space<vmem>>, vector<4x686xbf16>,
    %c0_123 = arith.constant 0 : index
    %c38_124 = arith.constant 38 : index
    %159 = vector.load %arg8[%c0_123, %c38_124] : memref<4x724xbf16, #tpu.memory_space<vmem>>, vector<4x686xbf16>
    %c32 = arith.constant 32 : index
    %c0_125 = arith.constant 0 : index
    %160 = vector.load %arg9[%c32, %c0_125] : memref<36x686xbf16, #tpu.memory_space<vmem>>, vector<4x686xbf16>
    tpu.vector_store %arg9[%c32, %c0_125], %159 {strides = array<i32>} : memref<36x686xbf16, #tpu.memory_space<vmem>>, vector<4x686xbf16>,
    %c0_126 = arith.constant 0 : index
    %c0_127 = arith.constant 0 : index
    %161 = vector.load %arg2[%c0_126, %c0_127] : memref<4x36xbf16, #tpu.memory_space<vmem>>, vector<4x36xbf16>
    %c0_128 = arith.constant 0 : index
    %c0_129 = arith.constant 0 : index
    %162 = vector.load %arg9[%c0_128, %c0_129] : memref<36x686xbf16, #tpu.memory_space<vmem>>, vector<36x686xbf16>
    %cst_130 = arith.constant dense<0.000000e+00> : vector<4x686xf32>
    %163 = tpu.matmul %161, %162, %cst_130 {dimension_numbers = #tpu.dot_dimension_numbers<[1], [0], [0], [1], [0, 0, 1, 1], [], []>} : vector<4x36xbf16>, vector<36x686xbf16>, vector<4x686xf32> -> vector<4x686xf32>
    %c0_131 = arith.constant 0 : index
    %c0_132 = arith.constant 0 : index
    %164 = vector.load %arg3[%c0_131, %c0_132] : memref<4x1xf32, #tpu.memory_space<vmem>>, vector<4x1xf32>
    %165 = vector.broadcast %164 : vector<4x1xf32> to vector<4x686xf32>
    %166 = arith.addf %163, %165 : vector<4x686xf32>
    %167 = vector.extract_strided_slice %166 {offsets = [0, 19], sizes = [4, 16], strides = [1, 1]} : vector<4x686xf32> to vector<4x16xf32>
    %c0_133 = arith.constant 0 : index
    %c0_134 = arith.constant 0 : index
    %168 = vector.load %arg10[%c0_133, %c0_134] : memref<4x512xf32, #tpu.memory_space<vmem>>, vector<4x16xf32>
    tpu.vector_store %arg10[%c0_133, %c0_134], %167 {strides = array<i32>} : memref<4x512xf32, #tpu.memory_space<vmem>>, vector<4x16xf32>,
    %169 = vector.extract_strided_slice %166 {offsets = [0, 37], sizes = [4, 16], strides = [1, 1]} : vector<4x686xf32> to vector<4x16xf32>
    %c0_135 = arith.constant 0 : index
    %c16_136 = arith.constant 16 : index
    %170 = vector.load %arg10[%c0_135, %c16_136] : memref<4x512xf32, #tpu.memory_space<vmem>>, vector<4x16xf32>
    tpu.vector_store %arg10[%c0_135, %c16_136], %169 {strides = array<i32>} : memref<4x512xf32, #tpu.memory_space<vmem>>, vector<4x16xf32>,
    %171 = vector.extract_strided_slice %166 {offsets = [0, 55], sizes = [4, 16], strides = [1, 1]} : vector<4x686xf32> to vector<4x16xf32>
    %c0_137 = arith.constant 0 : index
    %c32_138 = arith.constant 32 : index
    %172 = vector.load %arg10[%c0_137, %c32_138] : memref<4x512xf32, #tpu.memory_space<vmem>>, vector<4x16xf32>
    tpu.vector_store %arg10[%c0_137, %c32_138], %171 {strides = array<i32>} : memref<4x512xf32, #tpu.memory_space<vmem>>, vector<4x16xf32>,
    %173 = vector.extract_strided_slice %166 {offsets = [0, 73], sizes = [4, 16], strides = [1, 1]} : vector<4x686xf32> to vector<4x16xf32>
    %c0_139 = arith.constant 0 : index
    %c48 = arith.constant 48 : index
    %174 = vector.load %arg10[%c0_139, %c48] : memref<4x512xf32, #tpu.memory_space<vmem>>, vector<4x16xf32>
    tpu.vector_store %arg10[%c0_139, %c48], %173 {strides = array<i32>} : memref<4x512xf32, #tpu.memory_space<vmem>>, vector<4x16xf32>,
    %175 = vector.extract_strided_slice %166 {offsets = [0, 91], sizes = [4, 16], strides = [1, 1]} : vector<4x686xf32> to vector<4x16xf32>
    %c0_140 = arith.constant 0 : index
    %c64 = arith.constant 64 : index
    %176 = vector.load %arg10[%c0_140, %c64] : memref<4x512xf32, #tpu.memory_space<vmem>>, vector<4x16xf32>
    tpu.vector_store %arg10[%c0_140, %c64], %175 {strides = array<i32>} : memref<4x512xf32, #tpu.memory_space<vmem>>, vector<4x16xf32>,
    %177 = vector.extract_strided_slice %166 {offsets = [0, 109], sizes = [4, 16], strides = [1, 1]} : vector<4x686xf32> to vector<4x16xf32>
    %c0_141 = arith.constant 0 : index
    %c80 = arith.constant 80 : index
    %178 = vector.load %arg10[%c0_141, %c80] : memref<4x512xf32, #tpu.memory_space<vmem>>, vector<4x16xf32>
    tpu.vector_store %arg10[%c0_141, %c80], %177 {strides = array<i32>} : memref<4x512xf32, #tpu.memory_space<vmem>>, vector<4x16xf32>,
    %179 = vector.extract_strided_slice %166 {offsets = [0, 127], sizes = [4, 16], strides = [1, 1]} : vector<4x686xf32> to vector<4x16xf32>
    %c0_142 = arith.constant 0 : index
    %c96 = arith.constant 96 : index
    %180 = vector.load %arg10[%c0_142, %c96] : memref<4x512xf32, #tpu.memory_space<vmem>>, vector<4x16xf32>
    tpu.vector_store %arg10[%c0_142, %c96], %179 {strides = array<i32>} : memref<4x512xf32, #tpu.memory_space<vmem>>, vector<4x16xf32>,
    %181 = vector.extract_strided_slice %166 {offsets = [0, 145], sizes = [4, 16], strides = [1, 1]} : vector<4x686xf32> to vector<4x16xf32>
    %c0_143 = arith.constant 0 : index
    %c112 = arith.constant 112 : index
    %182 = vector.load %arg10[%c0_143, %c112] : memref<4x512xf32, #tpu.memory_space<vmem>>, vector<4x16xf32>
    tpu.vector_store %arg10[%c0_143, %c112], %181 {strides = array<i32>} : memref<4x512xf32, #tpu.memory_space<vmem>>, vector<4x16xf32>,
    %183 = vector.extract_strided_slice %166 {offsets = [0, 163], sizes = [4, 16], strides = [1, 1]} : vector<4x686xf32> to vector<4x16xf32>
    %c0_144 = arith.constant 0 : index
    %c128_145 = arith.constant 128 : index
    %184 = vector.load %arg10[%c0_144, %c128_145] : memref<4x512xf32, #tpu.memory_space<vmem>>, vector<4x16xf32>
    tpu.vector_store %arg10[%c0_144, %c128_145], %183 {strides = array<i32>} : memref<4x512xf32, #tpu.memory_space<vmem>>, vector<4x16xf32>,
    %185 = vector.extract_strided_slice %166 {offsets = [0, 181], sizes = [4, 16], strides = [1, 1]} : vector<4x686xf32> to vector<4x16xf32>
    %c0_146 = arith.constant 0 : index
    %c144_147 = arith.constant 144 : index
    %186 = vector.load %arg10[%c0_146, %c144_147] : memref<4x512xf32, #tpu.memory_space<vmem>>, vector<4x16xf32>
    tpu.vector_store %arg10[%c0_146, %c144_147], %185 {strides = array<i32>} : memref<4x512xf32, #tpu.memory_space<vmem>>, vector<4x16xf32>,
    %187 = vector.extract_strided_slice %166 {offsets = [0, 199], sizes = [4, 16], strides = [1, 1]} : vector<4x686xf32> to vector<4x16xf32>
    %c0_148 = arith.constant 0 : index
    %c160 = arith.constant 160 : index
    %188 = vector.load %arg10[%c0_148, %c160] : memref<4x512xf32, #tpu.memory_space<vmem>>, vector<4x16xf32>
    tpu.vector_store %arg10[%c0_148, %c160], %187 {strides = array<i32>} : memref<4x512xf32, #tpu.memory_space<vmem>>, vector<4x16xf32>,
    %189 = vector.extract_strided_slice %166 {offsets = [0, 217], sizes = [4, 16], strides = [1, 1]} : vector<4x686xf32> to vector<4x16xf32>
    %c0_149 = arith.constant 0 : index
    %c176 = arith.constant 176 : index
    %190 = vector.load %arg10[%c0_149, %c176] : memref<4x512xf32, #tpu.memory_space<vmem>>, vector<4x16xf32>
    tpu.vector_store %arg10[%c0_149, %c176], %189 {strides = array<i32>} : memref<4x512xf32, #tpu.memory_space<vmem>>, vector<4x16xf32>,
    %191 = vector.extract_strided_slice %166 {offsets = [0, 235], sizes = [4, 16], strides = [1, 1]} : vector<4x686xf32> to vector<4x16xf32>
    %c0_150 = arith.constant 0 : index
    %c192 = arith.constant 192 : index
    %192 = vector.load %arg10[%c0_150, %c192] : memref<4x512xf32, #tpu.memory_space<vmem>>, vector<4x16xf32>
    tpu.vector_store %arg10[%c0_150, %c192], %191 {strides = array<i32>} : memref<4x512xf32, #tpu.memory_space<vmem>>, vector<4x16xf32>,
    %193 = vector.extract_strided_slice %166 {offsets = [0, 253], sizes = [4, 16], strides = [1, 1]} : vector<4x686xf32> to vector<4x16xf32>
    %c0_151 = arith.constant 0 : index
    %c208 = arith.constant 208 : index
    %194 = vector.load %arg10[%c0_151, %c208] : memref<4x512xf32, #tpu.memory_space<vmem>>, vector<4x16xf32>
    tpu.vector_store %arg10[%c0_151, %c208], %193 {strides = array<i32>} : memref<4x512xf32, #tpu.memory_space<vmem>>, vector<4x16xf32>,
    %195 = vector.extract_strided_slice %166 {offsets = [0, 271], sizes = [4, 16], strides = [1, 1]} : vector<4x686xf32> to vector<4x16xf32>
    %c0_152 = arith.constant 0 : index
    %c224 = arith.constant 224 : index
    %196 = vector.load %arg10[%c0_152, %c224] : memref<4x512xf32, #tpu.memory_space<vmem>>, vector<4x16xf32>
    tpu.vector_store %arg10[%c0_152, %c224], %195 {strides = array<i32>} : memref<4x512xf32, #tpu.memory_space<vmem>>, vector<4x16xf32>,
    %197 = vector.extract_strided_slice %166 {offsets = [0, 289], sizes = [4, 16], strides = [1, 1]} : vector<4x686xf32> to vector<4x16xf32>
    %c0_153 = arith.constant 0 : index
    %c240 = arith.constant 240 : index
    %198 = vector.load %arg10[%c0_153, %c240] : memref<4x512xf32, #tpu.memory_space<vmem>>, vector<4x16xf32>
    tpu.vector_store %arg10[%c0_153, %c240], %197 {strides = array<i32>} : memref<4x512xf32, #tpu.memory_space<vmem>>, vector<4x16xf32>,
    %199 = vector.extract_strided_slice %166 {offsets = [0, 381], sizes = [4, 16], strides = [1, 1]} : vector<4x686xf32> to vector<4x16xf32>
    %c0_154 = arith.constant 0 : index
    %c256 = arith.constant 256 : index
    %200 = vector.load %arg10[%c0_154, %c256] : memref<4x512xf32, #tpu.memory_space<vmem>>, vector<4x16xf32>
    tpu.vector_store %arg10[%c0_154, %c256], %199 {strides = array<i32>} : memref<4x512xf32, #tpu.memory_space<vmem>>, vector<4x16xf32>,
    %201 = vector.extract_strided_slice %166 {offsets = [0, 399], sizes = [4, 16], strides = [1, 1]} : vector<4x686xf32> to vector<4x16xf32>
    %c0_155 = arith.constant 0 : index
    %c272_156 = arith.constant 272 : index
    %202 = vector.load %arg10[%c0_155, %c272_156] : memref<4x512xf32, #tpu.memory_space<vmem>>, vector<4x16xf32>
    tpu.vector_store %arg10[%c0_155, %c272_156], %201 {strides = array<i32>} : memref<4x512xf32, #tpu.memory_space<vmem>>, vector<4x16xf32>,
    %203 = vector.extract_strided_slice %166 {offsets = [0, 417], sizes = [4, 16], strides = [1, 1]} : vector<4x686xf32> to vector<4x16xf32>
    %c0_157 = arith.constant 0 : index
    %c288_158 = arith.constant 288 : index
    %204 = vector.load %arg10[%c0_157, %c288_158] : memref<4x512xf32, #tpu.memory_space<vmem>>, vector<4x16xf32>
    tpu.vector_store %arg10[%c0_157, %c288_158], %203 {strides = array<i32>} : memref<4x512xf32, #tpu.memory_space<vmem>>, vector<4x16xf32>,
    %205 = vector.extract_strided_slice %166 {offsets = [0, 435], sizes = [4, 16], strides = [1, 1]} : vector<4x686xf32> to vector<4x16xf32>
    %c0_159 = arith.constant 0 : index
    %c304 = arith.constant 304 : index
    %206 = vector.load %arg10[%c0_159, %c304] : memref<4x512xf32, #tpu.memory_space<vmem>>, vector<4x16xf32>
    tpu.vector_store %arg10[%c0_159, %c304], %205 {strides = array<i32>} : memref<4x512xf32, #tpu.memory_space<vmem>>, vector<4x16xf32>,
    %207 = vector.extract_strided_slice %166 {offsets = [0, 453], sizes = [4, 16], strides = [1, 1]} : vector<4x686xf32> to vector<4x16xf32>
    %c0_160 = arith.constant 0 : index
    %c320 = arith.constant 320 : index
    %208 = vector.load %arg10[%c0_160, %c320] : memref<4x512xf32, #tpu.memory_space<vmem>>, vector<4x16xf32>
    tpu.vector_store %arg10[%c0_160, %c320], %207 {strides = array<i32>} : memref<4x512xf32, #tpu.memory_space<vmem>>, vector<4x16xf32>,
    %209 = vector.extract_strided_slice %166 {offsets = [0, 471], sizes = [4, 16], strides = [1, 1]} : vector<4x686xf32> to vector<4x16xf32>
    %c0_161 = arith.constant 0 : index
    %c336 = arith.constant 336 : index
    %210 = vector.load %arg10[%c0_161, %c336] : memref<4x512xf32, #tpu.memory_space<vmem>>, vector<4x16xf32>
    tpu.vector_store %arg10[%c0_161, %c336], %209 {strides = array<i32>} : memref<4x512xf32, #tpu.memory_space<vmem>>, vector<4x16xf32>,
    %211 = vector.extract_strided_slice %166 {offsets = [0, 489], sizes = [4, 16], strides = [1, 1]} : vector<4x686xf32> to vector<4x16xf32>
    %c0_162 = arith.constant 0 : index
    %c352 = arith.constant 352 : index
    %212 = vector.load %arg10[%c0_162, %c352] : memref<4x512xf32, #tpu.memory_space<vmem>>, vector<4x16xf32>
    tpu.vector_store %arg10[%c0_162, %c352], %211 {strides = array<i32>} : memref<4x512xf32, #tpu.memory_space<vmem>>, vector<4x16xf32>,
    %213 = vector.extract_strided_slice %166 {offsets = [0, 507], sizes = [4, 16], strides = [1, 1]} : vector<4x686xf32> to vector<4x16xf32>
    %c0_163 = arith.constant 0 : index
    %c368 = arith.constant 368 : index
    %214 = vector.load %arg10[%c0_163, %c368] : memref<4x512xf32, #tpu.memory_space<vmem>>, vector<4x16xf32>
    tpu.vector_store %arg10[%c0_163, %c368], %213 {strides = array<i32>} : memref<4x512xf32, #tpu.memory_space<vmem>>, vector<4x16xf32>,
    %215 = vector.extract_strided_slice %166 {offsets = [0, 525], sizes = [4, 16], strides = [1, 1]} : vector<4x686xf32> to vector<4x16xf32>
    %c0_164 = arith.constant 0 : index
    %c384 = arith.constant 384 : index
    %216 = vector.load %arg10[%c0_164, %c384] : memref<4x512xf32, #tpu.memory_space<vmem>>, vector<4x16xf32>
    tpu.vector_store %arg10[%c0_164, %c384], %215 {strides = array<i32>} : memref<4x512xf32, #tpu.memory_space<vmem>>, vector<4x16xf32>,
    %217 = vector.extract_strided_slice %166 {offsets = [0, 543], sizes = [4, 16], strides = [1, 1]} : vector<4x686xf32> to vector<4x16xf32>
    %c0_165 = arith.constant 0 : index
    %c400_166 = arith.constant 400 : index
    %218 = vector.load %arg10[%c0_165, %c400_166] : memref<4x512xf32, #tpu.memory_space<vmem>>, vector<4x16xf32>
    tpu.vector_store %arg10[%c0_165, %c400_166], %217 {strides = array<i32>} : memref<4x512xf32, #tpu.memory_space<vmem>>, vector<4x16xf32>,
    %219 = vector.extract_strided_slice %166 {offsets = [0, 561], sizes = [4, 16], strides = [1, 1]} : vector<4x686xf32> to vector<4x16xf32>
    %c0_167 = arith.constant 0 : index
    %c416_168 = arith.constant 416 : index
    %220 = vector.load %arg10[%c0_167, %c416_168] : memref<4x512xf32, #tpu.memory_space<vmem>>, vector<4x16xf32>
    tpu.vector_store %arg10[%c0_167, %c416_168], %219 {strides = array<i32>} : memref<4x512xf32, #tpu.memory_space<vmem>>, vector<4x16xf32>,
    %221 = vector.extract_strided_slice %166 {offsets = [0, 579], sizes = [4, 16], strides = [1, 1]} : vector<4x686xf32> to vector<4x16xf32>
    %c0_169 = arith.constant 0 : index
    %c432 = arith.constant 432 : index
    %222 = vector.load %arg10[%c0_169, %c432] : memref<4x512xf32, #tpu.memory_space<vmem>>, vector<4x16xf32>
    tpu.vector_store %arg10[%c0_169, %c432], %221 {strides = array<i32>} : memref<4x512xf32, #tpu.memory_space<vmem>>, vector<4x16xf32>,
    %223 = vector.extract_strided_slice %166 {offsets = [0, 597], sizes = [4, 16], strides = [1, 1]} : vector<4x686xf32> to vector<4x16xf32>
    %c0_170 = arith.constant 0 : index
    %c448 = arith.constant 448 : index
    %224 = vector.load %arg10[%c0_170, %c448] : memref<4x512xf32, #tpu.memory_space<vmem>>, vector<4x16xf32>
    tpu.vector_store %arg10[%c0_170, %c448], %223 {strides = array<i32>} : memref<4x512xf32, #tpu.memory_space<vmem>>, vector<4x16xf32>,
    %225 = vector.extract_strided_slice %166 {offsets = [0, 615], sizes = [4, 16], strides = [1, 1]} : vector<4x686xf32> to vector<4x16xf32>
    %c0_171 = arith.constant 0 : index
    %c464 = arith.constant 464 : index
    %226 = vector.load %arg10[%c0_171, %c464] : memref<4x512xf32, #tpu.memory_space<vmem>>, vector<4x16xf32>
    tpu.vector_store %arg10[%c0_171, %c464], %225 {strides = array<i32>} : memref<4x512xf32, #tpu.memory_space<vmem>>, vector<4x16xf32>,
    %227 = vector.extract_strided_slice %166 {offsets = [0, 633], sizes = [4, 16], strides = [1, 1]} : vector<4x686xf32> to vector<4x16xf32>
    %c0_172 = arith.constant 0 : index
    %c480 = arith.constant 480 : index
    %228 = vector.load %arg10[%c0_172, %c480] : memref<4x512xf32, #tpu.memory_space<vmem>>, vector<4x16xf32>
    tpu.vector_store %arg10[%c0_172, %c480], %227 {strides = array<i32>} : memref<4x512xf32, #tpu.memory_space<vmem>>, vector<4x16xf32>,
    %229 = vector.extract_strided_slice %166 {offsets = [0, 651], sizes = [4, 16], strides = [1, 1]} : vector<4x686xf32> to vector<4x16xf32>
    %c0_173 = arith.constant 0 : index
    %c496 = arith.constant 496 : index
    %230 = vector.load %arg10[%c0_173, %c496] : memref<4x512xf32, #tpu.memory_space<vmem>>, vector<4x16xf32>
    tpu.vector_store %arg10[%c0_173, %c496], %229 {strides = array<i32>} : memref<4x512xf32, #tpu.memory_space<vmem>>, vector<4x16xf32>,
    %c0_174 = arith.constant 0 : index
    %c0_175 = arith.constant 0 : index
    %231 = vector.load %arg10[%c0_174, %c0_175] : memref<4x512xf32, #tpu.memory_space<vmem>>, vector<4x512xf32>
    %cst_176 = arith.constant dense<0.000000e+00> : vector<4xf32>
    %232 = vector.multi_reduction <add>, %231, %cst_176 [1] : vector<4x512xf32> to vector<4xf32>
    %233 = vector.shape_cast %232 : vector<4xf32> to vector<4x1xf32>
    %c0_177 = arith.constant 0 : index
    %c0_178 = arith.constant 0 : index
    %c0_179 = arith.constant 0 : index
    %234 = vector.load %arg7[%c0_177, %c0_178, %c0_179] : memref<1x4x2xf32, #tpu.memory_space<vmem>>, vector<1x4x1xf32>
    %235 = vector.shape_cast %234 : vector<1x4x1xf32> to vector<4x1xf32>
    %236 = vector.shape_cast %233 : vector<4x1xf32> to vector<1x4x1xf32>
    tpu.vector_store %arg7[%c0_177, %c0_178, %c0_179], %236 {strides = array<i32>} : memref<1x4x2xf32, #tpu.memory_space<vmem>>, vector<1x4x1xf32>,
    %237 = arith.mulf %231, %231 : vector<4x512xf32>
    %cst_180 = arith.constant dense<0.000000e+00> : vector<4xf32>
    %238 = vector.multi_reduction <add>, %237, %cst_180 [1] : vector<4x512xf32> to vector<4xf32>
    %239 = vector.shape_cast %238 : vector<4xf32> to vector<4x1xf32>
    %c0_181 = arith.constant 0 : index
    %c0_182 = arith.constant 0 : index
    %c1_183 = arith.constant 1 : index
    %240 = vector.load %arg7[%c0_181, %c0_182, %c1_183] : memref<1x4x2xf32, #tpu.memory_space<vmem>>, vector<1x4x1xf32>
    %241 = vector.shape_cast %240 : vector<1x4x1xf32> to vector<4x1xf32>
    %242 = vector.shape_cast %239 : vector<4x1xf32> to vector<1x4x1xf32>
    tpu.vector_store %arg7[%c0_181, %c0_182, %c1_183], %242 {strides = array<i32>} : memref<1x4x2xf32, #tpu.memory_space<vmem>>, vector<1x4x1xf32>,
    %243 = arith.truncf %231 : vector<4x512xf32> to vector<4x512xbf16>
    %c0_184 = arith.constant 0 : index
    %c0_185 = arith.constant 0 : index
    %244 = vector.load %arg6[%c0_184, %c0_185] : memref<4x512xbf16, #tpu.memory_space<vmem>>, vector<4x512xbf16>
    tpu.vector_store %arg6[%c0_184, %c0_185], %243 {strides = array<i32>} : memref<4x512xbf16, #tpu.memory_space<vmem>>, vector<4x512xbf16>,
    return
  }
  func.func @transform_0(%arg0: i32) -> (i32, i32) {
    %c0_i32 = arith.constant 0 : i32
    %c0_i32_0 = arith.constant 0 : i32
    return %c0_i32, %arg0 : i32, i32
  }
  func.func @transform_1(%arg0: i32) -> (i32, i32) {
    %c0_i32 = arith.constant 0 : i32
    %c0_i32_0 = arith.constant 0 : i32
    %c0_i32_1 = arith.constant 0 : i32
    return %c0_i32, %c0_i32_0 : i32, i32
  }
  func.func @transform_2(%arg0: i32) -> (i32, i32) {
    %c0_i32 = arith.constant 0 : i32
    %c0_i32_0 = arith.constant 0 : i32
    %c0_i32_1 = arith.constant 0 : i32
    return %c0_i32, %c0_i32_0 : i32, i32
  }
  func.func @transform_3(%arg0: i32) -> (i32, i32) {
    %c0_i32 = arith.constant 0 : i32
    %c0_i32_0 = arith.constant 0 : i32
    %c0_i32_1 = arith.constant 0 : i32
    return %c0_i32, %c0_i32_0 : i32, i32
  }
  func.func @transform_4(%arg0: i32) -> (i32, i32) {
    %c0_i32 = arith.constant 0 : i32
    %c0_i32_0 = arith.constant 0 : i32
    %c0_i32_1 = arith.constant 0 : i32
    return %c0_i32, %c0_i32_0 : i32, i32
  }
  func.func @transform_5(%arg0: i32) -> (i32, i32) {
    %c0_i32 = arith.constant 0 : i32
    %c0_i32_0 = arith.constant 0 : i32
    return %c0_i32, %arg0 : i32, i32
  }
  func.func @transform_6(%arg0: i32) -> (i32, i32, i32) {
    %c0_i32 = arith.constant 0 : i32
    %c0_i32_0 = arith.constant 0 : i32
    %c0_i32_1 = arith.constant 0 : i32
    return %arg0, %c0_i32, %c0_i32_0 : i32, i32, i32
  }
}

</mosaic_0001>

<llo_original>
// kernel: residual_block_pallas.5
$region0: #{residual_block_pallas.5}
  #allocation0 [shape = 'u32[]', space=smem, size = 0x4, offset = 0x4, fixed_abs, tag = 'smem constant byte address 0x4 - core index']
  #allocation1 [shape = 'u32[144,128]{1,0:T(1,128)}', space=vmem, size = 0x12000, scoped, tag = 'internal scratch']
  %s0 = inlined_call_operand.vmem [shape: f32[4,4,256], index: 0, kind: input, shape index: {}]
  %s1 = inlined_call_operand.vmem [shape: bf16[4,1024], index: 1, kind: input, shape index: {}]
  %s2 = inlined_call_operand.vmem [shape: f32[4,1], index: 2, kind: input, shape index: {}]
  %s3 = inlined_call_operand.vmem [shape: f32[4,1], index: 3, kind: input, shape index: {}]
  %s4 = inlined_call_operand.vmem [shape: f32[4,4,256], index: 4, kind: output, shape index: {}]
  %s5 = sld [smem:[#allocation0]]
  $region49: #{residual_block_pallas.5} parent=0
    _
  %s7 = ssub.s32 1, %s5
  %s8 = scalar_select 0, %s7, %s5
  loop: start=0, step=1, limit=4
  $region2: #{residual_block_pallas.5} parent=0 // loop_pre_header
    _
  $region3: #{residual_block_pallas.5} parent=0 // loop_header
    %s10 = sphi 0, %s14
    %p11 = scmp.ge.s32.totalorder %s10, 4
    %s20 = sphi 0, %s22
    %s23 = sphi 0, %s20
    %s24 = sphi 0, %s23
    %s40 = sphi 0, %s24
    %s46 = sphi 0, %s48
    %s49 = sphi 0, %s46
    %s50 = sphi 0, %s49
    %s66 = sphi 0, %s50
    %s70 = sphi 0, %s70
    %s72 = sphi 0, %s70
    %s73 = sphi 0, %s72
    %s87 = sphi 0, %s73
    %s91 = sphi 0, %s91
    %s93 = sphi 0, %s91
    %s94 = sphi 0, %s93
    %s108 = sphi 0, %s94
    %s114 = sphi 0, %s116
    %s117 = sphi 0, %s114
    %s118 = sphi 0, %s117
    %s134 = sphi 0, %s118
  $region4: #{residual_block_pallas.5} parent=0 // loop_header_branch
    %13 = sbr.rel (%p11) target = $region8
  $region5: #{residual_block_pallas.5} parent=0 // loop_body
    %s15 = ssub.s32 %s10, 1
    %s16 = ssub.s32 %s10, 2
    %s17 = sadd.s32 %s10, 1
    %s18 = ssub.s32 %s10, %s17
    %p19 = scmp.eq.s32.totalorder %s18, 0
    %s21 = sadd.s32 %s20, 1
    %s22 = scalar_select %p19, %s20, %s21
    %p25 = pneg %p19
    %p26 = scmp.eq.s32.totalorder %s10, 1
    %p27 = por %p25, %p26
    %p28 = scmp.ne.s32.totalorder %s20, %s23
    %p29 = scmp.eq.s32.totalorder %s10, 0
    %p30 = por %p28, %p29
    %p31 = scmp.ne.s32.totalorder %s20, %s23
    %p32 = scmp.eq.s32.totalorder %s15, 1
    %p33 = por %p31, %p32
    %p34 = scmp.ne.s32.totalorder %s23, %s24
    %p35 = scmp.eq.s32.totalorder %s15, 0
    %p36 = por %p34, %p35
    %p37 = scmp.ne.s32.totalorder %s23, %s24
    %p38 = scmp.eq.s32.totalorder %s16, 1
    %p39 = por %p37, %p38
    %p41 = scmp.ne.s32.totalorder %s24, %s40
    %p42 = scmp.eq.s32.totalorder %s16, 0
    %p43 = por %p41, %p42
    %s44 = ssub.s32 %s10, %s17
    %p45 = scmp.eq.s32.totalorder %s44, 0
    %s47 = sadd.s32 %s46, 1
    %s48 = scalar_select %p45, %s46, %s47
    %p51 = pneg %p45
    %p52 = scmp.eq.s32.totalorder %s10, 1
    %p53 = por %p51, %p52
    %p54 = scmp.ne.s32.totalorder %s46, %s49
    %p55 = scmp.eq.s32.totalorder %s10, 0
    %p56 = por %p54, %p55
    %p57 = scmp.ne.s32.totalorder %s46, %s49
    %p58 = scmp.eq.s32.totalorder %s15, 1
    %p59 = por %p57, %p58
    %p60 = scmp.ne.s32.totalorder %s49, %s50
    %p61 = scmp.eq.s32.totalorder %s15, 0
    %p62 = por %p60, %p61
    %p63 = scmp.ne.s32.totalorder %s49, %s50
    %p64 = scmp.eq.s32.totalorder %s16, 1
    %p65 = por %p63, %p64
    %p67 = scmp.ne.s32.totalorder %s50, %s66
    %p68 = scmp.eq.s32.totalorder %s16, 0
    %p69 = por %p67, %p68
    %s71 = sadd.s32 %s70, 1
    %p74 = scmp.eq.s32.totalorder %s10, 1
    %p75 = scmp.ne.s32.totalorder %s70, %s72
    %p76 = scmp.eq.s32.totalorder %s10, 0
    %p77 = por %p75, %p76
    %p78 = scmp.ne.s32.totalorder %s70, %s72
    %p79 = scmp.eq.s32.totalorder %s15, 1
    %p80 = por %p78, %p79
    %p81 = scmp.ne.s32.totalorder %s72, %s73
    %p82 = scmp.eq.s32.totalorder %s15, 0
    %p83 = por %p81, %p82
    %p84 = scmp.ne.s32.totalorder %s72, %s73
    %p85 = scmp.eq.s32.totalorder %s16, 1
    %p86 = por %p84, %p85
    %p88 = scmp.ne.s32.totalorder %s73, %s87
    %p89 = scmp.eq.s32.totalorder %s16, 0
    %p90 = por %p88, %p89
    %s92 = sadd.s32 %s91, 1
    %p95 = scmp.eq.s32.totalorder %s10, 1
    %p96 = scmp.ne.s32.totalorder %s91, %s93
    %p97 = scmp.eq.s32.totalorder %s10, 0
    %p98 = por %p96, %p97
    %p99 = scmp.ne.s32.totalorder %s91, %s93
    %p100 = scmp.eq.s32.totalorder %s15, 1
    %p101 = por %p99, %p100
    %p102 = scmp.ne.s32.totalorder %s93, %s94
    %p103 = scmp.eq.s32.totalorder %s15, 0
    %p104 = por %p102, %p103
    %p105 = scmp.ne.s32.totalorder %s93, %s94
    %p106 = scmp.eq.s32.totalorder %s16, 1
    %p107 = por %p105, %p106
    %p109 = scmp.ne.s32.totalorder %s94, %s108
    %p110 = scmp.eq.s32.totalorder %s16, 0
    %p111 = por %p109, %p110
    %s112 = ssub.s32 %s10, %s17
    %p113 = scmp.eq.s32.totalorder %s112, 0
    %s115 = sadd.s32 %s114, 1
    %s116 = scalar_select %p113, %s114, %s115
    %p119 = pneg %p113
    %p120 = scmp.eq.s32.totalorder %s10, 1
    %p121 = por %p119, %p120
    %p122 = scmp.ne.s32.totalorder %s114, %s117
    %p123 = scmp.eq.s32.totalorder %s10, 0
    %p124 = por %p122, %p123
    %p125 = scmp.ne.s32.totalorder %s114, %s117
    %p126 = scmp.eq.s32.totalorder %s15, 1
    %p127 = por %p125, %p126
    %p128 = scmp.ne.s32.totalorder %s117, %s118
    %p129 = scmp.eq.s32.totalorder %s15, 0
    %p130 = por %p128, %p129
    %p131 = scmp.ne.s32.totalorder %s117, %s118
    %p132 = scmp.eq.s32.totalorder %s16, 1
    %p133 = por %p131, %p132
    %p135 = scmp.ne.s32.totalorder %s118, %s134
    %p136 = scmp.eq.s32.totalorder %s16, 0
    %p137 = por %p135, %p136
    %p138 = scmp.le.s32.totalorder 1, %s10
    %p139 = scmp.lt.s32.totalorder %s10, 3
    %p140 = pnand %p138, %p139
    %p141 = pneg %p140
    // Predicated region
    $region9: #{residual_block_pallas.5} parent=5 // pred_check
      _
    $region10: #{residual_block_pallas.5} parent=5 // pred_check_branch
      %143 = sbr.rel (%p140) target = $region12
    $region11: #{residual_block_pallas.5} parent=5 // pred_region
      %s144 = ssub.s32 %s10, 1
      // Predicated region
      $region13: #{residual_block_pallas.5} parent=11 // pred_check
        %p145 = pneg %p83
      $region14: #{residual_block_pallas.5} parent=11 // pred_check_branch
        %147 = sbr.rel (%p145) target = $region16
      $region15: #{residual_block_pallas.5} parent=11 // pred_region
        _
      $region16: #{residual_block_pallas.5} parent=11 // pred_fallthru
        _
      // Predicated region
      $region17: #{residual_block_pallas.5} parent=11 // pred_check
        %p148 = pneg %p104
      $region18: #{residual_block_pallas.5} parent=11 // pred_check_branch
        %150 = sbr.rel (%p148) target = $region20
      $region19: #{residual_block_pallas.5} parent=11 // pred_region
        _
      $region20: #{residual_block_pallas.5} parent=11 // pred_fallthru
        _
    $region12: #{residual_block_pallas.5} parent=5 // pred_fallthru
      _
    %p151 = scmp.lt.s32.totalorder %s10, 2
    // Predicated region
    $region21: #{residual_block_pallas.5} parent=5 // pred_check
      %p152 = pneg %p151
    $region22: #{residual_block_pallas.5} parent=5 // pred_check_branch
      %154 = sbr.rel (%p152) target = $region24
    $region23: #{residual_block_pallas.5} parent=5 // pred_region
      // Predicated region
      $region25: #{residual_block_pallas.5} parent=23 // pred_check
        %p155 = pneg %p30
      $region26: #{residual_block_pallas.5} parent=23 // pred_check_branch
        %157 = sbr.rel (%p155) target = $region28
      $region27: #{residual_block_pallas.5} parent=23 // pred_region
        %s158 = smul.u32 2, %s10
        %p159 = scmp.lt.s32.totalorder %s158, 3
        %s160 = scalar_select %p159, %s158, 3
        %s161 = smul.addr %s160, 2
        %s162 = smul.addr %s161, 4
        %s163 = scalar_lea.vmem %s0, %s162
        %s164 = smul.u32 2, %s10
      $region28: #{residual_block_pallas.5} parent=23 // pred_fallthru
        _
      // Predicated region
      $region29: #{residual_block_pallas.5} parent=23 // pred_check
        %p165 = pneg %p56
      $region30: #{residual_block_pallas.5} parent=23 // pred_check_branch
        %167 = sbr.rel (%p165) target = $region32
      $region31: #{residual_block_pallas.5} parent=23 // pred_region
        %s168 = smul.u32 4, %s10
        %p169 = scmp.lt.s32.totalorder %s168, 7
        %s170 = scalar_select %p169, %s168, 7
        %s171 = smul.addr %s170, 2
        %s172 = scalar_lea.vmem %s1, %s171
        %s173 = smul.u32 4, %s10
      $region32: #{residual_block_pallas.5} parent=23 // pred_fallthru
        _
    $region24: #{residual_block_pallas.5} parent=5 // pred_fallthru
      _
    %p174 = scmp.le.s32.totalorder 1, %s10
    %p175 = scmp.lt.s32.totalorder %s10, 3
    %p176 = pnand %p174, %p175
    %p177 = pneg %p176
    // Predicated region
    $region33: #{residual_block_pallas.5} parent=5 // pred_check
      _
    $region34: #{residual_block_pallas.5} parent=5 // pred_check_branch
      %179 = sbr.rel (%p176) target = $region36
    $region35: #{residual_block_pallas.5} parent=5 // pred_region
      %s180 = ssub.s32 %s10, 1
      %s181 = smul.u32 2, %s15
      %p182 = scmp.lt.s32.totalorder %s181, 3
      %s183 = scalar_select %p182, %s181, 3
      %s184 = smul.addr %s183, 2
      %s185 = smul.addr %s184, 4
      %s186 = scalar_lea.vmem %s0, %s185
      %p187 = pneg %p36
      %p188 = pneg %p33
      %s189 = smul.u32 4, %s15
      %p190 = scmp.lt.s32.totalorder %s189, 7
      %s191 = scalar_select %p190, %s189, 7
      %s192 = smul.addr %s191, 2
      %s193 = scalar_lea.vmem %s1, %s192
      %p194 = pneg %p62
      %p195 = pneg %p59
      %p196 = pneg %p83
      %p197 = pneg %p80
      %p198 = pneg %p104
      %p199 = pneg %p101
      %p200 = pneg %p130
      %p201 = pneg %p127
      %s202 = smul.u32 2, %s15
      %p203 = scmp.lt.s32.totalorder %s202, 3
      %s204 = scalar_select %p203, %s202, 3
      %s205 = smul.addr %s204, 2
      %s206 = smul.addr %s205, 4
      %s207 = scalar_lea.vmem %s4, %s206
      %s208 = smul.u32 2, %s15
      %p209 = scmp.lt.s32.totalorder %s208, 3
      %s210 = scalar_select %p209, %s208, 3
      %s211 = smul.addr %s210, 2
      %s212 = smul.addr %s211, 4
      %s213 = scalar_lea.vmem %s0, %s212
      %s214 = smul.u32 2, %s15
      %s215 = smul.u32 4, %s15
      %p216 = scmp.lt.s32.totalorder %s215, 7
      %s217 = scalar_select %p216, %s215, 7
      %s218 = smul.addr %s217, 2
      %s219 = scalar_lea.vmem %s1, %s218
      %s220 = smul.u32 4, %s15
      %s221 = smul.u32 2, %s15
      %p222 = scmp.lt.s32.totalorder %s221, 3
      %s223 = scalar_select %p222, %s221, 3
      %s224 = smul.addr %s223, 2
      %s225 = smul.addr %s224, 4
      %s226 = scalar_lea.vmem %s4, %s225
      %s227 = smul.u32 2, %s15
      %v228 = vld [vmem:[%s219] sm:$0xff]
      %v229 = vunpack.c.l.bf16 %v228
      %v230 = vunpack.c.h.bf16 %v228
      %v231 = vld [vmem:[%s2] sm:$0xf]
      %233 = vset.pattern.permute.xlu0 0
      %234 = vperm.xlu0 %233, %v231
      %v235 = vpop.permute.xlu0 %234
      %v237 = vunpack.c.l.s4 839922192
      %v238 = vunpack.c.0.s8 %v237
      %v239 = vlaneseq
      %v240 = vshrl.u32 %v239, 7
      %v241 = vsub.s32 %v238, %v240
      %v242 = vrot.slane %v235, %v241
      %v244 = vmul.f32 %v229, %v242
      %v245 = vmul.f32 %v230, %v242
      %v246 = vld [vmem:[%s3] sm:$0xf]
      %248 = vset.pattern.permute.xlu0 0
      %249 = vperm.xlu0 %248, %v246
      %v250 = vpop.permute.xlu0 %249
      %v252 = vunpack.c.l.s4 839922192
      %v253 = vunpack.c.0.s8 %v252
      %v254 = vlaneseq
      %v255 = vshrl.u32 %v254, 7
      %v256 = vsub.s32 %v253, %v255
      %v257 = vrot.slane %v250, %v256
      %v259 = vadd.f32 %v244, %v257
      %v260 = vadd.f32 %v245, %v257
      %v261 = vld [vmem:[%s213] sm:$0xff]
      %v262 = vadd.f32 %v261, %v259
      %v263 = vmax.f32 %v262, 0.0
      %264 = vst [vmem:[%s226] sm:$0xff] %v263
      %s265 = scalar_lea.vmem %s213, 8
      %v266 = vld [vmem:[%s265] sm:$0xff]
      %v267 = vadd.f32 %v266, %v260
      %v268 = vmax.f32 %v267, 0.0
      %s269 = scalar_lea.vmem %s226, 8
      %270 = vst [vmem:[%s269] sm:$0xff] %v268
      %s271 = smul.u32 2, %s15
      %p272 = scmp.lt.s32.totalorder %s271, 3
      %s273 = scalar_select %p272, %s271, 3
      %s274 = smul.addr %s273, 2
      %s275 = smul.addr %s274, 4
      %s276 = scalar_lea.vmem %s4, %s275
      // Predicated region
      $region37: #{residual_block_pallas.5} parent=35 // pred_check
        %p277 = pneg %p127
      $region38: #{residual_block_pallas.5} parent=35 // pred_check_branch
        %279 = sbr.rel (%p277) target = $region40
      $region39: #{residual_block_pallas.5} parent=35 // pred_region
        %s280 = smul.u32 2, %s15
      $region40: #{residual_block_pallas.5} parent=35 // pred_fallthru
        _
    $region36: #{residual_block_pallas.5} parent=5 // pred_fallthru
      _
    %p281 = scmp.le.s32.totalorder 2, %s10
    // Predicated region
    $region41: #{residual_block_pallas.5} parent=5 // pred_check
      %p282 = pneg %p281
    $region42: #{residual_block_pallas.5} parent=5 // pred_check_branch
      %284 = sbr.rel (%p282) target = $region44
    $region43: #{residual_block_pallas.5} parent=5 // pred_region
      %s285 = ssub.s32 %s10, 2
      // Predicated region
      $region45: #{residual_block_pallas.5} parent=43 // pred_check
        %p286 = pneg %p133
      $region46: #{residual_block_pallas.5} parent=43 // pred_check_branch
        %288 = sbr.rel (%p286) target = $region48
      $region47: #{residual_block_pallas.5} parent=43 // pred_region
        %s289 = smul.u32 2, %s16
        %p290 = scmp.lt.s32.totalorder %s289, 3
        %s291 = scalar_select %p290, %s289, 3
        %s292 = smul.addr %s291, 2
        %s293 = smul.addr %s292, 4
        %s294 = scalar_lea.vmem %s4, %s293
      $region48: #{residual_block_pallas.5} parent=43 // pred_fallthru
        _
    $region44: #{residual_block_pallas.5} parent=5 // pred_fallthru
      _
  $region6: #{residual_block_pallas.5} parent=0 // loop_footer
    %s14 = sadd.s32 1, %s10
  $region7: #{residual_block_pallas.5} parent=0 // loop_footer_branch
    %9 = sbr.rel target = $region3
  $region8: #{residual_block_pallas.5} parent=0 // loop_exit
    _

// kernel: residual_block_pallas.3
$region0: #{residual_block_pallas.3}
  #allocation0 [shape = 'u32[]', space=smem, size = 0x4, offset = 0x4, fixed_abs, tag = 'smem constant byte address 0x4 - core index']
  #allocation1 [shape = 'u32[144,128]{1,0:T(1,128)}', space=vmem, size = 0x12000, scoped, tag = 'internal scratch']
  #allocation2 [shape = 'bf16[4,724]{1,0:T(4,128)(2,1)}', space=vmem, size = 0x1800, scoped, tag = 'scratch operand']
  #allocation3 [shape = 'bf16[36,686]{1,0:T(8,128)(2,1)}', space=vmem, size = 0xf000, scoped, tag = 'scratch operand']
  #allocation4 [shape = 'f32[4,512]{1,0:T(4,128)}', space=vmem, size = 0x2000, scoped, tag = 'scratch operand']
  %s0 = inlined_call_operand.vmem [shape: f32[4,4,256], index: 0, kind: input, shape index: {}]
  %s1 = inlined_call_operand.vmem [shape: bf16[4,36], index: 1, kind: input, shape index: {}]
  %s2 = inlined_call_operand.vmem [shape: f32[4,1], index: 2, kind: input, shape index: {}]
  %s3 = inlined_call_operand.vmem [shape: bf16[4,1024], index: 3, kind: output, shape index: {0}]
  %s4 = inlined_call_operand.vmem [shape: f32[2,4,2], index: 4, kind: output, shape index: {1}]
  %5 = xla_tuple %s3, %s4
  %s6 = sld [smem:[#allocation0]]
  $region53: #{residual_block_pallas.3} parent=0
    _
  %s8 = ssub.s32 1, %s6
  %s9 = scalar_select 0, %s8, %s6
  loop: start=0, step=1, limit=4
  $region2: #{residual_block_pallas.3} parent=0 // loop_pre_header
    _
  $region3: #{residual_block_pallas.3} parent=0 // loop_header
    %s11 = sphi 0, %s15
    %p12 = scmp.ge.s32.totalorder %s11, 4
    %s21 = sphi 0, %s23
    %s24 = sphi 0, %s21
    %s25 = sphi 0, %s24
    %s41 = sphi 0, %s25
    %s45 = sphi 0, %s45
    %s47 = sphi 0, %s45
    %s48 = sphi 0, %s47
    %s62 = sphi 0, %s48
    %s66 = sphi 0, %s66
    %s68 = sphi 0, %s66
    %s69 = sphi 0, %s68
    %s83 = sphi 0, %s69
    %s89 = sphi 0, %s91
    %s92 = sphi 0, %s89
    %s93 = sphi 0, %s92
    %s109 = sphi 0, %s93
    %s115 = sphi 0, %s117
    %s118 = sphi 0, %s115
    %s119 = sphi 0, %s118
    %s135 = sphi 0, %s119
  $region4: #{residual_block_pallas.3} parent=0 // loop_header_branch
    %14 = sbr.rel (%p12) target = $region8
  $region5: #{residual_block_pallas.3} parent=0 // loop_body
    %s16 = ssub.s32 %s11, 1
    %s17 = ssub.s32 %s11, 2
    %s18 = sadd.s32 %s11, 1
    %s19 = ssub.s32 %s11, %s18
    %p20 = scmp.eq.s32.totalorder %s19, 0
    %s22 = sadd.s32 %s21, 1
    %s23 = scalar_select %p20, %s21, %s22
    %p26 = pneg %p20
    %p27 = scmp.eq.s32.totalorder %s11, 1
    %p28 = por %p26, %p27
    %p29 = scmp.ne.s32.totalorder %s21, %s24
    %p30 = scmp.eq.s32.totalorder %s11, 0
    %p31 = por %p29, %p30
    %p32 = scmp.ne.s32.totalorder %s21, %s24
    %p33 = scmp.eq.s32.totalorder %s16, 1
    %p34 = por %p32, %p33
    %p35 = scmp.ne.s32.totalorder %s24, %s25
    %p36 = scmp.eq.s32.totalorder %s16, 0
    %p37 = por %p35, %p36
    %p38 = scmp.ne.s32.totalorder %s24, %s25
    %p39 = scmp.eq.s32.totalorder %s17, 1
    %p40 = por %p38, %p39
    %p42 = scmp.ne.s32.totalorder %s25, %s41
    %p43 = scmp.eq.s32.totalorder %s17, 0
    %p44 = por %p42, %p43
    %s46 = sadd.s32 %s45, 1
    %p49 = scmp.eq.s32.totalorder %s11, 1
    %p50 = scmp.ne.s32.totalorder %s45, %s47
    %p51 = scmp.eq.s32.totalorder %s11, 0
    %p52 = por %p50, %p51
    %p53 = scmp.ne.s32.totalorder %s45, %s47
    %p54 = scmp.eq.s32.totalorder %s16, 1
    %p55 = por %p53, %p54
    %p56 = scmp.ne.s32.totalorder %s47, %s48
    %p57 = scmp.eq.s32.totalorder %s16, 0
    %p58 = por %p56, %p57
    %p59 = scmp.ne.s32.totalorder %s47, %s48
    %p60 = scmp.eq.s32.totalorder %s17, 1
    %p61 = por %p59, %p60
    %p63 = scmp.ne.s32.totalorder %s48, %s62
    %p64 = scmp.eq.s32.totalorder %s17, 0
    %p65 = por %p63, %p64
    %s67 = sadd.s32 %s66, 1
    %p70 = scmp.eq.s32.totalorder %s11, 1
    %p71 = scmp.ne.s32.totalorder %s66, %s68
    %p72 = scmp.eq.s32.totalorder %s11, 0
    %p73 = por %p71, %p72
    %p74 = scmp.ne.s32.totalorder %s66, %s68
    %p75 = scmp.eq.s32.totalorder %s16, 1
    %p76 = por %p74, %p75
    %p77 = scmp.ne.s32.totalorder %s68, %s69
    %p78 = scmp.eq.s32.totalorder %s16, 0
    %p79 = por %p77, %p78
    %p80 = scmp.ne.s32.totalorder %s68, %s69
    %p81 = scmp.eq.s32.totalorder %s17, 1
    %p82 = por %p80, %p81
    %p84 = scmp.ne.s32.totalorder %s69, %s83
    %p85 = scmp.eq.s32.totalorder %s17, 0
    %p86 = por %p84, %p85
    %s87 = ssub.s32 %s11, %s18
    %p88 = scmp.eq.s32.totalorder %s87, 0
    %s90 = sadd.s32 %s89, 1
    %s91 = scalar_select %p88, %s89, %s90
    %p94 = pneg %p88
    %p95 = scmp.eq.s32.totalorder %s11, 1
    %p96 = por %p94, %p95
    %p97 = scmp.ne.s32.totalorder %s89, %s92
    %p98 = scmp.eq.s32.totalorder %s11, 0
    %p99 = por %p97, %p98
    %p100 = scmp.ne.s32.totalorder %s89, %s92
    %p101 = scmp.eq.s32.totalorder %s16, 1
    %p102 = por %p100, %p101
    %p103 = scmp.ne.s32.totalorder %s92, %s93
    %p104 = scmp.eq.s32.totalorder %s16, 0
    %p105 = por %p103, %p104
    %p106 = scmp.ne.s32.totalorder %s92, %s93
    %p107 = scmp.eq.s32.totalorder %s17, 1
    %p108 = por %p106, %p107
    %p110 = scmp.ne.s32.totalorder %s93, %s109
    %p111 = scmp.eq.s32.totalorder %s17, 0
    %p112 = por %p110, %p111
    %s113 = ssub.s32 %s11, %s18
    %p114 = scmp.eq.s32.totalorder %s113, 0
    %s116 = sadd.s32 %s115, 1
    %s117 = scalar_select %p114, %s115, %s116
    %p120 = pneg %p114
    %p121 = scmp.eq.s32.totalorder %s11, 1
    %p122 = por %p120, %p121
    %p123 = scmp.ne.s32.totalorder %s115, %s118
    %p124 = scmp.eq.s32.totalorder %s11, 0
    %p125 = por %p123, %p124
    %p126 = scmp.ne.s32.totalorder %s115, %s118
    %p127 = scmp.eq.s32.totalorder %s16, 1
    %p128 = por %p126, %p127
    %p129 = scmp.ne.s32.totalorder %s118, %s119
    %p130 = scmp.eq.s32.totalorder %s16, 0
    %p131 = por %p129, %p130
    %p132 = scmp.ne.s32.totalorder %s118, %s119
    %p133 = scmp.eq.s32.totalorder %s17, 1
    %p134 = por %p132, %p133
    %p136 = scmp.ne.s32.totalorder %s119, %s135
    %p137 = scmp.eq.s32.totalorder %s17, 0
    %p138 = por %p136, %p137
    %p139 = scmp.le.s32.totalorder 1, %s11
    %p140 = scmp.lt.s32.totalorder %s11, 3
    %p141 = pnand %p139, %p140
    %p142 = pneg %p141
    // Predicated region
    $region9: #{residual_block_pallas.3} parent=5 // pred_check
      _
    $region10: #{residual_block_pallas.3} parent=5 // pred_check_branch
      %144 = sbr.rel (%p141) target = $region12
    $region11: #{residual_block_pallas.3} parent=5 // pred_region
      %s145 = ssub.s32 %s11, 1
      // Predicated region
      $region13: #{residual_block_pallas.3} parent=11 // pred_check
        %p146 = pneg %p58
      $region14: #{residual_block_pallas.3} parent=11 // pred_check_branch
        %148 = sbr.rel (%p146) target = $region16
      $region15: #{residual_block_pallas.3} parent=11 // pred_region
        _
      $region16: #{residual_block_pallas.3} parent=11 // pred_fallthru
        _
      // Predicated region
      $region17: #{residual_block_pallas.3} parent=11 // pred_check
        %p149 = pneg %p79
      $region18: #{residual_block_pallas.3} parent=11 // pred_check_branch
        %151 = sbr.rel (%p149) target = $region20
      $region19: #{residual_block_pallas.3} parent=11 // pred_region
        _
      $region20: #{residual_block_pallas.3} parent=11 // pred_fallthru
        _
    $region12: #{residual_block_pallas.3} parent=5 // pred_fallthru
      _
    %p152 = scmp.lt.s32.totalorder %s11, 2
    // Predicated region
    $region21: #{residual_block_pallas.3} parent=5 // pred_check
      %p153 = pneg %p152
    $region22: #{residual_block_pallas.3} parent=5 // pred_check_branch
      %155 = sbr.rel (%p153) target = $region24
    $region23: #{residual_block_pallas.3} parent=5 // pred_region
      // Predicated region
      $region25: #{residual_block_pallas.3} parent=23 // pred_check
        %p156 = pneg %p31
      $region26: #{residual_block_pallas.3} parent=23 // pred_check_branch
        %158 = sbr.rel (%p156) target = $region28
      $region27: #{residual_block_pallas.3} parent=23 // pred_region
        %s159 = smul.u32 2, %s11
        %p160 = scmp.lt.s32.totalorder %s159, 3
        %s161 = scalar_select %p160, %s159, 3
        %s162 = smul.addr %s161, 2
        %s163 = smul.addr %s162, 4
        %s164 = scalar_lea.vmem %s0, %s163
        %s165 = smul.u32 2, %s11
      $region28: #{residual_block_pallas.3} parent=23 // pred_fallthru
        _
    $region24: #{residual_block_pallas.3} parent=5 // pred_fallthru
      _
    %p166 = scmp.le.s32.totalorder 1, %s11
    %p167 = scmp.lt.s32.totalorder %s11, 3
    %p168 = pnand %p166, %p167
    %p169 = pneg %p168
    // Predicated region
    $region29: #{residual_block_pallas.3} parent=5 // pred_check
      _
    $region30: #{residual_block_pallas.3} parent=5 // pred_check_branch
      %171 = sbr.rel (%p168) target = $region32
    $region31: #{residual_block_pallas.3} parent=5 // pred_region
      %s172 = ssub.s32 %s11, 1
      %s173 = smul.u32 2, %s16
      %p174 = scmp.lt.s32.totalorder %s173, 3
      %s175 = scalar_select %p174, %s173, 3
      %s176 = smul.addr %s175, 2
      %s177 = smul.addr %s176, 4
      %s178 = scalar_lea.vmem %s0, %s177
      %p179 = pneg %p37
      %p180 = pneg %p34
      %p181 = pneg %p58
      %p182 = pneg %p55
      %p183 = pneg %p79
      %p184 = pneg %p76
      %p185 = pneg %p105
      %p186 = pneg %p102
      %s187 = smul.u32 4, %s16
      %p188 = scmp.lt.s32.totalorder %s187, 7
      %s189 = scalar_select %p188, %s187, 7
      %s190 = smul.addr %s189, 2
      %s191 = scalar_lea.vmem %s3, %s190
      %p192 = pneg %p131
      %p193 = pneg %p128
      %p194 = scmp.lt.s32.totalorder %s16, 1
      %s195 = scalar_select %p194, %s16, 1
      %s196 = smul.addr %s195, 4
      %s197 = scalar_lea.vmem %s4, %s196
      %s198 = smul.u32 2, %s16
      %p199 = scmp.lt.s32.totalorder %s198, 3
      %s200 = scalar_select %p199, %s198, 3
      %s201 = smul.addr %s200, 2
      %s202 = smul.addr %s201, 4
      %s203 = scalar_lea.vmem %s0, %s202
      %s204 = smul.u32 2, %s16
      %s205 = smul.u32 4, %s16
      %p206 = scmp.lt.s32.totalorder %s205, 7
      %s207 = scalar_select %p206, %s205, 7
      %s208 = smul.addr %s207, 2
      %s209 = scalar_lea.vmem %s3, %s208
      %s210 = smul.u32 4, %s16
      %p211 = scmp.lt.s32.totalorder %s16, 1
      %s212 = scalar_select %p211, %s16, 1
      %s213 = smul.addr %s212, 4
      %s214 = scalar_lea.vmem %s4, %s213
      %vm216 = vcmask 304128
      %217 = vst.msk [vmem:[#allocation2] sm:$0x3] %vm216, 0
      %vm218 = vcmask 452016
      %219 = vst.msk [vmem:[#allocation2] sm:$0x3] %vm218, 0
      %vm220 = vcmask 599616
      %221 = vst.msk [vmem:[#allocation2] sm:$0x3] %vm220, 0
      %vm222 = vcmask 747216
      %223 = vst.msk [vmem:[#allocation2] sm:$0x3] %vm222, 0
      %vm224 = vcmask 894816
      %225 = vst.msk [vmem:[#allocation2] sm:$0x3] %vm224, 0
      %vm226 = vcmask 1042416
      %227 = vst.msk [vmem:[#allocation2] sm:$0x3] %vm226, 0
      %vm228 = vcmask 140416
      %229 = vst.msk [vmem:[#allocation2 + $0x2] sm:$0x3] %vm228, 0
      %vm230 = vcmask 288016
      %231 = vst.msk [vmem:[#allocation2 + $0x2] sm:$0x3] %vm230, 0
      %vm232 = vcmask 435616
      %233 = vst.msk [vmem:[#allocation2 + $0x2] sm:$0x3] %vm232, 0
      %vm234 = vcmask 583216
      %235 = vst.msk [vmem:[#allocation2 + $0x2] sm:$0x3] %vm234, 0
      %vm236 = vcmask 730816
      %237 = vst.msk [vmem:[#allocation2 + $0x2] sm:$0x3] %vm236, 0
      %vm238 = vcmask 878416
      %239 = vst.msk [vmem:[#allocation2 + $0x2] sm:$0x3] %vm238, 0
      %vm240 = vcmask 1026016
      %241 = vst.msk [vmem:[#allocation2 + $0x2] sm:$0x3] %vm240, 0
      %vm242 = vcmask 124016
      %243 = vst.msk [vmem:[#allocation2 + $0x4] sm:$0x3] %vm242, 0
      %vm244 = vcmask 271616
      %245 = vst.msk [vmem:[#allocation2 + $0x4] sm:$0x3] %vm244, 0
      %vm246 = vcmask 419216
      %247 = vst.msk [vmem:[#allocation2 + $0x4] sm:$0x3] %vm246, 0
      %vm248 = vcmask 1041952
      %vm249 = vcmask 125954
      %vm250 = vmor %vm249, %vm248
      %251 = vst.msk [vmem:[#allocation2 + $0x4] sm:$0xf] %vm250, 0
      %252 = vst.msk [vmem:[#allocation2 + $0x6] sm:$0x3] %vm244, 0
      %253 = vst.msk [vmem:[#allocation2 + $0x6] sm:$0x3] %vm246, 0
      %vm254 = vcmask 566816
      %255 = vst.msk [vmem:[#allocation2 + $0x6] sm:$0x3] %vm254, 0
      %vm256 = vcmask 714416
      %257 = vst.msk [vmem:[#allocation2 + $0x6] sm:$0x3] %vm256, 0
      %vm258 = vcmask 862016
      %259 = vst.msk [vmem:[#allocation2 + $0x6] sm:$0x3] %vm258, 0
      %vm260 = vcmask 1009616
      %261 = vst.msk [vmem:[#allocation2 + $0x6] sm:$0x3] %vm260, 0
      %vm262 = vcmask 107616
      %263 = vst.msk [vmem:[#allocation2 + $0x8] sm:$0x3] %vm262, 0
      %vm264 = vcmask 255216
      %265 = vst.msk [vmem:[#allocation2 + $0x8] sm:$0x3] %vm264, 0
      %vm266 = vcmask 402816
      %267 = vst.msk [vmem:[#allocation2 + $0x8] sm:$0x3] %vm266, 0
      %vm268 = vcmask 550416
      %269 = vst.msk [vmem:[#allocation2 + $0x8] sm:$0x3] %vm268, 0
      %vm270 = vcmask 698016
      %271 = vst.msk [vmem:[#allocation2 + $0x8] sm:$0x3] %vm270, 0
      %vm272 = vcmask 845616
      %273 = vst.msk [vmem:[#allocation2 + $0x8] sm:$0x3] %vm272, 0
      %vm274 = vcmask 993216
      %275 = vst.msk [vmem:[#allocation2 + $0x8] sm:$0x3] %vm274, 0
      %vm276 = vcmask 91216
      %277 = vst.msk [vmem:[#allocation2 + $0xa] sm:$0x3] %vm276, 0
      %vm278 = vcmask 238816
      %279 = vst.msk [vmem:[#allocation2 + $0xa] sm:$0x3] %vm278, 0
      %vm280 = vcmask 681328
      %281 = vst.msk [vmem:[#allocation2 + $0xa] sm:$0x3] %vm280, 0
      %v282 = vld [vmem:[%s203] sm:$0xff]
      %v284 = vcombine.high %v282, %v282
      %v286 = vpack.c.bf16 %v282, %v282
      %v287 = vpack.c.bf16 %v284, %v284
      %v290 = vunpack.c.l.s4 1983009808
      %v291 = vunpack.c.0.s8 %v290
      %v292 = vlaneseq
      %v293 = vshrl.u32 %v292, 7
      %v294 = vsub.s32 %v291, %v293
      %v295 = vrot.slane %v286, %v294
      %296 = vrot.lane.b32.xlu0 %v295, 38
      %v297 = vpop.permute.xlu0 %296
      %vm299 = vcmask 435504
      %300 = vst.msk [vmem:[#allocation2] sm:$0x3] %vm299, %v297
      %301 = vrot.lane.b32.xlu0 %v295, 40
      %v302 = vpop.permute.xlu0 %301
      %vm304 = vcmask 583104
      %305 = vst.msk [vmem:[#allocation2] sm:$0x3] %vm304, %v302
      %306 = vrot.lane.b32.xlu0 %v295, 42
      %v307 = vpop.permute.xlu0 %306
      %vm309 = vcmask 730704
      %310 = vst.msk [vmem:[#allocation2] sm:$0x3] %vm309, %v307
      %311 = vrot.lane.b32.xlu0 %v295, 44
      %v312 = vpop.permute.xlu0 %311
      %vm314 = vcmask 878304
      %315 = vst.msk [vmem:[#allocation2] sm:$0x3] %vm314, %v312
      %316 = vrot.lane.b32.xlu0 %v295, 46
      %v317 = vpop.permute.xlu0 %316
      %vm319 = vcmask 1025904
      %320 = vst.msk [vmem:[#allocation2] sm:$0x3] %vm319, %v317
      %321 = vrot.lane.b32.xlu0 %v295, 48
      %v322 = vpop.permute.xlu0 %321
      %vm324 = vcmask 123904
      %325 = vst.msk [vmem:[#allocation2 + $0x2] sm:$0x3] %vm324, %v322
      %326 = vrot.lane.b32.xlu0 %v295, 50
      %v327 = vpop.permute.xlu0 %326
      %vm329 = vcmask 271504
      %330 = vst.msk [vmem:[#allocation2 + $0x2] sm:$0x3] %vm329, %v327
      %331 = vrot.lane.b32.xlu0 %v295, 52
      %v332 = vpop.permute.xlu0 %331
      %vm334 = vcmask 419104
      %335 = vst.msk [vmem:[#allocation2 + $0x2] sm:$0x3] %vm334, %v332
      %v338 = vunpack.c.l.s4 1983009808
      %v339 = vunpack.c.0.s8 %v338
      %v340 = vlaneseq
      %v341 = vshrl.u32 %v340, 7
      %v342 = vsub.s32 %v339, %v341
      %v343 = vrot.slane %v287, %v342
      %344 = vrot.lane.b32.xlu0 %v343, 54
      %v345 = vpop.permute.xlu0 %344
      %vm347 = vcmask 566704
      %348 = vst.msk [vmem:[#allocation2 + $0x2] sm:$0x3] %vm347, %v345
      %349 = vrot.lane.b32.xlu0 %v343, 56
      %v350 = vpop.permute.xlu0 %349
      %vm352 = vcmask 714304
      %353 = vst.msk [vmem:[#allocation2 + $0x2] sm:$0x3] %vm352, %v350
      %354 = vrot.lane.b32.xlu0 %v343, 58
      %v355 = vpop.permute.xlu0 %354
      %vm357 = vcmask 861904
      %358 = vst.msk [vmem:[#allocation2 + $0x2] sm:$0x3] %vm357, %v355
      %359 = vrot.lane.b32.xlu0 %v343, 60
      %v360 = vpop.permute.xlu0 %359
      %vm362 = vcmask 1009504
      %363 = vst.msk [vmem:[#allocation2 + $0x2] sm:$0x3] %vm362, %v360
      %364 = vrot.lane.b32.xlu0 %v343, 62
      %v365 = vpop.permute.xlu0 %364
      %v366 = vrot.slane %v365, 6
      %vm367 = vcmask 506880
      %v368 = vsel %vm367, %v366, %v365
      %vm370 = vcmask 109570
      %vm371 = vmor %vm370, %vm226
      %372 = vst.msk [vmem:[#allocation2 + $0x2] sm:$0xf] %vm371, %v368
      %373 = vrot.lane.b32.xlu0 %v343, 64
      %v374 = vpop.permute.xlu0 %373
      %vm376 = vcmask 255104
      %377 = vst.msk [vmem:[#allocation2 + $0x4] sm:$0x3] %vm376, %v374
      %378 = vrot.lane.b32.xlu0 %v343, 66
      %v379 = vpop.permute.xlu0 %378
      %vm381 = vcmask 402704
      %382 = vst.msk [vmem:[#allocation2 + $0x4] sm:$0x3] %vm381, %v379
      %383 = vrot.lane.b32.xlu0 %v343, 68
      %v384 = vpop.permute.xlu0 %383
      %vm386 = vcmask 550304
      %387 = vst.msk [vmem:[#allocation2 + $0x4] sm:$0x3] %vm386, %v384
      %s388 = scalar_lea.vmem %s203, 8
      %v389 = vld [vmem:[%s388] sm:$0xff]
      %v391 = vcombine.high %v389, %v389
      %v393 = vpack.c.bf16 %v389, %v389
      %v394 = vpack.c.bf16 %v391, %v391
      %v397 = vunpack.c.l.s4 1983009808
      %v398 = vunpack.c.0.s8 %v397
      %v399 = vlaneseq
      %v400 = vshrl.u32 %v399, 7
      %v401 = vsub.s32 %v398, %v400
      %v402 = vrot.slane %v393, %v401
      %403 = vrot.lane.b32.xlu0 %v402, 16
      %v404 = vpop.permute.xlu0 %403
      %406 = vst.msk [vmem:[#allocation2 + $0x6] sm:$0x3] %vm376, %v404
      %407 = vrot.lane.b32.xlu0 %v402, 18
      %v408 = vpop.permute.xlu0 %407
      %410 = vst.msk [vmem:[#allocation2 + $0x6] sm:$0x3] %vm381, %v408
      %411 = vrot.lane.b32.xlu0 %v402, 20
      %v412 = vpop.permute.xlu0 %411
      %414 = vst.msk [vmem:[#allocation2 + $0x6] sm:$0x3] %vm386, %v412
      %415 = vrot.lane.b32.xlu0 %v402, 22
      %v416 = vpop.permute.xlu0 %415
      %vm418 = vcmask 697904
      %419 = vst.msk [vmem:[#allocation2 + $0x6] sm:$0x3] %vm418, %v416
      %420 = vrot.lane.b32.xlu0 %v402, 24
      %v421 = vpop.permute.xlu0 %420
      %vm423 = vcmask 845504
      %424 = vst.msk [vmem:[#allocation2 + $0x6] sm:$0x3] %vm423, %v421
      %425 = vrot.lane.b32.xlu0 %v402, 26
      %v426 = vpop.permute.xlu0 %425
      %vm428 = vcmask 993104
      %429 = vst.msk [vmem:[#allocation2 + $0x6] sm:$0x3] %vm428, %v426
      %430 = vrot.lane.b32.xlu0 %v402, 28
      %v431 = vpop.permute.xlu0 %430
      %v432 = vrot.slane %v431, 6
      %vm433 = vcmask 228352
      %v434 = vsel %vm433, %v432, %v431
      %vm436 = vcmask 1042400
      %vm437 = vcmask 93186
      %vm438 = vmor %vm437, %vm436
      %439 = vst.msk [vmem:[#allocation2 + $0x6] sm:$0xf] %vm438, %v434
      %440 = vrot.lane.b32.xlu0 %v402, 30
      %v441 = vpop.permute.xlu0 %440
      %vm443 = vcmask 238704
      %444 = vst.msk [vmem:[#allocation2 + $0x8] sm:$0x3] %vm443, %v441
      %v447 = vunpack.c.l.s4 1983009808
      %v448 = vunpack.c.0.s8 %v447
      %v449 = vlaneseq
      %v450 = vshrl.u32 %v449, 7
      %v451 = vsub.s32 %v448, %v450
      %v452 = vrot.slane %v394, %v451
      %453 = vrot.lane.b32.xlu0 %v452, 32
      %v454 = vpop.permute.xlu0 %453
      %vm456 = vcmask 386304
      %457 = vst.msk [vmem:[#allocation2 + $0x8] sm:$0x3] %vm456, %v454
      %458 = vrot.lane.b32.xlu0 %v452, 34
      %v459 = vpop.permute.xlu0 %458
      %vm461 = vcmask 533904
      %462 = vst.msk [vmem:[#allocation2 + $0x8] sm:$0x3] %vm461, %v459
      %463 = vrot.lane.b32.xlu0 %v452, 36
      %v464 = vpop.permute.xlu0 %463
      %vm466 = vcmask 681504
      %467 = vst.msk [vmem:[#allocation2 + $0x8] sm:$0x3] %vm466, %v464
      %468 = vrot.lane.b32.xlu0 %v452, 38
      %v469 = vpop.permute.xlu0 %468
      %vm471 = vcmask 829104
      %472 = vst.msk [vmem:[#allocation2 + $0x8] sm:$0x3] %vm471, %v469
      %473 = vrot.lane.b32.xlu0 %v452, 40
      %v474 = vpop.permute.xlu0 %473
      %vm476 = vcmask 976704
      %477 = vst.msk [vmem:[#allocation2 + $0x8] sm:$0x3] %vm476, %v474
      %478 = vrot.lane.b32.xlu0 %v452, 42
      %v479 = vpop.permute.xlu0 %478
      %v480 = vrot.slane %v479, 6
      %vm481 = vcmask 343040
      %v482 = vsel %vm481, %v480, %v479
      %vm484 = vcmask 1042384
      %vm485 = vcmask 76802
      %vm486 = vmor %vm485, %vm484
      %487 = vst.msk [vmem:[#allocation2 + $0x8] sm:$0xf] %vm486, %v482
      %488 = vrot.lane.b32.xlu0 %v452, 44
      %v489 = vpop.permute.xlu0 %488
      %vm491 = vcmask 222304
      %492 = vst.msk [vmem:[#allocation2 + $0xa] sm:$0x3] %vm491, %v489
      %493 = vrot.lane.b32.xlu0 %v452, 46
      %v494 = vpop.permute.xlu0 %493
      %vm496 = vcmask 369904
      %497 = vst.msk [vmem:[#allocation2 + $0xa] sm:$0x3] %vm496, %v494
      %v498 = vld [vmem:[#allocation2] sm:$0xff]
      %v499 = vld [vmem:[#allocation2 + $0x8] sm:$0xf]
      %v502 = vcombine.high %v498, %v498
      %v504 = vunpack.c.l.s4 1983009808
      %v505 = vunpack.c.0.s8 %v504
      %v506 = vlaneseq
      %v507 = vshrl.u32 %v506, 7
      %v508 = vsub.s32 %v505, %v507
      %v509 = vrot.slane %v498, %v508
      %v511 = vunpack.c.l.s4 1983009808
      %v512 = vunpack.c.0.s8 %v511
      %v513 = vlaneseq
      %v514 = vshrl.u32 %v513, 7
      %v515 = vsub.s32 %v512, %v514
      %v516 = vrot.slane %v502, %v515
      %v518 = vunpack.c.l.s4 1983009808
      %v519 = vunpack.c.0.s8 %v518
      %v520 = vlaneseq
      %v521 = vshrl.u32 %v520, 7
      %v522 = vsub.s32 %v519, %v521
      %v523 = vrot.slane %v499, %v522
      %527 = vst [vmem:[#allocation3] sm:$0x33] %v509
      %528 = vst [vmem:[#allocation3 + $0x8] sm:$0x33] %v516
      %vm529 = vcmask 1041408
      %vm530 = vcmask 373764
      %vm531 = vmor %vm530, %vm529
      %532 = vst.msk [vmem:[#allocation3 + $0x10] sm:$0x33] %vm531, %v523
      %v533 = vld [vmem:[#allocation2] sm:$0xff]
      %v534 = vld [vmem:[#allocation2 + $0x8] sm:$0xf]
      %v537 = vcombine.low %v533, %v533
      %v539 = vunpack.c.l.s4 1983009808
      %v540 = vunpack.c.0.s8 %v539
      %v541 = vlaneseq
      %v542 = vshrl.u32 %v541, 7
      %v543 = vsub.s32 %v540, %v542
      %v544 = vrot.slane %v537, %v543
      %v546 = vunpack.c.l.s4 1983009808
      %v547 = vunpack.c.0.s8 %v546
      %v548 = vlaneseq
      %v549 = vshrl.u32 %v548, 7
      %v550 = vsub.s32 %v547, %v549
      %v551 = vrot.slane %v533, %v550
      %v552 = vcombine.low %v534, %v534
      %v554 = vunpack.c.l.s4 1983009808
      %v555 = vunpack.c.0.s8 %v554
      %v556 = vlaneseq
      %v557 = vshrl.u32 %v556, 7
      %v558 = vsub.s32 %v555, %v557
      %v559 = vrot.slane %v552, %v558
      %560 = vrot.lane.b32.xlu0 %v544, 127
      %v561 = vpop.permute.xlu0 %560
      %562 = vrot.lane.b32.xlu0 %v551, 127
      %v563 = vpop.permute.xlu0 %562
      %564 = vrot.lane.b32.xlu0 %v559, 127
      %v565 = vpop.permute.xlu0 %564
      %v566 = vrot.slane %v561, 4
      %v567 = vrot.slane %v563, 4
      %v568 = vrot.slane %v565, 4
      %vm569 = vcmask 1043456
      %v570 = vsel %vm569, %v566, %v567
      %vm571 = vcmask 1039360
      %v572 = vsel %vm571, %v561, %v570
      %v573 = vsel %vm569, %v567, %v568
      %v574 = vsel %vm571, %v563, %v573
      %v575 = vsel %vm571, %v565, %v568
      %579 = vst [vmem:[#allocation3] sm:$0xcc] %v572
      %580 = vst [vmem:[#allocation3 + $0x8] sm:$0xcc] %v574
      %vm581 = vcmask 1043458
      %vm582 = vcmask 375814
      %vm583 = vmor %vm582, %vm581
      %584 = vst.msk [vmem:[#allocation3 + $0x10] sm:$0xcc] %vm583, %v575
      %v585 = vld [vmem:[#allocation2] sm:$0xff]
      %v586 = vld [vmem:[#allocation2 + $0x8] sm:$0xf]
      %v589 = vcombine.high %v585, %v585
      %v591 = vunpack.c.l.s4 1983009808
      %v592 = vunpack.c.0.s8 %v591
      %v593 = vlaneseq
      %v594 = vshrl.u32 %v593, 7
      %v595 = vsub.s32 %v592, %v594
      %v596 = vrot.slane %v585, %v595
      %v598 = vunpack.c.l.s4 1983009808
      %v599 = vunpack.c.0.s8 %v598
      %v600 = vlaneseq
      %v601 = vshrl.u32 %v600, 7
      %v602 = vsub.s32 %v599, %v601
      %v603 = vrot.slane %v589, %v602
      %v605 = vunpack.c.l.s4 1983009808
      %v606 = vunpack.c.0.s8 %v605
      %v607 = vlaneseq
      %v608 = vshrl.u32 %v607, 7
      %v609 = vsub.s32 %v606, %v608
      %v610 = vrot.slane %v586, %v609
      %611 = vrot.lane.b32.xlu0 %v596, 126
      %v612 = vpop.permute.xlu0 %611
      %613 = vrot.lane.b32.xlu0 %v603, 126
      %v614 = vpop.permute.xlu0 %613
      %615 = vrot.lane.b32.xlu0 %v610, 126
      %v616 = vpop.permute.xlu0 %615
      %v617 = vrot.slane %v612, 4
      %v618 = vrot.slane %v614, 4
      %v619 = vrot.slane %v616, 4
      %v620 = vsel %vm569, %v617, %v618
      %vm621 = vcmask 1031168
      %v622 = vsel %vm621, %v612, %v620
      %v623 = vsel %vm569, %v618, %v619
      %v624 = vsel %vm621, %v614, %v623
      %v625 = vsel %vm621, %v616, %v619
      %629 = vst [vmem:[#allocation3 + $0x18] sm:$0x33] %v622
      %630 = vst [vmem:[#allocation3 + $0x20] sm:$0x33] %v624
      %631 = vst.msk [vmem:[#allocation3 + $0x28] sm:$0x33] %vm531, %v625
      %v632 = vld [vmem:[#allocation2] sm:$0xff]
      %v633 = vld [vmem:[#allocation2 + $0x8] sm:$0xf]
      %v636 = vcombine.low %v632, %v632
      %v638 = vunpack.c.l.s4 1983009808
      %v639 = vunpack.c.0.s8 %v638
      %v640 = vlaneseq
      %v641 = vshrl.u32 %v640, 7
      %v642 = vsub.s32 %v639, %v641
      %v643 = vrot.slane %v636, %v642
      %v645 = vunpack.c.l.s4 1983009808
      %v646 = vunpack.c.0.s8 %v645
      %v647 = vlaneseq
      %v648 = vshrl.u32 %v647, 7
      %v649 = vsub.s32 %v646, %v648
      %v650 = vrot.slane %v632, %v649
      %v651 = vcombine.low %v633, %v633
      %v653 = vunpack.c.l.s4 1983009808
      %v654 = vunpack.c.0.s8 %v653
      %v655 = vlaneseq
      %v656 = vshrl.u32 %v655, 7
      %v657 = vsub.s32 %v654, %v656
      %v658 = vrot.slane %v651, %v657
      %659 = vrot.lane.b32.xlu0 %v643, 110
      %v660 = vpop.permute.xlu0 %659
      %661 = vrot.lane.b32.xlu0 %v650, 110
      %v662 = vpop.permute.xlu0 %661
      %663 = vrot.lane.b32.xlu0 %v658, 110
      %v664 = vpop.permute.xlu0 %663
      %v665 = vrot.slane %v660, 4
      %v666 = vrot.slane %v662, 4
      %v667 = vrot.slane %v664, 4
      %v668 = vsel %vm569, %v665, %v666
      %vm669 = vcmask 900096
      %v670 = vsel %vm669, %v660, %v668
      %v671 = vsel %vm569, %v666, %v667
      %v672 = vsel %vm669, %v662, %v671
      %v673 = vsel %vm669, %v664, %v667
      %677 = vst [vmem:[#allocation3 + $0x18] sm:$0xcc] %v670
      %678 = vst [vmem:[#allocation3 + $0x20] sm:$0xcc] %v672
      %679 = vst.msk [vmem:[#allocation3 + $0x28] sm:$0xcc] %vm583, %v673
      %v680 = vld [vmem:[#allocation2] sm:$0xff]
      %v681 = vld [vmem:[#allocation2 + $0x8] sm:$0xf]
      %v684 = vcombine.high %v680, %v680
      %v686 = vunpack.c.l.s4 1983009808
      %v687 = vunpack.c.0.s8 %v686
      %v688 = vlaneseq
      %v689 = vshrl.u32 %v688, 7
      %v690 = vsub.s32 %v687, %v689
      %v691 = vrot.slane %v680, %v690
      %v693 = vunpack.c.l.s4 1983009808
      %v694 = vunpack.c.0.s8 %v693
      %v695 = vlaneseq
      %v696 = vshrl.u32 %v695, 7
      %v697 = vsub.s32 %v694, %v696
      %v698 = vrot.slane %v684, %v697
      %v700 = vunpack.c.l.s4 1983009808
      %v701 = vunpack.c.0.s8 %v700
      %v702 = vlaneseq
      %v703 = vshrl.u32 %v702, 7
      %v704 = vsub.s32 %v701, %v703
      %v705 = vrot.slane %v681, %v704
      %706 = vrot.lane.b32.xlu0 %v691, 109
      %v707 = vpop.permute.xlu0 %706
      %708 = vrot.lane.b32.xlu0 %v698, 109
      %v709 = vpop.permute.xlu0 %708
      %710 = vrot.lane.b32.xlu0 %v705, 109
      %v711 = vpop.permute.xlu0 %710
      %v712 = vrot.slane %v707, 4
      %v713 = vrot.slane %v709, 4
      %v714 = vrot.slane %v711, 4
      %v715 = vsel %vm569, %v712, %v713
      %vm716 = vcmask 891904
      %v717 = vsel %vm716, %v707, %v715
      %v718 = vsel %vm569, %v713, %v714
      %v719 = vsel %vm716, %v709, %v718
      %v720 = vsel %vm716, %v711, %v714
      %724 = vst [vmem:[#allocation3 + $0x30] sm:$0x33] %v717
      %725 = vst [vmem:[#allocation3 + $0x38] sm:$0x33] %v719
      %726 = vst.msk [vmem:[#allocation3 + $0x40] sm:$0x33] %vm531, %v720
      %v727 = vld [vmem:[#allocation2] sm:$0xff]
      %v728 = vld [vmem:[#allocation2 + $0x8] sm:$0xf]
      %v731 = vcombine.low %v727, %v727
      %v733 = vunpack.c.l.s4 1983009808
      %v734 = vunpack.c.0.s8 %v733
      %v735 = vlaneseq
      %v736 = vshrl.u32 %v735, 7
      %v737 = vsub.s32 %v734, %v736
      %v738 = vrot.slane %v731, %v737
      %v740 = vunpack.c.l.s4 1983009808
      %v741 = vunpack.c.0.s8 %v740
      %v742 = vlaneseq
      %v743 = vshrl.u32 %v742, 7
      %v744 = vsub.s32 %v741, %v743
      %v745 = vrot.slane %v727, %v744
      %v746 = vcombine.low %v728, %v728
      %v748 = vunpack.c.l.s4 1983009808
      %v749 = vunpack.c.0.s8 %v748
      %v750 = vlaneseq
      %v751 = vshrl.u32 %v750, 7
      %v752 = vsub.s32 %v749, %v751
      %v753 = vrot.slane %v746, %v752
      %754 = vrot.lane.b32.xlu0 %v738, 108
      %v755 = vpop.permute.xlu0 %754
      %756 = vrot.lane.b32.xlu0 %v745, 108
      %v757 = vpop.permute.xlu0 %756
      %758 = vrot.lane.b32.xlu0 %v753, 108
      %v759 = vpop.permute.xlu0 %758
      %v760 = vrot.slane %v755, 4
      %v761 = vrot.slane %v757, 4
      %v762 = vrot.slane %v759, 4
      %v763 = vsel %vm569, %v760, %v761
      %vm764 = vcmask 883712
      %v765 = vsel %vm764, %v755, %v763
      %v766 = vsel %vm569, %v761, %v762
      %v767 = vsel %vm764, %v757, %v766
      %v768 = vsel %vm764, %v759, %v762
      %772 = vst [vmem:[#allocation3 + $0x30] sm:$0xcc] %v765
      %773 = vst [vmem:[#allocation3 + $0x38] sm:$0xcc] %v767
      %774 = vst.msk [vmem:[#allocation3 + $0x40] sm:$0xcc] %vm583, %v768
      %v775 = vld [vmem:[#allocation2] sm:$0xff]
      %v776 = vld [vmem:[#allocation2 + $0x8] sm:$0xf]
      %v779 = vcombine.high %v775, %v775
      %v781 = vunpack.c.l.s4 1983009808
      %v782 = vunpack.c.0.s8 %v781
      %v783 = vlaneseq
      %v784 = vshrl.u32 %v783, 7
      %v785 = vsub.s32 %v782, %v784
      %v786 = vrot.slane %v775, %v785
      %v788 = vunpack.c.l.s4 1983009808
      %v789 = vunpack.c.0.s8 %v788
      %v790 = vlaneseq
      %v791 = vshrl.u32 %v790, 7
      %v792 = vsub.s32 %v789, %v791
      %v793 = vrot.slane %v779, %v792
      %v795 = vunpack.c.l.s4 1983009808
      %v796 = vunpack.c.0.s8 %v795
      %v797 = vlaneseq
      %v798 = vshrl.u32 %v797, 7
      %v799 = vsub.s32 %v796, %v798
      %v800 = vrot.slane %v776, %v799
      %801 = vrot.lane.b32.xlu0 %v786, 92
      %v802 = vpop.permute.xlu0 %801
      %803 = vrot.lane.b32.xlu0 %v793, 92
      %v804 = vpop.permute.xlu0 %803
      %805 = vrot.lane.b32.xlu0 %v800, 92
      %v806 = vpop.permute.xlu0 %805
      %v807 = vrot.slane %v802, 4
      %v808 = vrot.slane %v804, 4
      %v809 = vrot.slane %v806, 4
      %v810 = vsel %vm569, %v807, %v808
      %vm811 = vcmask 752640
      %v812 = vsel %vm811, %v802, %v810
      %v813 = vsel %vm569, %v808, %v809
      %v814 = vsel %vm811, %v804, %v813
      %v815 = vsel %vm811, %v806, %v809
      %819 = vst [vmem:[#allocation3 + $0x48] sm:$0x33] %v812
      %820 = vst [vmem:[#allocation3 + $0x50] sm:$0x33] %v814
      %821 = vst.msk [vmem:[#allocation3 + $0x58] sm:$0x33] %vm531, %v815
      %v822 = vld [vmem:[#allocation2] sm:$0xff]
      %v823 = vld [vmem:[#allocation2 + $0x8] sm:$0xf]
      %v826 = vcombine.low %v822, %v822
      %v828 = vunpack.c.l.s4 1983009808
      %v829 = vunpack.c.0.s8 %v828
      %v830 = vlaneseq
      %v831 = vshrl.u32 %v830, 7
      %v832 = vsub.s32 %v829, %v831
      %v833 = vrot.slane %v826, %v832
      %v835 = vunpack.c.l.s4 1983009808
      %v836 = vunpack.c.0.s8 %v835
      %v837 = vlaneseq
      %v838 = vshrl.u32 %v837, 7
      %v839 = vsub.s32 %v836, %v838
      %v840 = vrot.slane %v822, %v839
      %v841 = vcombine.low %v823, %v823
      %v843 = vunpack.c.l.s4 1983009808
      %v844 = vunpack.c.0.s8 %v843
      %v845 = vlaneseq
      %v846 = vshrl.u32 %v845, 7
      %v847 = vsub.s32 %v844, %v846
      %v848 = vrot.slane %v841, %v847
      %849 = vrot.lane.b32.xlu0 %v833, 91
      %v850 = vpop.permute.xlu0 %849
      %851 = vrot.lane.b32.xlu0 %v840, 91
      %v852 = vpop.permute.xlu0 %851
      %853 = vrot.lane.b32.xlu0 %v848, 91
      %v854 = vpop.permute.xlu0 %853
      %v855 = vrot.slane %v850, 4
      %v856 = vrot.slane %v852, 4
      %v857 = vrot.slane %v854, 4
      %v858 = vsel %vm569, %v855, %v856
      %vm859 = vcmask 744448
      %v860 = vsel %vm859, %v850, %v858
      %v861 = vsel %vm569, %v856, %v857
      %v862 = vsel %vm859, %v852, %v861
      %v863 = vsel %vm859, %v854, %v857
      %867 = vst [vmem:[#allocation3 + $0x48] sm:$0xcc] %v860
      %868 = vst [vmem:[#allocation3 + $0x50] sm:$0xcc] %v862
      %869 = vst.msk [vmem:[#allocation3 + $0x58] sm:$0xcc] %vm583, %v863
      %v870 = vld [vmem:[#allocation2] sm:$0xff]
      %v871 = vld [vmem:[#allocation2 + $0x8] sm:$0xf]
      %v874 = vcombine.high %v870, %v870
      %v876 = vunpack.c.l.s4 1983009808
      %v877 = vunpack.c.0.s8 %v876
      %v878 = vlaneseq
      %v879 = vshrl.u32 %v878, 7
      %v880 = vsub.s32 %v877, %v879
      %v881 = vrot.slane %v870, %v880
      %v883 = vunpack.c.l.s4 1983009808
      %v884 = vunpack.c.0.s8 %v883
      %v885 = vlaneseq
      %v886 = vshrl.u32 %v885, 7
      %v887 = vsub.s32 %v884, %v886
      %v888 = vrot.slane %v874, %v887
      %v890 = vunpack.c.l.s4 1983009808
      %v891 = vunpack.c.0.s8 %v890
      %v892 = vlaneseq
      %v893 = vshrl.u32 %v892, 7
      %v894 = vsub.s32 %v891, %v893
      %v895 = vrot.slane %v871, %v894
      %896 = vrot.lane.b32.xlu0 %v881, 90
      %v897 = vpop.permute.xlu0 %896
      %898 = vrot.lane.b32.xlu0 %v888, 90
      %v899 = vpop.permute.xlu0 %898
      %900 = vrot.lane.b32.xlu0 %v895, 90
      %v901 = vpop.permute.xlu0 %900
      %v902 = vrot.slane %v897, 4
      %v903 = vrot.slane %v899, 4
      %v904 = vrot.slane %v901, 4
      %v905 = vsel %vm569, %v902, %v903
      %vm906 = vcmask 736256
      %v907 = vsel %vm906, %v897, %v905
      %v908 = vsel %vm569, %v903, %v904
      %v909 = vsel %vm906, %v899, %v908
      %v910 = vsel %vm906, %v901, %v904
      %914 = vst [vmem:[#allocation3 + $0x60] sm:$0x33] %v907
      %915 = vst [vmem:[#allocation3 + $0x68] sm:$0x33] %v909
      %916 = vst.msk [vmem:[#allocation3 + $0x70] sm:$0x33] %vm531, %v910
      %v917 = vld [vmem:[%s1] sm:$0x3]
      %v918 = vld [vmem:[#allocation3] sm:$0xff]
      %v919 = vld [vmem:[#allocation3 + $0x8] sm:$0xff]
      %v920 = vld [vmem:[#allocation3 + $0x10] sm:$0xff]
      %v921 = vld [vmem:[#allocation3 + $0x18] sm:$0xff]
      %v922 = vld [vmem:[#allocation3 + $0x20] sm:$0xff]
      %v923 = vld [vmem:[#allocation3 + $0x28] sm:$0xff]
      %v924 = vld [vmem:[#allocation3 + $0x30] sm:$0xff]
      %v925 = vld [vmem:[#allocation3 + $0x38] sm:$0xff]
      %v926 = vld [vmem:[#allocation3 + $0x40] sm:$0xff]
      %v927 = vld [vmem:[#allocation3 + $0x48] sm:$0xff]
      %v928 = vld [vmem:[#allocation3 + $0x50] sm:$0xff]
      %v929 = vld [vmem:[#allocation3 + $0x58] sm:$0xff]
      %v930 = vld [vmem:[#allocation3 + $0x60] sm:$0x33]
      %v931 = vld [vmem:[#allocation3 + $0x68] sm:$0x33]
      %v932 = vld [vmem:[#allocation3 + $0x70] sm:$0x33]
      %v933 = vld [vmem:[%s2] sm:$0xf]
      %935 = vset.pattern.permute.xlu0 0
      %936 = vperm.xlu0 %935, %v933
      %v937 = vpop.permute.xlu0 %936
      %v954 = vunpack.c.l.b16 %v918
      %v955 = vunpack.c.h.b16 %v918
      %v956 = vunpack.c.l.b16 %v919
      %v957 = vunpack.c.h.b16 %v919
      %v958 = vunpack.c.l.b16 %v920
      %v959 = vunpack.c.h.b16 %v920
      %v960 = vunpack.c.l.b16 %v921
      %v961 = vunpack.c.h.b16 %v921
      %v962 = vunpack.c.l.b16 %v922
      %v963 = vunpack.c.h.b16 %v922
      %v964 = vunpack.c.l.b16 %v923
      %v965 = vunpack.c.h.b16 %v923
      %v966 = vunpack.c.l.b16 %v924
      %v967 = vunpack.c.h.b16 %v924
      %v968 = vunpack.c.l.b16 %v925
      %v969 = vunpack.c.h.b16 %v925
      %v970 = vunpack.c.l.b16 %v926
      %v971 = vunpack.c.h.b16 %v926
      %v972 = vunpack.c.l.b16 %v927
      %v973 = vunpack.c.h.b16 %v927
      %v974 = vunpack.c.l.b16 %v928
      %v975 = vunpack.c.h.b16 %v928
      %v976 = vunpack.c.l.b16 %v929
      %v977 = vunpack.c.h.b16 %v929
      %v978 = vunpack.c.l.b16 %v930
      %v979 = vunpack.c.h.b16 %v930
      %v980 = vunpack.c.l.b16 %v931
      %v981 = vunpack.c.h.b16 %v931
      %v982 = vunpack.c.l.b16 %v932
      %v983 = vunpack.c.h.b16 %v932
      %v984 = vpack.c.b16 %v960, %v954
      %v985 = vpack.c.b16 %v961, %v955
      %v986 = vpack.c.b16 %v962, %v956
      %v987 = vpack.c.b16 %v963, %v957
      %v988 = vpack.c.b16 %v964, %v958
      %v989 = vpack.c.b16 %v965, %v959
      %v990 = vpack.c.b16 %v972, %v966
      %v991 = vpack.c.b16 %v973, %v967
      %v992 = vpack.c.b16 %v974, %v968
      %v993 = vpack.c.b16 %v975, %v969
      %v994 = vpack.c.b16 %v976, %v970
      %v995 = vpack.c.b16 %v977, %v971
      %v996 = vpack.c.b16 %v978, %v978
      %v997 = vpack.c.b16 %v979, %v979
      %v998 = vpack.c.b16 %v980, %v980
      %v999 = vpack.c.b16 %v981, %v981
      %v1000 = vpack.c.b16 %v982, %v982
      %v1001 = vpack.c.b16 %v983, %v983
      %vm1014 = vcmask 293888
      %v1016 = vsel %vm1014, %v917, 0
      %v1019 = vsel %vm529, %v996, 0
      %v1022 = vsel %vm529, %v997, 0
      %v1025 = vsel %vm529, %v998, 0
      %v1028 = vsel %vm529, %v999, 0
      %v1031 = vsel %vm529, %v1000, 0
      %v1034 = vsel %vm529, %v1001, 0
      %1036 = vmatprep.subr.bf16.mxu0 %v985
      %1037 = vmatpush1.bf16.msra.mxu0 %v984
      %1038 = vmatprep.subr.bf16.mxu0 %v991
      %1039 = vmatpush1.bf16.msra.mxu0 %v990
      %1040 = vmatprep.subr.bf16.mxu0 %v1022
      %1041 = vmatpush1.bf16.msra.mxu0 %v1019
      %1042 = vmatprep.subr.bf16.mxu0 0
      %1043 = vmatpush1.bf16.msra.mxu0 0
      %1044 = vmatprep.subr.bf16.mxu0 0
      %1045 = vmatpush1.bf16.msra.mxu0 0
      %1046 = vmatprep.subr.bf16.mxu0 0
      %1047 = vmatpush1.bf16.msra.mxu0 0
      %1048 = vmatprep.subr.bf16.mxu0 0
      %1049 = vmatpush1.bf16.msra.mxu0 0
      %1050 = vmatprep.subr.bf16.mxu0 0
      %1051 = vmatpush1.bf16.msra.mxu0 0
      %1052 = vmatprep.subr.bf16.mxu0 0
      %1053 = vmatpush1.bf16.msra.mxu0 0
      %1054 = vmatprep.subr.bf16.mxu0 0
      %1055 = vmatpush1.bf16.msra.mxu0 0
      %1056 = vmatprep.subr.bf16.mxu0 0
      %1057 = vmatpush1.bf16.msra.mxu0 0
      %1058 = vmatprep.subr.bf16.mxu0 0
      %1059 = vmatpush1.bf16.msra.mxu0 0
      %1060 = vmatprep.subr.bf16.mxu0 0
      %1061 = vmatpush1.bf16.msra.mxu0 0
      %1062 = vmatprep.subr.bf16.mxu0 0
      %1063 = vmatpush1.bf16.msra.mxu0 0
      %1064 = vmatprep.subr.bf16.mxu0 0
      %1065 = vmatpush1.bf16.msra.mxu0 0
      %1066 = vmatprep.subr.bf16.mxu0 0
      %1067 = vmatpush1.bf16.msra.mxu0 0
      %1068 = vmatprep.mubr.bf16.mxu0 0
      %1069 = vmatmul.mubr.bf16.gmra.mrb[0].mxu0 %v1016
      %v1070 = vpop.f32.mrb[0].mxu0
      %v1071 = vadd.f32 %v937, %v1070
      %v1072 = vpop.f32.mrb[0].mxu0
      %v1073 = vadd.f32 %v937, %v1072
      %v1074 = vpop.f32.mrb[0].mxu0
      %v1075 = vpop.f32.mrb[0].mxu0
      %1076 = vdwg.mxu0
      %1077 = vmatprep.subr.bf16.mxu0 %v987
      %1078 = vmatpush1.bf16.msra.mxu0 %v986
      %1079 = vmatprep.subr.bf16.mxu0 %v993
      %1080 = vmatpush1.bf16.msra.mxu0 %v992
      %1081 = vmatprep.subr.bf16.mxu0 %v1028
      %1082 = vmatpush1.bf16.msra.mxu0 %v1025
      %1083 = vmatprep.subr.bf16.mxu0 0
      %1084 = vmatpush1.bf16.msra.mxu0 0
      %1085 = vmatprep.subr.bf16.mxu0 0
      %1086 = vmatpush1.bf16.msra.mxu0 0
      %1087 = vmatprep.subr.bf16.mxu0 0
      %1088 = vmatpush1.bf16.msra.mxu0 0
      %1089 = vmatprep.subr.bf16.mxu0 0
      %1090 = vmatpush1.bf16.msra.mxu0 0
      %1091 = vmatprep.subr.bf16.mxu0 0
      %1092 = vmatpush1.bf16.msra.mxu0 0
      %1093 = vmatprep.subr.bf16.mxu0 0
      %1094 = vmatpush1.bf16.msra.mxu0 0
      %1095 = vmatprep.subr.bf16.mxu0 0
      %1096 = vmatpush1.bf16.msra.mxu0 0
      %1097 = vmatprep.subr.bf16.mxu0 0
      %1098 = vmatpush1.bf16.msra.mxu0 0
      %1099 = vmatprep.subr.bf16.mxu0 0
      %1100 = vmatpush1.bf16.msra.mxu0 0
      %1101 = vmatprep.subr.bf16.mxu0 0
      %1102 = vmatpush1.bf16.msra.mxu0 0
      %1103 = vmatprep.subr.bf16.mxu0 0
      %1104 = vmatpush1.bf16.msra.mxu0 0
      %1105 = vmatprep.subr.bf16.mxu0 0
      %1106 = vmatpush1.bf16.msra.mxu0 0
      %1107 = vmatprep.subr.bf16.mxu0 0
      %1108 = vmatpush1.bf16.msra.mxu0 0
      %1109 = vmatprep.mubr.bf16.mxu0 0
      %1110 = vmatmul.mubr.bf16.gmra.mrb[0].mxu0 %v1016
      %v1111 = vpop.f32.mrb[0].mxu0
      %v1112 = vadd.f32 %v937, %v1111
      %v1113 = vpop.f32.mrb[0].mxu0
      %v1114 = vadd.f32 %v937, %v1113
      %v1115 = vpop.f32.mrb[0].mxu0
      %v1116 = vpop.f32.mrb[0].mxu0
      %1117 = vdwg.mxu0
      %1118 = vmatprep.subr.bf16.mxu0 %v989
      %1119 = vmatpush1.bf16.msra.mxu0 %v988
      %1120 = vmatprep.subr.bf16.mxu0 %v995
      %1121 = vmatpush1.bf16.msra.mxu0 %v994
      %1122 = vmatprep.subr.bf16.mxu0 %v1034
      %1123 = vmatpush1.bf16.msra.mxu0 %v1031
      %1124 = vmatprep.subr.bf16.mxu0 0
      %1125 = vmatpush1.bf16.msra.mxu0 0
      %1126 = vmatprep.subr.bf16.mxu0 0
      %1127 = vmatpush1.bf16.msra.mxu0 0
      %1128 = vmatprep.subr.bf16.mxu0 0
      %1129 = vmatpush1.bf16.msra.mxu0 0
      %1130 = vmatprep.subr.bf16.mxu0 0
      %1131 = vmatpush1.bf16.msra.mxu0 0
      %1132 = vmatprep.subr.bf16.mxu0 0
      %1133 = vmatpush1.bf16.msra.mxu0 0
      %1134 = vmatprep.subr.bf16.mxu0 0
      %1135 = vmatpush1.bf16.msra.mxu0 0
      %1136 = vmatprep.subr.bf16.mxu0 0
      %1137 = vmatpush1.bf16.msra.mxu0 0
      %1138 = vmatprep.subr.bf16.mxu0 0
      %1139 = vmatpush1.bf16.msra.mxu0 0
      %1140 = vmatprep.subr.bf16.mxu0 0
      %1141 = vmatpush1.bf16.msra.mxu0 0
      %1142 = vmatprep.subr.bf16.mxu0 0
      %1143 = vmatpush1.bf16.msra.mxu0 0
      %1144 = vmatprep.subr.bf16.mxu0 0
      %1145 = vmatpush1.bf16.msra.mxu0 0
      %1146 = vmatprep.subr.bf16.mxu0 0
      %1147 = vmatpush1.bf16.msra.mxu0 0
      %1148 = vmatprep.subr.bf16.mxu0 0
      %1149 = vmatpush1.bf16.msra.mxu0 0
      %1150 = vmatprep.mubr.bf16.mxu0 0
      %1151 = vmatmul.mubr.bf16.gmra.mrb[0].mxu0 %v1016
      %v1152 = vpop.f32.mrb[0].mxu0
      %v1153 = vadd.f32 %v937, %v1152
      %v1154 = vpop.f32.mrb[0].mxu0
      %v1155 = vadd.f32 %v937, %v1154
      %v1156 = vpop.f32.mrb[0].mxu0
      %v1157 = vpop.f32.mrb[0].mxu0
      %1158 = vdwg.mxu0
      %1160 = vrot.lane.b32.xlu0 %v1071, 109
      %v1161 = vpop.permute.xlu0 %1160
      %vm1163 = vcmask 125952
      %1164 = vst.msk [vmem:[#allocation4] sm:$0xf] %vm1163, %v1161
      %1165 = vrot.lane.b32.xlu0 %v1071, 107
      %v1166 = vpop.permute.xlu0 %1165
      %vm1168 = vcmask 257152
      %1169 = vst.msk [vmem:[#allocation4] sm:$0xf] %vm1168, %v1166
      %1170 = vrot.lane.b32.xlu0 %v1071, 105
      %v1171 = vpop.permute.xlu0 %1170
      %vm1173 = vcmask 388352
      %1174 = vst.msk [vmem:[#allocation4] sm:$0xf] %vm1173, %v1171
      %1175 = vrot.lane.b32.xlu0 %v1071, 103
      %v1176 = vpop.permute.xlu0 %1175
      %vm1178 = vcmask 519552
      %1179 = vst.msk [vmem:[#allocation4] sm:$0xf] %vm1178, %v1176
      %1180 = vrot.lane.b32.xlu0 %v1071, 101
      %v1181 = vpop.permute.xlu0 %1180
      %vm1183 = vcmask 650752
      %1184 = vst.msk [vmem:[#allocation4] sm:$0xf] %vm1183, %v1181
      %1185 = vrot.lane.b32.xlu0 %v1071, 99
      %v1186 = vpop.permute.xlu0 %1185
      %vm1188 = vcmask 781952
      %1189 = vst.msk [vmem:[#allocation4] sm:$0xf] %vm1188, %v1186
      %v1191 = vcombine.low %v1071, %v1073
      %1192 = vrot.lane.b32.xlu0 %v1191, 97
      %v1193 = vpop.permute.xlu0 %1192
      %v1194 = vrot.slane %v1193, 4
      %vm1195 = vcmask 793600
      %v1196 = vsel %vm1195, %v1193, %v1194
      %vm1198 = vcmask 913152
      %1199 = vst.msk [vmem:[#allocation4] sm:$0xf] %vm1198, %v1196
      %1200 = vrot.lane.b32.xlu0 %v1073, 95
      %v1201 = vpop.permute.xlu0 %1200
      %vm1203 = vcmask 1044352
      %1204 = vst.msk [vmem:[#allocation4] sm:$0xf] %vm1203, %v1201
      %1205 = vrot.lane.b32.xlu0 %v1073, 93
      %v1206 = vpop.permute.xlu0 %1205
      %1208 = vst.msk [vmem:[#allocation4 + $0x4] sm:$0xf] %vm1163, %v1206
      %1209 = vrot.lane.b32.xlu0 %v1073, 91
      %v1210 = vpop.permute.xlu0 %1209
      %1212 = vst.msk [vmem:[#allocation4 + $0x4] sm:$0xf] %vm1168, %v1210
      %1213 = vrot.lane.b32.xlu0 %v1073, 89
      %v1214 = vpop.permute.xlu0 %1213
      %1216 = vst.msk [vmem:[#allocation4 + $0x4] sm:$0xf] %vm1173, %v1214
      %1217 = vrot.lane.b32.xlu0 %v1073, 87
      %v1218 = vpop.permute.xlu0 %1217
      %1220 = vst.msk [vmem:[#allocation4 + $0x4] sm:$0xf] %vm1178, %v1218
      %1221 = vrot.lane.b32.xlu0 %v1073, 85
      %v1222 = vpop.permute.xlu0 %1221
      %1224 = vst.msk [vmem:[#allocation4 + $0x4] sm:$0xf] %vm1183, %v1222
      %v1226 = vcombine.low %v1073, %v1112
      %1227 = vrot.lane.b32.xlu0 %v1226, 83
      %v1228 = vpop.permute.xlu0 %1227
      %v1229 = vrot.slane %v1228, 4
      %vm1230 = vcmask 678912
      %v1231 = vsel %vm1230, %v1228, %v1229
      %1233 = vst.msk [vmem:[#allocation4 + $0x4] sm:$0xf] %vm1188, %v1231
      %1234 = vrot.lane.b32.xlu0 %v1112, 81
      %v1235 = vpop.permute.xlu0 %1234
      %1237 = vst.msk [vmem:[#allocation4 + $0x4] sm:$0xf] %vm1198, %v1235
      %1238 = vrot.lane.b32.xlu0 %v1112, 79
      %v1239 = vpop.permute.xlu0 %1238
      %1241 = vst.msk [vmem:[#allocation4 + $0x4] sm:$0xf] %vm1203, %v1239
      %v1243 = vcombine.low %v1112, %v1114
      %1244 = vrot.lane.b32.xlu0 %v1243, 3
      %v1245 = vpop.permute.xlu0 %1244
      %v1246 = vrot.slane %v1245, 4
      %vm1247 = vcmask 23552
      %v1248 = vsel %vm1247, %v1245, %v1246
      %1250 = vst.msk [vmem:[#allocation4 + $0x8] sm:$0xf] %vm1163, %v1248
      %1251 = vrot.lane.b32.xlu0 %v1114, 1
      %v1252 = vpop.permute.xlu0 %1251
      %1254 = vst.msk [vmem:[#allocation4 + $0x8] sm:$0xf] %vm1168, %v1252
      %1255 = vrot.lane.b32.xlu0 %v1114, 127
      %v1256 = vpop.permute.xlu0 %1255
      %1258 = vst.msk [vmem:[#allocation4 + $0x8] sm:$0xf] %vm1173, %v1256
      %1259 = vrot.lane.b32.xlu0 %v1114, 125
      %v1260 = vpop.permute.xlu0 %1259
      %1262 = vst.msk [vmem:[#allocation4 + $0x8] sm:$0xf] %vm1178, %v1260
      %1263 = vrot.lane.b32.xlu0 %v1114, 123
      %v1264 = vpop.permute.xlu0 %1263
      %1266 = vst.msk [vmem:[#allocation4 + $0x8] sm:$0xf] %vm1183, %v1264
      %1267 = vrot.lane.b32.xlu0 %v1114, 121
      %v1268 = vpop.permute.xlu0 %1267
      %1270 = vst.msk [vmem:[#allocation4 + $0x8] sm:$0xf] %vm1188, %v1268
      %1271 = vrot.lane.b32.xlu0 %v1114, 119
      %v1272 = vpop.permute.xlu0 %1271
      %1274 = vst.msk [vmem:[#allocation4 + $0x8] sm:$0xf] %vm1198, %v1272
      %v1276 = vcombine.low %v1114, %v1153
      %1277 = vrot.lane.b32.xlu0 %v1276, 117
      %v1278 = vpop.permute.xlu0 %1277
      %v1279 = vrot.slane %v1278, 4
      %vm1280 = vcmask 957440
      %v1281 = vsel %vm1280, %v1278, %v1279
      %1283 = vst.msk [vmem:[#allocation4 + $0x8] sm:$0xf] %vm1203, %v1281
      %1284 = vrot.lane.b32.xlu0 %v1153, 115
      %v1285 = vpop.permute.xlu0 %1284
      %1287 = vst.msk [vmem:[#allocation4 + $0xc] sm:$0xf] %vm1163, %v1285
      %1288 = vrot.lane.b32.xlu0 %v1153, 113
      %v1289 = vpop.permute.xlu0 %1288
      %1291 = vst.msk [vmem:[#allocation4 + $0xc] sm:$0xf] %vm1168, %v1289
      %1292 = vrot.lane.b32.xlu0 %v1153, 111
      %v1293 = vpop.permute.xlu0 %1292
      %1295 = vst.msk [vmem:[#allocation4 + $0xc] sm:$0xf] %vm1173, %v1293
      %1296 = vrot.lane.b32.xlu0 %v1153, 109
      %v1297 = vpop.permute.xlu0 %1296
      %1299 = vst.msk [vmem:[#allocation4 + $0xc] sm:$0xf] %vm1178, %v1297
      %1300 = vrot.lane.b32.xlu0 %v1153, 107
      %v1301 = vpop.permute.xlu0 %1300
      %1303 = vst.msk [vmem:[#allocation4 + $0xc] sm:$0xf] %vm1183, %v1301
      %1304 = vrot.lane.b32.xlu0 %v1153, 105
      %v1305 = vpop.permute.xlu0 %1304
      %1307 = vst.msk [vmem:[#allocation4 + $0xc] sm:$0xf] %vm1188, %v1305
      %v1309 = vcombine.low %v1153, %v1155
      %1310 = vrot.lane.b32.xlu0 %v1309, 103
      %v1311 = vpop.permute.xlu0 %1310
      %v1312 = vrot.slane %v1311, 4
      %vm1313 = vcmask 842752
      %v1314 = vsel %vm1313, %v1311, %v1312
      %1316 = vst.msk [vmem:[#allocation4 + $0xc] sm:$0xf] %vm1198, %v1314
      %1317 = vrot.lane.b32.xlu0 %v1155, 101
      %v1318 = vpop.permute.xlu0 %1317
      %1320 = vst.msk [vmem:[#allocation4 + $0xc] sm:$0xf] %vm1203, %v1318
      %v1321 = vld [vmem:[#allocation4] sm:$0xff]
      %v1322 = vld [vmem:[#allocation4 + $0x8] sm:$0xff]
      %v1325 = vcombine.high %v1321, %v1321
      %v1326 = vcombine.high %v1322, %v1322
      %vm1329 = vcmask 1043456
      %v1330 = vsel %vm1329, %v1321, 0.0
      %v1331 = vsel %vm1329, %v1325, 0.0
      %v1332 = vadd.f32 %v1330, %v1331
      %v1333 = vsel %vm1329, %v1322, 0.0
      %v1334 = vadd.f32 %v1332, %v1333
      %v1335 = vsel %vm1329, %v1326, 0.0
      %v1336 = vadd.f32 %v1334, %v1335
      %1337 = vadd.xlane.f32.xlu0 %v1336
      %v1338 = vpop.xlane.xlu0 %1337
      %vm1339 = vcmask 3072
      %1340 = vst.msk [vmem:[%s214] sm:$0xf] %vm1339, %v1338
      %v1341 = vmul.f32 %v1321, %v1321
      %v1342 = vmul.f32 %v1322, %v1322
      %v1345 = vcombine.high %v1341, %v1341
      %v1346 = vcombine.high %v1342, %v1342
      %v1349 = vsel %vm1329, %v1341, 0.0
      %v1350 = vsel %vm1329, %v1345, 0.0
      %v1351 = vadd.f32 %v1349, %v1350
      %v1352 = vsel %vm1329, %v1342, 0.0
      %v1353 = vadd.f32 %v1351, %v1352
      %v1354 = vsel %vm1329, %v1346, 0.0
      %v1355 = vadd.f32 %v1353, %v1354
      %1356 = vadd.xlane.f32.xlu0 %v1355
      %v1357 = vpop.xlane.xlu0 %1356
      %vm1358 = vcmask 11272
      %1359 = vst.msk [vmem:[%s214] sm:$0xf] %vm1358, %v1357
      %v1360 = vpack.c.bf16 %v1321, %v1321
      %v1361 = vpack.c.bf16 %v1325, %v1325
      %v1362 = vpack.c.bf16 %v1322, %v1322
      %v1363 = vpack.c.bf16 %v1326, %v1326
      %v1368 = vcombine.low %v1360, %v1361
      %v1369 = vcombine.low %v1362, %v1363
      %v1371 = vunpack.c.l.s4 1983009808
      %v1372 = vunpack.c.0.s8 %v1371
      %v1373 = vlaneseq
      %v1374 = vshrl.u32 %v1373, 7
      %v1375 = vsub.s32 %v1372, %v1374
      %v1376 = vrot.slane %v1368, %v1375
      %v1378 = vunpack.c.l.s4 1983009808
      %v1379 = vunpack.c.0.s8 %v1378
      %v1380 = vlaneseq
      %v1381 = vshrl.u32 %v1380, 7
      %v1382 = vsub.s32 %v1379, %v1381
      %v1383 = vrot.slane %v1369, %v1382
      %v1384 = vcombine.low %v1376, %v1383
      %1386 = vst [vmem:[%s209] sm:$0xff] %v1384
      %s1387 = smul.u32 4, %s16
      %p1388 = scmp.lt.s32.totalorder %s1387, 7
      %s1389 = scalar_select %p1388, %s1387, 7
      %s1390 = smul.addr %s1389, 2
      %s1391 = scalar_lea.vmem %s3, %s1390
      %p1392 = scmp.lt.s32.totalorder %s16, 1
      %s1393 = scalar_select %p1392, %s16, 1
      %s1394 = smul.addr %s1393, 4
      %s1395 = scalar_lea.vmem %s4, %s1394
      // Predicated region
      $region33: #{residual_block_pallas.3} parent=31 // pred_check
        %p1396 = pneg %p102
      $region34: #{residual_block_pallas.3} parent=31 // pred_check_branch
        %1398 = sbr.rel (%p1396) target = $region36
      $region35: #{residual_block_pallas.3} parent=31 // pred_region
        %s1399 = smul.u32 4, %s16
      $region36: #{residual_block_pallas.3} parent=31 // pred_fallthru
        _
      // Predicated region
      $region37: #{residual_block_pallas.3} parent=31 // pred_check
        %p1400 = pneg %p128
      $region38: #{residual_block_pallas.3} parent=31 // pred_check_branch
        %1402 = sbr.rel (%p1400) target = $region40
      $region39: #{residual_block_pallas.3} parent=31 // pred_region
        _
      $region40: #{residual_block_pallas.3} parent=31 // pred_fallthru
        _
    $region32: #{residual_block_pallas.3} parent=5 // pred_fallthru
      _
    %p1403 = scmp.le.s32.totalorder 2, %s11
    // Predicated region
    $region41: #{residual_block_pallas.3} parent=5 // pred_check
      %p1404 = pneg %p1403
    $region42: #{residual_block_pallas.3} parent=5 // pred_check_branch
      %1406 = sbr.rel (%p1404) target = $region44
    $region43: #{residual_block_pallas.3} parent=5 // pred_region
      %s1407 = ssub.s32 %s11, 2
      // Predicated region
      $region45: #{residual_block_pallas.3} parent=43 // pred_check
        %p1408 = pneg %p108
      $region46: #{residual_block_pallas.3} parent=43 // pred_check_branch
        %1410 = sbr.rel (%p1408) target = $region48
      $region47: #{residual_block_pallas.3} parent=43 // pred_region
        %s1411 = smul.u32 4, %s17
        %p1412 = scmp.lt.s32.totalorder %s1411, 7
        %s1413 = scalar_select %p1412, %s1411, 7
        %s1414 = smul.addr %s1413, 2
        %s1415 = scalar_lea.vmem %s3, %s1414
      $region48: #{residual_block_pallas.3} parent=43 // pred_fallthru
        _
      // Predicated region
      $region49: #{residual_block_pallas.3} parent=43 // pred_check
        %p1416 = pneg %p134
      $region50: #{residual_block_pallas.3} parent=43 // pred_check_branch
        %1418 = sbr.rel (%p1416) target = $region52
      $region51: #{residual_block_pallas.3} parent=43 // pred_region
        %p1419 = scmp.lt.s32.totalorder %s17, 1
        %s1420 = scalar_select %p1419, %s17, 1
        %s1421 = smul.addr %s1420, 4
        %s1422 = scalar_lea.vmem %s4, %s1421
      $region52: #{residual_block_pallas.3} parent=43 // pred_fallthru
        _
    $region44: #{residual_block_pallas.3} parent=5 // pred_fallthru
      _
  $region6: #{residual_block_pallas.3} parent=0 // loop_footer
    %s15 = sadd.s32 1, %s11
  $region7: #{residual_block_pallas.3} parent=0 // loop_footer_branch
    %10 = sbr.rel target = $region3
  $region8: #{residual_block_pallas.3} parent=0 // loop_exit
    _

// kernel: residual_block_pallas.4
$region0: #{residual_block_pallas.4}
  #allocation0 [shape = 'u32[]', space=smem, size = 0x4, offset = 0x4, fixed_abs, tag = 'smem constant byte address 0x4 - core index']
  #allocation1 [shape = 'u32[144,128]{1,0:T(1,128)}', space=vmem, size = 0x12000, scoped, tag = 'internal scratch']
  #allocation2 [shape = 'bf16[4,724]{1,0:T(4,128)(2,1)}', space=vmem, size = 0x1800, scoped, tag = 'scratch operand']
  #allocation3 [shape = 'bf16[36,686]{1,0:T(8,128)(2,1)}', space=vmem, size = 0xf000, scoped, tag = 'scratch operand']
  #allocation4 [shape = 'f32[4,512]{1,0:T(4,128)}', space=vmem, size = 0x2000, scoped, tag = 'scratch operand']
  %s0 = inlined_call_operand.vmem [shape: bf16[4,1024], index: 0, kind: input, shape index: {}]
  %s1 = inlined_call_operand.vmem [shape: bf16[4,36], index: 1, kind: input, shape index: {}]
  %s2 = inlined_call_operand.vmem [shape: f32[4,1], index: 2, kind: input, shape index: {}]
  %s3 = inlined_call_operand.vmem [shape: f32[4,1], index: 3, kind: input, shape index: {}]
  %s4 = inlined_call_operand.vmem [shape: f32[4,1], index: 4, kind: input, shape index: {}]
  %s5 = inlined_call_operand.vmem [shape: bf16[4,1024], index: 5, kind: output, shape index: {0}]
  %s6 = inlined_call_operand.vmem [shape: f32[2,4,2], index: 6, kind: output, shape index: {1}]
  %7 = xla_tuple %s5, %s6
  %s8 = sld [smem:[#allocation0]]
  $region61: #{residual_block_pallas.4} parent=0
    _
  %s10 = ssub.s32 1, %s8
  %s11 = scalar_select 0, %s10, %s8
  loop: start=0, step=1, limit=4
  $region2: #{residual_block_pallas.4} parent=0 // loop_pre_header
    _
  $region3: #{residual_block_pallas.4} parent=0 // loop_header
    %s13 = sphi 0, %s17
    %p14 = scmp.ge.s32.totalorder %s13, 4
    %s23 = sphi 0, %s25
    %s26 = sphi 0, %s23
    %s27 = sphi 0, %s26
    %s43 = sphi 0, %s27
    %s47 = sphi 0, %s47
    %s49 = sphi 0, %s47
    %s50 = sphi 0, %s49
    %s64 = sphi 0, %s50
    %s68 = sphi 0, %s68
    %s70 = sphi 0, %s68
    %s71 = sphi 0, %s70
    %s85 = sphi 0, %s71
    %s89 = sphi 0, %s89
    %s91 = sphi 0, %s89
    %s92 = sphi 0, %s91
    %s106 = sphi 0, %s92
    %s110 = sphi 0, %s110
    %s112 = sphi 0, %s110
    %s113 = sphi 0, %s112
    %s127 = sphi 0, %s113
    %s133 = sphi 0, %s135
    %s136 = sphi 0, %s133
    %s137 = sphi 0, %s136
    %s153 = sphi 0, %s137
    %s159 = sphi 0, %s161
    %s162 = sphi 0, %s159
    %s163 = sphi 0, %s162
    %s179 = sphi 0, %s163
  $region4: #{residual_block_pallas.4} parent=0 // loop_header_branch
    %16 = sbr.rel (%p14) target = $region8
  $region5: #{residual_block_pallas.4} parent=0 // loop_body
    %s18 = ssub.s32 %s13, 1
    %s19 = ssub.s32 %s13, 2
    %s20 = sadd.s32 %s13, 1
    %s21 = ssub.s32 %s13, %s20
    %p22 = scmp.eq.s32.totalorder %s21, 0
    %s24 = sadd.s32 %s23, 1
    %s25 = scalar_select %p22, %s23, %s24
    %p28 = pneg %p22
    %p29 = scmp.eq.s32.totalorder %s13, 1
    %p30 = por %p28, %p29
    %p31 = scmp.ne.s32.totalorder %s23, %s26
    %p32 = scmp.eq.s32.totalorder %s13, 0
    %p33 = por %p31, %p32
    %p34 = scmp.ne.s32.totalorder %s23, %s26
    %p35 = scmp.eq.s32.totalorder %s18, 1
    %p36 = por %p34, %p35
    %p37 = scmp.ne.s32.totalorder %s26, %s27
    %p38 = scmp.eq.s32.totalorder %s18, 0
    %p39 = por %p37, %p38
    %p40 = scmp.ne.s32.totalorder %s26, %s27
    %p41 = scmp.eq.s32.totalorder %s19, 1
    %p42 = por %p40, %p41
    %p44 = scmp.ne.s32.totalorder %s27, %s43
    %p45 = scmp.eq.s32.totalorder %s19, 0
    %p46 = por %p44, %p45
    %s48 = sadd.s32 %s47, 1
    %p51 = scmp.eq.s32.totalorder %s13, 1
    %p52 = scmp.ne.s32.totalorder %s47, %s49
    %p53 = scmp.eq.s32.totalorder %s13, 0
    %p54 = por %p52, %p53
    %p55 = scmp.ne.s32.totalorder %s47, %s49
    %p56 = scmp.eq.s32.totalorder %s18, 1
    %p57 = por %p55, %p56
    %p58 = scmp.ne.s32.totalorder %s49, %s50
    %p59 = scmp.eq.s32.totalorder %s18, 0
    %p60 = por %p58, %p59
    %p61 = scmp.ne.s32.totalorder %s49, %s50
    %p62 = scmp.eq.s32.totalorder %s19, 1
    %p63 = por %p61, %p62
    %p65 = scmp.ne.s32.totalorder %s50, %s64
    %p66 = scmp.eq.s32.totalorder %s19, 0
    %p67 = por %p65, %p66
    %s69 = sadd.s32 %s68, 1
    %p72 = scmp.eq.s32.totalorder %s13, 1
    %p73 = scmp.ne.s32.totalorder %s68, %s70
    %p74 = scmp.eq.s32.totalorder %s13, 0
    %p75 = por %p73, %p74
    %p76 = scmp.ne.s32.totalorder %s68, %s70
    %p77 = scmp.eq.s32.totalorder %s18, 1
    %p78 = por %p76, %p77
    %p79 = scmp.ne.s32.totalorder %s70, %s71
    %p80 = scmp.eq.s32.totalorder %s18, 0
    %p81 = por %p79, %p80
    %p82 = scmp.ne.s32.totalorder %s70, %s71
    %p83 = scmp.eq.s32.totalorder %s19, 1
    %p84 = por %p82, %p83
    %p86 = scmp.ne.s32.totalorder %s71, %s85
    %p87 = scmp.eq.s32.totalorder %s19, 0
    %p88 = por %p86, %p87
    %s90 = sadd.s32 %s89, 1
    %p93 = scmp.eq.s32.totalorder %s13, 1
    %p94 = scmp.ne.s32.totalorder %s89, %s91
    %p95 = scmp.eq.s32.totalorder %s13, 0
    %p96 = por %p94, %p95
    %p97 = scmp.ne.s32.totalorder %s89, %s91
    %p98 = scmp.eq.s32.totalorder %s18, 1
    %p99 = por %p97, %p98
    %p100 = scmp.ne.s32.totalorder %s91, %s92
    %p101 = scmp.eq.s32.totalorder %s18, 0
    %p102 = por %p100, %p101
    %p103 = scmp.ne.s32.totalorder %s91, %s92
    %p104 = scmp.eq.s32.totalorder %s19, 1
    %p105 = por %p103, %p104
    %p107 = scmp.ne.s32.totalorder %s92, %s106
    %p108 = scmp.eq.s32.totalorder %s19, 0
    %p109 = por %p107, %p108
    %s111 = sadd.s32 %s110, 1
    %p114 = scmp.eq.s32.totalorder %s13, 1
    %p115 = scmp.ne.s32.totalorder %s110, %s112
    %p116 = scmp.eq.s32.totalorder %s13, 0
    %p117 = por %p115, %p116
    %p118 = scmp.ne.s32.totalorder %s110, %s112
    %p119 = scmp.eq.s32.totalorder %s18, 1
    %p120 = por %p118, %p119
    %p121 = scmp.ne.s32.totalorder %s112, %s113
    %p122 = scmp.eq.s32.totalorder %s18, 0
    %p123 = por %p121, %p122
    %p124 = scmp.ne.s32.totalorder %s112, %s113
    %p125 = scmp.eq.s32.totalorder %s19, 1
    %p126 = por %p124, %p125
    %p128 = scmp.ne.s32.totalorder %s113, %s127
    %p129 = scmp.eq.s32.totalorder %s19, 0
    %p130 = por %p128, %p129
    %s131 = ssub.s32 %s13, %s20
    %p132 = scmp.eq.s32.totalorder %s131, 0
    %s134 = sadd.s32 %s133, 1
    %s135 = scalar_select %p132, %s133, %s134
    %p138 = pneg %p132
    %p139 = scmp.eq.s32.totalorder %s13, 1
    %p140 = por %p138, %p139
    %p141 = scmp.ne.s32.totalorder %s133, %s136
    %p142 = scmp.eq.s32.totalorder %s13, 0
    %p143 = por %p141, %p142
    %p144 = scmp.ne.s32.totalorder %s133, %s136
    %p145 = scmp.eq.s32.totalorder %s18, 1
    %p146 = por %p144, %p145
    %p147 = scmp.ne.s32.totalorder %s136, %s137
    %p148 = scmp.eq.s32.totalorder %s18, 0
    %p149 = por %p147, %p148
    %p150 = scmp.ne.s32.totalorder %s136, %s137
    %p151 = scmp.eq.s32.totalorder %s19, 1
    %p152 = por %p150, %p151
    %p154 = scmp.ne.s32.totalorder %s137, %s153
    %p155 = scmp.eq.s32.totalorder %s19, 0
    %p156 = por %p154, %p155
    %s157 = ssub.s32 %s13, %s20
    %p158 = scmp.eq.s32.totalorder %s157, 0
    %s160 = sadd.s32 %s159, 1
    %s161 = scalar_select %p158, %s159, %s160
    %p164 = pneg %p158
    %p165 = scmp.eq.s32.totalorder %s13, 1
    %p166 = por %p164, %p165
    %p167 = scmp.ne.s32.totalorder %s159, %s162
    %p168 = scmp.eq.s32.totalorder %s13, 0
    %p169 = por %p167, %p168
    %p170 = scmp.ne.s32.totalorder %s159, %s162
    %p171 = scmp.eq.s32.totalorder %s18, 1
    %p172 = por %p170, %p171
    %p173 = scmp.ne.s32.totalorder %s162, %s163
    %p174 = scmp.eq.s32.totalorder %s18, 0
    %p175 = por %p173, %p174
    %p176 = scmp.ne.s32.totalorder %s162, %s163
    %p177 = scmp.eq.s32.totalorder %s19, 1
    %p178 = por %p176, %p177
    %p180 = scmp.ne.s32.totalorder %s163, %s179
    %p181 = scmp.eq.s32.totalorder %s19, 0
    %p182 = por %p180, %p181
    %p183 = scmp.le.s32.totalorder 1, %s13
    %p184 = scmp.lt.s32.totalorder %s13, 3
    %p185 = pnand %p183, %p184
    %p186 = pneg %p185
    // Predicated region
    $region9: #{residual_block_pallas.4} parent=5 // pred_check
      _
    $region10: #{residual_block_pallas.4} parent=5 // pred_check_branch
      %188 = sbr.rel (%p185) target = $region12
    $region11: #{residual_block_pallas.4} parent=5 // pred_region
      %s189 = ssub.s32 %s13, 1
      // Predicated region
      $region13: #{residual_block_pallas.4} parent=11 // pred_check
        %p190 = pneg %p60
      $region14: #{residual_block_pallas.4} parent=11 // pred_check_branch
        %192 = sbr.rel (%p190) target = $region16
      $region15: #{residual_block_pallas.4} parent=11 // pred_region
        _
      $region16: #{residual_block_pallas.4} parent=11 // pred_fallthru
        _
      // Predicated region
      $region17: #{residual_block_pallas.4} parent=11 // pred_check
        %p193 = pneg %p81
      $region18: #{residual_block_pallas.4} parent=11 // pred_check_branch
        %195 = sbr.rel (%p193) target = $region20
      $region19: #{residual_block_pallas.4} parent=11 // pred_region
        _
      $region20: #{residual_block_pallas.4} parent=11 // pred_fallthru
        _
      // Predicated region
      $region21: #{residual_block_pallas.4} parent=11 // pred_check
        %p196 = pneg %p102
      $region22: #{residual_block_pallas.4} parent=11 // pred_check_branch
        %198 = sbr.rel (%p196) target = $region24
      $region23: #{residual_block_pallas.4} parent=11 // pred_region
        _
      $region24: #{residual_block_pallas.4} parent=11 // pred_fallthru
        _
      // Predicated region
      $region25: #{residual_block_pallas.4} parent=11 // pred_check
        %p199 = pneg %p123
      $region26: #{residual_block_pallas.4} parent=11 // pred_check_branch
        %201 = sbr.rel (%p199) target = $region28
      $region27: #{residual_block_pallas.4} parent=11 // pred_region
        _
      $region28: #{residual_block_pallas.4} parent=11 // pred_fallthru
        _
    $region12: #{residual_block_pallas.4} parent=5 // pred_fallthru
      _
    %p202 = scmp.lt.s32.totalorder %s13, 2
    // Predicated region
    $region29: #{residual_block_pallas.4} parent=5 // pred_check
      %p203 = pneg %p202
    $region30: #{residual_block_pallas.4} parent=5 // pred_check_branch
      %205 = sbr.rel (%p203) target = $region32
    $region31: #{residual_block_pallas.4} parent=5 // pred_region
      // Predicated region
      $region33: #{residual_block_pallas.4} parent=31 // pred_check
        %p206 = pneg %p33
      $region34: #{residual_block_pallas.4} parent=31 // pred_check_branch
        %208 = sbr.rel (%p206) target = $region36
      $region35: #{residual_block_pallas.4} parent=31 // pred_region
        %s209 = smul.u32 4, %s13
        %p210 = scmp.lt.s32.totalorder %s209, 7
        %s211 = scalar_select %p210, %s209, 7
        %s212 = smul.addr %s211, 2
        %s213 = scalar_lea.vmem %s0, %s212
        %s214 = smul.u32 4, %s13
      $region36: #{residual_block_pallas.4} parent=31 // pred_fallthru
        _
    $region32: #{residual_block_pallas.4} parent=5 // pred_fallthru
      _
    %p215 = scmp.le.s32.totalorder 1, %s13
    %p216 = scmp.lt.s32.totalorder %s13, 3
    %p217 = pnand %p215, %p216
    %p218 = pneg %p217
    // Predicated region
    $region37: #{residual_block_pallas.4} parent=5 // pred_check
      _
    $region38: #{residual_block_pallas.4} parent=5 // pred_check_branch
      %220 = sbr.rel (%p217) target = $region40
    $region39: #{residual_block_pallas.4} parent=5 // pred_region
      %s221 = ssub.s32 %s13, 1
      %s222 = smul.u32 4, %s18
      %p223 = scmp.lt.s32.totalorder %s222, 7
      %s224 = scalar_select %p223, %s222, 7
      %s225 = smul.addr %s224, 2
      %s226 = scalar_lea.vmem %s0, %s225
      %p227 = pneg %p39
      %p228 = pneg %p36
      %p229 = pneg %p60
      %p230 = pneg %p57
      %p231 = pneg %p81
      %p232 = pneg %p78
      %p233 = pneg %p102
      %p234 = pneg %p99
      %p235 = pneg %p123
      %p236 = pneg %p120
      %p237 = pneg %p149
      %p238 = pneg %p146
      %s239 = smul.u32 4, %s18
      %p240 = scmp.lt.s32.totalorder %s239, 7
      %s241 = scalar_select %p240, %s239, 7
      %s242 = smul.addr %s241, 2
      %s243 = scalar_lea.vmem %s5, %s242
      %p244 = pneg %p175
      %p245 = pneg %p172
      %p246 = scmp.lt.s32.totalorder %s18, 1
      %s247 = scalar_select %p246, %s18, 1
      %s248 = smul.addr %s247, 4
      %s249 = scalar_lea.vmem %s6, %s248
      %s250 = smul.u32 4, %s18
      %p251 = scmp.lt.s32.totalorder %s250, 7
      %s252 = scalar_select %p251, %s250, 7
      %s253 = smul.addr %s252, 2
      %s254 = scalar_lea.vmem %s0, %s253
      %s255 = smul.u32 4, %s18
      %s256 = smul.u32 4, %s18
      %p257 = scmp.lt.s32.totalorder %s256, 7
      %s258 = scalar_select %p257, %s256, 7
      %s259 = smul.addr %s258, 2
      %s260 = scalar_lea.vmem %s5, %s259
      %s261 = smul.u32 4, %s18
      %p262 = scmp.lt.s32.totalorder %s18, 1
      %s263 = scalar_select %p262, %s18, 1
      %s264 = smul.addr %s263, 4
      %s265 = scalar_lea.vmem %s6, %s264
      %v267 = vld [vmem:[%s254] sm:$0xff]
      %v268 = vunpack.c.l.bf16 %v267
      %v269 = vunpack.c.h.bf16 %v267
      %v270 = vld [vmem:[%s3] sm:$0xf]
      %272 = vset.pattern.permute.xlu0 0
      %273 = vperm.xlu0 %272, %v270
      %v274 = vpop.permute.xlu0 %273
      %v276 = vunpack.c.l.s4 839922192
      %v277 = vunpack.c.0.s8 %v276
      %v278 = vlaneseq
      %v279 = vshrl.u32 %v278, 7
      %v280 = vsub.s32 %v277, %v279
      %v281 = vrot.slane %v274, %v280
      %v283 = vmul.f32 %v268, %v281
      %v284 = vmul.f32 %v269, %v281
      %v285 = vld [vmem:[%s4] sm:$0xf]
      %287 = vset.pattern.permute.xlu0 0
      %288 = vperm.xlu0 %287, %v285
      %v289 = vpop.permute.xlu0 %288
      %v291 = vunpack.c.l.s4 839922192
      %v292 = vunpack.c.0.s8 %v291
      %v293 = vlaneseq
      %v294 = vshrl.u32 %v293, 7
      %v295 = vsub.s32 %v292, %v294
      %v296 = vrot.slane %v289, %v295
      %v298 = vadd.f32 %v283, %v296
      %v299 = vadd.f32 %v284, %v296
      %v300 = vmax.f32 %v298, 0.0
      %v301 = vmax.f32 %v299, 0.0
      %v304 = vcombine.high %v300, %v300
      %v305 = vcombine.high %v301, %v301
      %v308 = vpack.c.bf16 %v300, %v300
      %v309 = vpack.c.bf16 %v304, %v304
      %v310 = vpack.c.bf16 %v301, %v301
      %v311 = vpack.c.bf16 %v305, %v305
      %vm312 = vcmask 304128
      %313 = vst.msk [vmem:[#allocation2] sm:$0x3] %vm312, 0
      %vm314 = vcmask 452016
      %315 = vst.msk [vmem:[#allocation2] sm:$0x3] %vm314, 0
      %vm316 = vcmask 599616
      %317 = vst.msk [vmem:[#allocation2] sm:$0x3] %vm316, 0
      %vm318 = vcmask 747216
      %319 = vst.msk [vmem:[#allocation2] sm:$0x3] %vm318, 0
      %vm320 = vcmask 894816
      %321 = vst.msk [vmem:[#allocation2] sm:$0x3] %vm320, 0
      %vm322 = vcmask 1042416
      %323 = vst.msk [vmem:[#allocation2] sm:$0x3] %vm322, 0
      %vm324 = vcmask 140416
      %325 = vst.msk [vmem:[#allocation2 + $0x2] sm:$0x3] %vm324, 0
      %vm326 = vcmask 288016
      %327 = vst.msk [vmem:[#allocation2 + $0x2] sm:$0x3] %vm326, 0
      %vm328 = vcmask 435616
      %329 = vst.msk [vmem:[#allocation2 + $0x2] sm:$0x3] %vm328, 0
      %vm330 = vcmask 583216
      %331 = vst.msk [vmem:[#allocation2 + $0x2] sm:$0x3] %vm330, 0
      %vm332 = vcmask 730816
      %333 = vst.msk [vmem:[#allocation2 + $0x2] sm:$0x3] %vm332, 0
      %vm334 = vcmask 878416
      %335 = vst.msk [vmem:[#allocation2 + $0x2] sm:$0x3] %vm334, 0
      %vm336 = vcmask 1026016
      %337 = vst.msk [vmem:[#allocation2 + $0x2] sm:$0x3] %vm336, 0
      %vm338 = vcmask 124016
      %339 = vst.msk [vmem:[#allocation2 + $0x4] sm:$0x3] %vm338, 0
      %vm340 = vcmask 271616
      %341 = vst.msk [vmem:[#allocation2 + $0x4] sm:$0x3] %vm340, 0
      %vm342 = vcmask 419216
      %343 = vst.msk [vmem:[#allocation2 + $0x4] sm:$0x3] %vm342, 0
      %vm344 = vcmask 1041952
      %vm345 = vcmask 125954
      %vm346 = vmor %vm345, %vm344
      %347 = vst.msk [vmem:[#allocation2 + $0x4] sm:$0xf] %vm346, 0
      %348 = vst.msk [vmem:[#allocation2 + $0x6] sm:$0x3] %vm340, 0
      %349 = vst.msk [vmem:[#allocation2 + $0x6] sm:$0x3] %vm342, 0
      %vm350 = vcmask 566816
      %351 = vst.msk [vmem:[#allocation2 + $0x6] sm:$0x3] %vm350, 0
      %vm352 = vcmask 714416
      %353 = vst.msk [vmem:[#allocation2 + $0x6] sm:$0x3] %vm352, 0
      %vm354 = vcmask 862016
      %355 = vst.msk [vmem:[#allocation2 + $0x6] sm:$0x3] %vm354, 0
      %vm356 = vcmask 1009616
      %357 = vst.msk [vmem:[#allocation2 + $0x6] sm:$0x3] %vm356, 0
      %vm358 = vcmask 107616
      %359 = vst.msk [vmem:[#allocation2 + $0x8] sm:$0x3] %vm358, 0
      %vm360 = vcmask 255216
      %361 = vst.msk [vmem:[#allocation2 + $0x8] sm:$0x3] %vm360, 0
      %vm362 = vcmask 402816
      %363 = vst.msk [vmem:[#allocation2 + $0x8] sm:$0x3] %vm362, 0
      %vm364 = vcmask 550416
      %365 = vst.msk [vmem:[#allocation2 + $0x8] sm:$0x3] %vm364, 0
      %vm366 = vcmask 698016
      %367 = vst.msk [vmem:[#allocation2 + $0x8] sm:$0x3] %vm366, 0
      %vm368 = vcmask 845616
      %369 = vst.msk [vmem:[#allocation2 + $0x8] sm:$0x3] %vm368, 0
      %vm370 = vcmask 993216
      %371 = vst.msk [vmem:[#allocation2 + $0x8] sm:$0x3] %vm370, 0
      %vm372 = vcmask 91216
      %373 = vst.msk [vmem:[#allocation2 + $0xa] sm:$0x3] %vm372, 0
      %vm374 = vcmask 238816
      %375 = vst.msk [vmem:[#allocation2 + $0xa] sm:$0x3] %vm374, 0
      %vm376 = vcmask 681328
      %377 = vst.msk [vmem:[#allocation2 + $0xa] sm:$0x3] %vm376, 0
      %v380 = vunpack.c.l.s4 1983009808
      %v381 = vunpack.c.0.s8 %v380
      %v382 = vlaneseq
      %v383 = vshrl.u32 %v382, 7
      %v384 = vsub.s32 %v381, %v383
      %v385 = vrot.slane %v308, %v384
      %386 = vrot.lane.b32.xlu0 %v385, 38
      %v387 = vpop.permute.xlu0 %386
      %vm389 = vcmask 435504
      %390 = vst.msk [vmem:[#allocation2] sm:$0x3] %vm389, %v387
      %391 = vrot.lane.b32.xlu0 %v385, 40
      %v392 = vpop.permute.xlu0 %391
      %vm394 = vcmask 583104
      %395 = vst.msk [vmem:[#allocation2] sm:$0x3] %vm394, %v392
      %396 = vrot.lane.b32.xlu0 %v385, 42
      %v397 = vpop.permute.xlu0 %396
      %vm399 = vcmask 730704
      %400 = vst.msk [vmem:[#allocation2] sm:$0x3] %vm399, %v397
      %401 = vrot.lane.b32.xlu0 %v385, 44
      %v402 = vpop.permute.xlu0 %401
      %vm404 = vcmask 878304
      %405 = vst.msk [vmem:[#allocation2] sm:$0x3] %vm404, %v402
      %406 = vrot.lane.b32.xlu0 %v385, 46
      %v407 = vpop.permute.xlu0 %406
      %vm409 = vcmask 1025904
      %410 = vst.msk [vmem:[#allocation2] sm:$0x3] %vm409, %v407
      %411 = vrot.lane.b32.xlu0 %v385, 48
      %v412 = vpop.permute.xlu0 %411
      %vm414 = vcmask 123904
      %415 = vst.msk [vmem:[#allocation2 + $0x2] sm:$0x3] %vm414, %v412
      %416 = vrot.lane.b32.xlu0 %v385, 50
      %v417 = vpop.permute.xlu0 %416
      %vm419 = vcmask 271504
      %420 = vst.msk [vmem:[#allocation2 + $0x2] sm:$0x3] %vm419, %v417
      %421 = vrot.lane.b32.xlu0 %v385, 52
      %v422 = vpop.permute.xlu0 %421
      %vm424 = vcmask 419104
      %425 = vst.msk [vmem:[#allocation2 + $0x2] sm:$0x3] %vm424, %v422
      %v428 = vunpack.c.l.s4 1983009808
      %v429 = vunpack.c.0.s8 %v428
      %v430 = vlaneseq
      %v431 = vshrl.u32 %v430, 7
      %v432 = vsub.s32 %v429, %v431
      %v433 = vrot.slane %v309, %v432
      %434 = vrot.lane.b32.xlu0 %v433, 54
      %v435 = vpop.permute.xlu0 %434
      %vm437 = vcmask 566704
      %438 = vst.msk [vmem:[#allocation2 + $0x2] sm:$0x3] %vm437, %v435
      %439 = vrot.lane.b32.xlu0 %v433, 56
      %v440 = vpop.permute.xlu0 %439
      %vm442 = vcmask 714304
      %443 = vst.msk [vmem:[#allocation2 + $0x2] sm:$0x3] %vm442, %v440
      %444 = vrot.lane.b32.xlu0 %v433, 58
      %v445 = vpop.permute.xlu0 %444
      %vm447 = vcmask 861904
      %448 = vst.msk [vmem:[#allocation2 + $0x2] sm:$0x3] %vm447, %v445
      %449 = vrot.lane.b32.xlu0 %v433, 60
      %v450 = vpop.permute.xlu0 %449
      %vm452 = vcmask 1009504
      %453 = vst.msk [vmem:[#allocation2 + $0x2] sm:$0x3] %vm452, %v450
      %454 = vrot.lane.b32.xlu0 %v433, 62
      %v455 = vpop.permute.xlu0 %454
      %v456 = vrot.slane %v455, 6
      %vm457 = vcmask 506880
      %v458 = vsel %vm457, %v456, %v455
      %vm460 = vcmask 109570
      %vm461 = vmor %vm460, %vm322
      %462 = vst.msk [vmem:[#allocation2 + $0x2] sm:$0xf] %vm461, %v458
      %463 = vrot.lane.b32.xlu0 %v433, 64
      %v464 = vpop.permute.xlu0 %463
      %vm466 = vcmask 255104
      %467 = vst.msk [vmem:[#allocation2 + $0x4] sm:$0x3] %vm466, %v464
      %468 = vrot.lane.b32.xlu0 %v433, 66
      %v469 = vpop.permute.xlu0 %468
      %vm471 = vcmask 402704
      %472 = vst.msk [vmem:[#allocation2 + $0x4] sm:$0x3] %vm471, %v469
      %473 = vrot.lane.b32.xlu0 %v433, 68
      %v474 = vpop.permute.xlu0 %473
      %vm476 = vcmask 550304
      %477 = vst.msk [vmem:[#allocation2 + $0x4] sm:$0x3] %vm476, %v474
      %v480 = vunpack.c.l.s4 1983009808
      %v481 = vunpack.c.0.s8 %v480
      %v482 = vlaneseq
      %v483 = vshrl.u32 %v482, 7
      %v484 = vsub.s32 %v481, %v483
      %v485 = vrot.slane %v310, %v484
      %486 = vrot.lane.b32.xlu0 %v485, 16
      %v487 = vpop.permute.xlu0 %486
      %489 = vst.msk [vmem:[#allocation2 + $0x6] sm:$0x3] %vm466, %v487
      %490 = vrot.lane.b32.xlu0 %v485, 18
      %v491 = vpop.permute.xlu0 %490
      %493 = vst.msk [vmem:[#allocation2 + $0x6] sm:$0x3] %vm471, %v491
      %494 = vrot.lane.b32.xlu0 %v485, 20
      %v495 = vpop.permute.xlu0 %494
      %497 = vst.msk [vmem:[#allocation2 + $0x6] sm:$0x3] %vm476, %v495
      %498 = vrot.lane.b32.xlu0 %v485, 22
      %v499 = vpop.permute.xlu0 %498
      %vm501 = vcmask 697904
      %502 = vst.msk [vmem:[#allocation2 + $0x6] sm:$0x3] %vm501, %v499
      %503 = vrot.lane.b32.xlu0 %v485, 24
      %v504 = vpop.permute.xlu0 %503
      %vm506 = vcmask 845504
      %507 = vst.msk [vmem:[#allocation2 + $0x6] sm:$0x3] %vm506, %v504
      %508 = vrot.lane.b32.xlu0 %v485, 26
      %v509 = vpop.permute.xlu0 %508
      %vm511 = vcmask 993104
      %512 = vst.msk [vmem:[#allocation2 + $0x6] sm:$0x3] %vm511, %v509
      %513 = vrot.lane.b32.xlu0 %v485, 28
      %v514 = vpop.permute.xlu0 %513
      %v515 = vrot.slane %v514, 6
      %vm516 = vcmask 228352
      %v517 = vsel %vm516, %v515, %v514
      %vm519 = vcmask 1042400
      %vm520 = vcmask 93186
      %vm521 = vmor %vm520, %vm519
      %522 = vst.msk [vmem:[#allocation2 + $0x6] sm:$0xf] %vm521, %v517
      %523 = vrot.lane.b32.xlu0 %v485, 30
      %v524 = vpop.permute.xlu0 %523
      %vm526 = vcmask 238704
      %527 = vst.msk [vmem:[#allocation2 + $0x8] sm:$0x3] %vm526, %v524
      %v530 = vunpack.c.l.s4 1983009808
      %v531 = vunpack.c.0.s8 %v530
      %v532 = vlaneseq
      %v533 = vshrl.u32 %v532, 7
      %v534 = vsub.s32 %v531, %v533
      %v535 = vrot.slane %v311, %v534
      %536 = vrot.lane.b32.xlu0 %v535, 32
      %v537 = vpop.permute.xlu0 %536
      %vm539 = vcmask 386304
      %540 = vst.msk [vmem:[#allocation2 + $0x8] sm:$0x3] %vm539, %v537
      %541 = vrot.lane.b32.xlu0 %v535, 34
      %v542 = vpop.permute.xlu0 %541
      %vm544 = vcmask 533904
      %545 = vst.msk [vmem:[#allocation2 + $0x8] sm:$0x3] %vm544, %v542
      %546 = vrot.lane.b32.xlu0 %v535, 36
      %v547 = vpop.permute.xlu0 %546
      %vm549 = vcmask 681504
      %550 = vst.msk [vmem:[#allocation2 + $0x8] sm:$0x3] %vm549, %v547
      %551 = vrot.lane.b32.xlu0 %v535, 38
      %v552 = vpop.permute.xlu0 %551
      %vm554 = vcmask 829104
      %555 = vst.msk [vmem:[#allocation2 + $0x8] sm:$0x3] %vm554, %v552
      %556 = vrot.lane.b32.xlu0 %v535, 40
      %v557 = vpop.permute.xlu0 %556
      %vm559 = vcmask 976704
      %560 = vst.msk [vmem:[#allocation2 + $0x8] sm:$0x3] %vm559, %v557
      %561 = vrot.lane.b32.xlu0 %v535, 42
      %v562 = vpop.permute.xlu0 %561
      %v563 = vrot.slane %v562, 6
      %vm564 = vcmask 343040
      %v565 = vsel %vm564, %v563, %v562
      %vm567 = vcmask 1042384
      %vm568 = vcmask 76802
      %vm569 = vmor %vm568, %vm567
      %570 = vst.msk [vmem:[#allocation2 + $0x8] sm:$0xf] %vm569, %v565
      %571 = vrot.lane.b32.xlu0 %v535, 44
      %v572 = vpop.permute.xlu0 %571
      %vm574 = vcmask 222304
      %575 = vst.msk [vmem:[#allocation2 + $0xa] sm:$0x3] %vm574, %v572
      %576 = vrot.lane.b32.xlu0 %v535, 46
      %v577 = vpop.permute.xlu0 %576
      %vm579 = vcmask 369904
      %580 = vst.msk [vmem:[#allocation2 + $0xa] sm:$0x3] %vm579, %v577
      %v581 = vld [vmem:[#allocation2] sm:$0xff]
      %v582 = vld [vmem:[#allocation2 + $0x8] sm:$0xf]
      %v585 = vcombine.high %v581, %v581
      %v587 = vunpack.c.l.s4 1983009808
      %v588 = vunpack.c.0.s8 %v587
      %v589 = vlaneseq
      %v590 = vshrl.u32 %v589, 7
      %v591 = vsub.s32 %v588, %v590
      %v592 = vrot.slane %v581, %v591
      %v594 = vunpack.c.l.s4 1983009808
      %v595 = vunpack.c.0.s8 %v594
      %v596 = vlaneseq
      %v597 = vshrl.u32 %v596, 7
      %v598 = vsub.s32 %v595, %v597
      %v599 = vrot.slane %v585, %v598
      %v601 = vunpack.c.l.s4 1983009808
      %v602 = vunpack.c.0.s8 %v601
      %v603 = vlaneseq
      %v604 = vshrl.u32 %v603, 7
      %v605 = vsub.s32 %v602, %v604
      %v606 = vrot.slane %v582, %v605
      %610 = vst [vmem:[#allocation3] sm:$0x33] %v592
      %611 = vst [vmem:[#allocation3 + $0x8] sm:$0x33] %v599
      %vm612 = vcmask 1041408
      %vm613 = vcmask 373764
      %vm614 = vmor %vm613, %vm612
      %615 = vst.msk [vmem:[#allocation3 + $0x10] sm:$0x33] %vm614, %v606
      %v616 = vld [vmem:[#allocation2] sm:$0xff]
      %v617 = vld [vmem:[#allocation2 + $0x8] sm:$0xf]
      %v620 = vcombine.low %v616, %v616
      %v622 = vunpack.c.l.s4 1983009808
      %v623 = vunpack.c.0.s8 %v622
      %v624 = vlaneseq
      %v625 = vshrl.u32 %v624, 7
      %v626 = vsub.s32 %v623, %v625
      %v627 = vrot.slane %v620, %v626
      %v629 = vunpack.c.l.s4 1983009808
      %v630 = vunpack.c.0.s8 %v629
      %v631 = vlaneseq
      %v632 = vshrl.u32 %v631, 7
      %v633 = vsub.s32 %v630, %v632
      %v634 = vrot.slane %v616, %v633
      %v635 = vcombine.low %v617, %v617
      %v637 = vunpack.c.l.s4 1983009808
      %v638 = vunpack.c.0.s8 %v637
      %v639 = vlaneseq
      %v640 = vshrl.u32 %v639, 7
      %v641 = vsub.s32 %v638, %v640
      %v642 = vrot.slane %v635, %v641
      %643 = vrot.lane.b32.xlu0 %v627, 127
      %v644 = vpop.permute.xlu0 %643
      %645 = vrot.lane.b32.xlu0 %v634, 127
      %v646 = vpop.permute.xlu0 %645
      %647 = vrot.lane.b32.xlu0 %v642, 127
      %v648 = vpop.permute.xlu0 %647
      %v649 = vrot.slane %v644, 4
      %v650 = vrot.slane %v646, 4
      %v651 = vrot.slane %v648, 4
      %vm652 = vcmask 1043456
      %v653 = vsel %vm652, %v649, %v650
      %vm654 = vcmask 1039360
      %v655 = vsel %vm654, %v644, %v653
      %v656 = vsel %vm652, %v650, %v651
      %v657 = vsel %vm654, %v646, %v656
      %v658 = vsel %vm654, %v648, %v651
      %662 = vst [vmem:[#allocation3] sm:$0xcc] %v655
      %663 = vst [vmem:[#allocation3 + $0x8] sm:$0xcc] %v657
      %vm664 = vcmask 1043458
      %vm665 = vcmask 375814
      %vm666 = vmor %vm665, %vm664
      %667 = vst.msk [vmem:[#allocation3 + $0x10] sm:$0xcc] %vm666, %v658
      %v668 = vld [vmem:[#allocation2] sm:$0xff]
      %v669 = vld [vmem:[#allocation2 + $0x8] sm:$0xf]
      %v672 = vcombine.high %v668, %v668
      %v674 = vunpack.c.l.s4 1983009808
      %v675 = vunpack.c.0.s8 %v674
      %v676 = vlaneseq
      %v677 = vshrl.u32 %v676, 7
      %v678 = vsub.s32 %v675, %v677
      %v679 = vrot.slane %v668, %v678
      %v681 = vunpack.c.l.s4 1983009808
      %v682 = vunpack.c.0.s8 %v681
      %v683 = vlaneseq
      %v684 = vshrl.u32 %v683, 7
      %v685 = vsub.s32 %v682, %v684
      %v686 = vrot.slane %v672, %v685
      %v688 = vunpack.c.l.s4 1983009808
      %v689 = vunpack.c.0.s8 %v688
      %v690 = vlaneseq
      %v691 = vshrl.u32 %v690, 7
      %v692 = vsub.s32 %v689, %v691
      %v693 = vrot.slane %v669, %v692
      %694 = vrot.lane.b32.xlu0 %v679, 126
      %v695 = vpop.permute.xlu0 %694
      %696 = vrot.lane.b32.xlu0 %v686, 126
      %v697 = vpop.permute.xlu0 %696
      %698 = vrot.lane.b32.xlu0 %v693, 126
      %v699 = vpop.permute.xlu0 %698
      %v700 = vrot.slane %v695, 4
      %v701 = vrot.slane %v697, 4
      %v702 = vrot.slane %v699, 4
      %v703 = vsel %vm652, %v700, %v701
      %vm704 = vcmask 1031168
      %v705 = vsel %vm704, %v695, %v703
      %v706 = vsel %vm652, %v701, %v702
      %v707 = vsel %vm704, %v697, %v706
      %v708 = vsel %vm704, %v699, %v702
      %712 = vst [vmem:[#allocation3 + $0x18] sm:$0x33] %v705
      %713 = vst [vmem:[#allocation3 + $0x20] sm:$0x33] %v707
      %714 = vst.msk [vmem:[#allocation3 + $0x28] sm:$0x33] %vm614, %v708
      %v715 = vld [vmem:[#allocation2] sm:$0xff]
      %v716 = vld [vmem:[#allocation2 + $0x8] sm:$0xf]
      %v719 = vcombine.low %v715, %v715
      %v721 = vunpack.c.l.s4 1983009808
      %v722 = vunpack.c.0.s8 %v721
      %v723 = vlaneseq
      %v724 = vshrl.u32 %v723, 7
      %v725 = vsub.s32 %v722, %v724
      %v726 = vrot.slane %v719, %v725
      %v728 = vunpack.c.l.s4 1983009808
      %v729 = vunpack.c.0.s8 %v728
      %v730 = vlaneseq
      %v731 = vshrl.u32 %v730, 7
      %v732 = vsub.s32 %v729, %v731
      %v733 = vrot.slane %v715, %v732
      %v734 = vcombine.low %v716, %v716
      %v736 = vunpack.c.l.s4 1983009808
      %v737 = vunpack.c.0.s8 %v736
      %v738 = vlaneseq
      %v739 = vshrl.u32 %v738, 7
      %v740 = vsub.s32 %v737, %v739
      %v741 = vrot.slane %v734, %v740
      %742 = vrot.lane.b32.xlu0 %v726, 110
      %v743 = vpop.permute.xlu0 %742
      %744 = vrot.lane.b32.xlu0 %v733, 110
      %v745 = vpop.permute.xlu0 %744
      %746 = vrot.lane.b32.xlu0 %v741, 110
      %v747 = vpop.permute.xlu0 %746
      %v748 = vrot.slane %v743, 4
      %v749 = vrot.slane %v745, 4
      %v750 = vrot.slane %v747, 4
      %v751 = vsel %vm652, %v748, %v749
      %vm752 = vcmask 900096
      %v753 = vsel %vm752, %v743, %v751
      %v754 = vsel %vm652, %v749, %v750
      %v755 = vsel %vm752, %v745, %v754
      %v756 = vsel %vm752, %v747, %v750
      %760 = vst [vmem:[#allocation3 + $0x18] sm:$0xcc] %v753
      %761 = vst [vmem:[#allocation3 + $0x20] sm:$0xcc] %v755
      %762 = vst.msk [vmem:[#allocation3 + $0x28] sm:$0xcc] %vm666, %v756
      %v763 = vld [vmem:[#allocation2] sm:$0xff]
      %v764 = vld [vmem:[#allocation2 + $0x8] sm:$0xf]
      %v767 = vcombine.high %v763, %v763
      %v769 = vunpack.c.l.s4 1983009808
      %v770 = vunpack.c.0.s8 %v769
      %v771 = vlaneseq
      %v772 = vshrl.u32 %v771, 7
      %v773 = vsub.s32 %v770, %v772
      %v774 = vrot.slane %v763, %v773
      %v776 = vunpack.c.l.s4 1983009808
      %v777 = vunpack.c.0.s8 %v776
      %v778 = vlaneseq
      %v779 = vshrl.u32 %v778, 7
      %v780 = vsub.s32 %v777, %v779
      %v781 = vrot.slane %v767, %v780
      %v783 = vunpack.c.l.s4 1983009808
      %v784 = vunpack.c.0.s8 %v783
      %v785 = vlaneseq
      %v786 = vshrl.u32 %v785, 7
      %v787 = vsub.s32 %v784, %v786
      %v788 = vrot.slane %v764, %v787
      %789 = vrot.lane.b32.xlu0 %v774, 109
      %v790 = vpop.permute.xlu0 %789
      %791 = vrot.lane.b32.xlu0 %v781, 109
      %v792 = vpop.permute.xlu0 %791
      %793 = vrot.lane.b32.xlu0 %v788, 109
      %v794 = vpop.permute.xlu0 %793
      %v795 = vrot.slane %v790, 4
      %v796 = vrot.slane %v792, 4
      %v797 = vrot.slane %v794, 4
      %v798 = vsel %vm652, %v795, %v796
      %vm799 = vcmask 891904
      %v800 = vsel %vm799, %v790, %v798
      %v801 = vsel %vm652, %v796, %v797
      %v802 = vsel %vm799, %v792, %v801
      %v803 = vsel %vm799, %v794, %v797
      %807 = vst [vmem:[#allocation3 + $0x30] sm:$0x33] %v800
      %808 = vst [vmem:[#allocation3 + $0x38] sm:$0x33] %v802
      %809 = vst.msk [vmem:[#allocation3 + $0x40] sm:$0x33] %vm614, %v803
      %v810 = vld [vmem:[#allocation2] sm:$0xff]
      %v811 = vld [vmem:[#allocation2 + $0x8] sm:$0xf]
      %v814 = vcombine.low %v810, %v810
      %v816 = vunpack.c.l.s4 1983009808
      %v817 = vunpack.c.0.s8 %v816
      %v818 = vlaneseq
      %v819 = vshrl.u32 %v818, 7
      %v820 = vsub.s32 %v817, %v819
      %v821 = vrot.slane %v814, %v820
      %v823 = vunpack.c.l.s4 1983009808
      %v824 = vunpack.c.0.s8 %v823
      %v825 = vlaneseq
      %v826 = vshrl.u32 %v825, 7
      %v827 = vsub.s32 %v824, %v826
      %v828 = vrot.slane %v810, %v827
      %v829 = vcombine.low %v811, %v811
      %v831 = vunpack.c.l.s4 1983009808
      %v832 = vunpack.c.0.s8 %v831
      %v833 = vlaneseq
      %v834 = vshrl.u32 %v833, 7
      %v835 = vsub.s32 %v832, %v834
      %v836 = vrot.slane %v829, %v835
      %837 = vrot.lane.b32.xlu0 %v821, 108
      %v838 = vpop.permute.xlu0 %837
      %839 = vrot.lane.b32.xlu0 %v828, 108
      %v840 = vpop.permute.xlu0 %839
      %841 = vrot.lane.b32.xlu0 %v836, 108
      %v842 = vpop.permute.xlu0 %841
      %v843 = vrot.slane %v838, 4
      %v844 = vrot.slane %v840, 4
      %v845 = vrot.slane %v842, 4
      %v846 = vsel %vm652, %v843, %v844
      %vm847 = vcmask 883712
      %v848 = vsel %vm847, %v838, %v846
      %v849 = vsel %vm652, %v844, %v845
      %v850 = vsel %vm847, %v840, %v849
      %v851 = vsel %vm847, %v842, %v845
      %855 = vst [vmem:[#allocation3 + $0x30] sm:$0xcc] %v848
      %856 = vst [vmem:[#allocation3 + $0x38] sm:$0xcc] %v850
      %857 = vst.msk [vmem:[#allocation3 + $0x40] sm:$0xcc] %vm666, %v851
      %v858 = vld [vmem:[#allocation2] sm:$0xff]
      %v859 = vld [vmem:[#allocation2 + $0x8] sm:$0xf]
      %v862 = vcombine.high %v858, %v858
      %v864 = vunpack.c.l.s4 1983009808
      %v865 = vunpack.c.0.s8 %v864
      %v866 = vlaneseq
      %v867 = vshrl.u32 %v866, 7
      %v868 = vsub.s32 %v865, %v867
      %v869 = vrot.slane %v858, %v868
      %v871 = vunpack.c.l.s4 1983009808
      %v872 = vunpack.c.0.s8 %v871
      %v873 = vlaneseq
      %v874 = vshrl.u32 %v873, 7
      %v875 = vsub.s32 %v872, %v874
      %v876 = vrot.slane %v862, %v875
      %v878 = vunpack.c.l.s4 1983009808
      %v879 = vunpack.c.0.s8 %v878
      %v880 = vlaneseq
      %v881 = vshrl.u32 %v880, 7
      %v882 = vsub.s32 %v879, %v881
      %v883 = vrot.slane %v859, %v882
      %884 = vrot.lane.b32.xlu0 %v869, 92
      %v885 = vpop.permute.xlu0 %884
      %886 = vrot.lane.b32.xlu0 %v876, 92
      %v887 = vpop.permute.xlu0 %886
      %888 = vrot.lane.b32.xlu0 %v883, 92
      %v889 = vpop.permute.xlu0 %888
      %v890 = vrot.slane %v885, 4
      %v891 = vrot.slane %v887, 4
      %v892 = vrot.slane %v889, 4
      %v893 = vsel %vm652, %v890, %v891
      %vm894 = vcmask 752640
      %v895 = vsel %vm894, %v885, %v893
      %v896 = vsel %vm652, %v891, %v892
      %v897 = vsel %vm894, %v887, %v896
      %v898 = vsel %vm894, %v889, %v892
      %902 = vst [vmem:[#allocation3 + $0x48] sm:$0x33] %v895
      %903 = vst [vmem:[#allocation3 + $0x50] sm:$0x33] %v897
      %904 = vst.msk [vmem:[#allocation3 + $0x58] sm:$0x33] %vm614, %v898
      %v905 = vld [vmem:[#allocation2] sm:$0xff]
      %v906 = vld [vmem:[#allocation2 + $0x8] sm:$0xf]
      %v909 = vcombine.low %v905, %v905
      %v911 = vunpack.c.l.s4 1983009808
      %v912 = vunpack.c.0.s8 %v911
      %v913 = vlaneseq
      %v914 = vshrl.u32 %v913, 7
      %v915 = vsub.s32 %v912, %v914
      %v916 = vrot.slane %v909, %v915
      %v918 = vunpack.c.l.s4 1983009808
      %v919 = vunpack.c.0.s8 %v918
      %v920 = vlaneseq
      %v921 = vshrl.u32 %v920, 7
      %v922 = vsub.s32 %v919, %v921
      %v923 = vrot.slane %v905, %v922
      %v924 = vcombine.low %v906, %v906
      %v926 = vunpack.c.l.s4 1983009808
      %v927 = vunpack.c.0.s8 %v926
      %v928 = vlaneseq
      %v929 = vshrl.u32 %v928, 7
      %v930 = vsub.s32 %v927, %v929
      %v931 = vrot.slane %v924, %v930
      %932 = vrot.lane.b32.xlu0 %v916, 91
      %v933 = vpop.permute.xlu0 %932
      %934 = vrot.lane.b32.xlu0 %v923, 91
      %v935 = vpop.permute.xlu0 %934
      %936 = vrot.lane.b32.xlu0 %v931, 91
      %v937 = vpop.permute.xlu0 %936
      %v938 = vrot.slane %v933, 4
      %v939 = vrot.slane %v935, 4
      %v940 = vrot.slane %v937, 4
      %v941 = vsel %vm652, %v938, %v939
      %vm942 = vcmask 744448
      %v943 = vsel %vm942, %v933, %v941
      %v944 = vsel %vm652, %v939, %v940
      %v945 = vsel %vm942, %v935, %v944
      %v946 = vsel %vm942, %v937, %v940
      %950 = vst [vmem:[#allocation3 + $0x48] sm:$0xcc] %v943
      %951 = vst [vmem:[#allocation3 + $0x50] sm:$0xcc] %v945
      %952 = vst.msk [vmem:[#allocation3 + $0x58] sm:$0xcc] %vm666, %v946
      %v953 = vld [vmem:[#allocation2] sm:$0xff]
      %v954 = vld [vmem:[#allocation2 + $0x8] sm:$0xf]
      %v957 = vcombine.high %v953, %v953
      %v959 = vunpack.c.l.s4 1983009808
      %v960 = vunpack.c.0.s8 %v959
      %v961 = vlaneseq
      %v962 = vshrl.u32 %v961, 7
      %v963 = vsub.s32 %v960, %v962
      %v964 = vrot.slane %v953, %v963
      %v966 = vunpack.c.l.s4 1983009808
      %v967 = vunpack.c.0.s8 %v966
      %v968 = vlaneseq
      %v969 = vshrl.u32 %v968, 7
      %v970 = vsub.s32 %v967, %v969
      %v971 = vrot.slane %v957, %v970
      %v973 = vunpack.c.l.s4 1983009808
      %v974 = vunpack.c.0.s8 %v973
      %v975 = vlaneseq
      %v976 = vshrl.u32 %v975, 7
      %v977 = vsub.s32 %v974, %v976
      %v978 = vrot.slane %v954, %v977
      %979 = vrot.lane.b32.xlu0 %v964, 90
      %v980 = vpop.permute.xlu0 %979
      %981 = vrot.lane.b32.xlu0 %v971, 90
      %v982 = vpop.permute.xlu0 %981
      %983 = vrot.lane.b32.xlu0 %v978, 90
      %v984 = vpop.permute.xlu0 %983
      %v985 = vrot.slane %v980, 4
      %v986 = vrot.slane %v982, 4
      %v987 = vrot.slane %v984, 4
      %v988 = vsel %vm652, %v985, %v986
      %vm989 = vcmask 736256
      %v990 = vsel %vm989, %v980, %v988
      %v991 = vsel %vm652, %v986, %v987
      %v992 = vsel %vm989, %v982, %v991
      %v993 = vsel %vm989, %v984, %v987
      %997 = vst [vmem:[#allocation3 + $0x60] sm:$0x33] %v990
      %998 = vst [vmem:[#allocation3 + $0x68] sm:$0x33] %v992
      %999 = vst.msk [vmem:[#allocation3 + $0x70] sm:$0x33] %vm614, %v993
      %v1000 = vld [vmem:[%s1] sm:$0x3]
      %v1001 = vld [vmem:[#allocation3] sm:$0xff]
      %v1002 = vld [vmem:[#allocation3 + $0x8] sm:$0xff]
      %v1003 = vld [vmem:[#allocation3 + $0x10] sm:$0xff]
      %v1004 = vld [vmem:[#allocation3 + $0x18] sm:$0xff]
      %v1005 = vld [vmem:[#allocation3 + $0x20] sm:$0xff]
      %v1006 = vld [vmem:[#allocation3 + $0x28] sm:$0xff]
      %v1007 = vld [vmem:[#allocation3 + $0x30] sm:$0xff]
      %v1008 = vld [vmem:[#allocation3 + $0x38] sm:$0xff]
      %v1009 = vld [vmem:[#allocation3 + $0x40] sm:$0xff]
      %v1010 = vld [vmem:[#allocation3 + $0x48] sm:$0xff]
      %v1011 = vld [vmem:[#allocation3 + $0x50] sm:$0xff]
      %v1012 = vld [vmem:[#allocation3 + $0x58] sm:$0xff]
      %v1013 = vld [vmem:[#allocation3 + $0x60] sm:$0x33]
      %v1014 = vld [vmem:[#allocation3 + $0x68] sm:$0x33]
      %v1015 = vld [vmem:[#allocation3 + $0x70] sm:$0x33]
      %v1016 = vld [vmem:[%s2] sm:$0xf]
      %1018 = vset.pattern.permute.xlu0 0
      %1019 = vperm.xlu0 %1018, %v1016
      %v1020 = vpop.permute.xlu0 %1019
      %v1037 = vunpack.c.l.b16 %v1001
      %v1038 = vunpack.c.h.b16 %v1001
      %v1039 = vunpack.c.l.b16 %v1002
      %v1040 = vunpack.c.h.b16 %v1002
      %v1041 = vunpack.c.l.b16 %v1003
      %v1042 = vunpack.c.h.b16 %v1003
      %v1043 = vunpack.c.l.b16 %v1004
      %v1044 = vunpack.c.h.b16 %v1004
      %v1045 = vunpack.c.l.b16 %v1005
      %v1046 = vunpack.c.h.b16 %v1005
      %v1047 = vunpack.c.l.b16 %v1006
      %v1048 = vunpack.c.h.b16 %v1006
      %v1049 = vunpack.c.l.b16 %v1007
      %v1050 = vunpack.c.h.b16 %v1007
      %v1051 = vunpack.c.l.b16 %v1008
      %v1052 = vunpack.c.h.b16 %v1008
      %v1053 = vunpack.c.l.b16 %v1009
      %v1054 = vunpack.c.h.b16 %v1009
      %v1055 = vunpack.c.l.b16 %v1010
      %v1056 = vunpack.c.h.b16 %v1010
      %v1057 = vunpack.c.l.b16 %v1011
      %v1058 = vunpack.c.h.b16 %v1011
      %v1059 = vunpack.c.l.b16 %v1012
      %v1060 = vunpack.c.h.b16 %v1012
      %v1061 = vunpack.c.l.b16 %v1013
      %v1062 = vunpack.c.h.b16 %v1013
      %v1063 = vunpack.c.l.b16 %v1014
      %v1064 = vunpack.c.h.b16 %v1014
      %v1065 = vunpack.c.l.b16 %v1015
      %v1066 = vunpack.c.h.b16 %v1015
      %v1067 = vpack.c.b16 %v1043, %v1037
      %v1068 = vpack.c.b16 %v1044, %v1038
      %v1069 = vpack.c.b16 %v1045, %v1039
      %v1070 = vpack.c.b16 %v1046, %v1040
      %v1071 = vpack.c.b16 %v1047, %v1041
      %v1072 = vpack.c.b16 %v1048, %v1042
      %v1073 = vpack.c.b16 %v1055, %v1049
      %v1074 = vpack.c.b16 %v1056, %v1050
      %v1075 = vpack.c.b16 %v1057, %v1051
      %v1076 = vpack.c.b16 %v1058, %v1052
      %v1077 = vpack.c.b16 %v1059, %v1053
      %v1078 = vpack.c.b16 %v1060, %v1054
      %v1079 = vpack.c.b16 %v1061, %v1061
      %v1080 = vpack.c.b16 %v1062, %v1062
      %v1081 = vpack.c.b16 %v1063, %v1063
      %v1082 = vpack.c.b16 %v1064, %v1064
      %v1083 = vpack.c.b16 %v1065, %v1065
      %v1084 = vpack.c.b16 %v1066, %v1066
      %vm1097 = vcmask 293888
      %v1099 = vsel %vm1097, %v1000, 0
      %v1102 = vsel %vm612, %v1079, 0
      %v1105 = vsel %vm612, %v1080, 0
      %v1108 = vsel %vm612, %v1081, 0
      %v1111 = vsel %vm612, %v1082, 0
      %v1114 = vsel %vm612, %v1083, 0
      %v1117 = vsel %vm612, %v1084, 0
      %1119 = vmatprep.subr.bf16.mxu0 %v1068
      %1120 = vmatpush1.bf16.msra.mxu0 %v1067
      %1121 = vmatprep.subr.bf16.mxu0 %v1074
      %1122 = vmatpush1.bf16.msra.mxu0 %v1073
      %1123 = vmatprep.subr.bf16.mxu0 %v1105
      %1124 = vmatpush1.bf16.msra.mxu0 %v1102
      %1125 = vmatprep.subr.bf16.mxu0 0
      %1126 = vmatpush1.bf16.msra.mxu0 0
      %1127 = vmatprep.subr.bf16.mxu0 0
      %1128 = vmatpush1.bf16.msra.mxu0 0
      %1129 = vmatprep.subr.bf16.mxu0 0
      %1130 = vmatpush1.bf16.msra.mxu0 0
      %1131 = vmatprep.subr.bf16.mxu0 0
      %1132 = vmatpush1.bf16.msra.mxu0 0
      %1133 = vmatprep.subr.bf16.mxu0 0
      %1134 = vmatpush1.bf16.msra.mxu0 0
      %1135 = vmatprep.subr.bf16.mxu0 0
      %1136 = vmatpush1.bf16.msra.mxu0 0
      %1137 = vmatprep.subr.bf16.mxu0 0
      %1138 = vmatpush1.bf16.msra.mxu0 0
      %1139 = vmatprep.subr.bf16.mxu0 0
      %1140 = vmatpush1.bf16.msra.mxu0 0
      %1141 = vmatprep.subr.bf16.mxu0 0
      %1142 = vmatpush1.bf16.msra.mxu0 0
      %1143 = vmatprep.subr.bf16.mxu0 0
      %1144 = vmatpush1.bf16.msra.mxu0 0
      %1145 = vmatprep.subr.bf16.mxu0 0
      %1146 = vmatpush1.bf16.msra.mxu0 0
      %1147 = vmatprep.subr.bf16.mxu0 0
      %1148 = vmatpush1.bf16.msra.mxu0 0
      %1149 = vmatprep.subr.bf16.mxu0 0
      %1150 = vmatpush1.bf16.msra.mxu0 0
      %1151 = vmatprep.mubr.bf16.mxu0 0
      %1152 = vmatmul.mubr.bf16.gmra.mrb[0].mxu0 %v1099
      %v1153 = vpop.f32.mrb[0].mxu0
      %v1154 = vadd.f32 %v1020, %v1153
      %v1155 = vpop.f32.mrb[0].mxu0
      %v1156 = vadd.f32 %v1020, %v1155
      %v1157 = vpop.f32.mrb[0].mxu0
      %v1158 = vpop.f32.mrb[0].mxu0
      %1159 = vdwg.mxu0
      %1160 = vmatprep.subr.bf16.mxu0 %v1070
      %1161 = vmatpush1.bf16.msra.mxu0 %v1069
      %1162 = vmatprep.subr.bf16.mxu0 %v1076
      %1163 = vmatpush1.bf16.msra.mxu0 %v1075
      %1164 = vmatprep.subr.bf16.mxu0 %v1111
      %1165 = vmatpush1.bf16.msra.mxu0 %v1108
      %1166 = vmatprep.subr.bf16.mxu0 0
      %1167 = vmatpush1.bf16.msra.mxu0 0
      %1168 = vmatprep.subr.bf16.mxu0 0
      %1169 = vmatpush1.bf16.msra.mxu0 0
      %1170 = vmatprep.subr.bf16.mxu0 0
      %1171 = vmatpush1.bf16.msra.mxu0 0
      %1172 = vmatprep.subr.bf16.mxu0 0
      %1173 = vmatpush1.bf16.msra.mxu0 0
      %1174 = vmatprep.subr.bf16.mxu0 0
      %1175 = vmatpush1.bf16.msra.mxu0 0
      %1176 = vmatprep.subr.bf16.mxu0 0
      %1177 = vmatpush1.bf16.msra.mxu0 0
      %1178 = vmatprep.subr.bf16.mxu0 0
      %1179 = vmatpush1.bf16.msra.mxu0 0
      %1180 = vmatprep.subr.bf16.mxu0 0
      %1181 = vmatpush1.bf16.msra.mxu0 0
      %1182 = vmatprep.subr.bf16.mxu0 0
      %1183 = vmatpush1.bf16.msra.mxu0 0
      %1184 = vmatprep.subr.bf16.mxu0 0
      %1185 = vmatpush1.bf16.msra.mxu0 0
      %1186 = vmatprep.subr.bf16.mxu0 0
      %1187 = vmatpush1.bf16.msra.mxu0 0
      %1188 = vmatprep.subr.bf16.mxu0 0
      %1189 = vmatpush1.bf16.msra.mxu0 0
      %1190 = vmatprep.subr.bf16.mxu0 0
      %1191 = vmatpush1.bf16.msra.mxu0 0
      %1192 = vmatprep.mubr.bf16.mxu0 0
      %1193 = vmatmul.mubr.bf16.gmra.mrb[0].mxu0 %v1099
      %v1194 = vpop.f32.mrb[0].mxu0
      %v1195 = vadd.f32 %v1020, %v1194
      %v1196 = vpop.f32.mrb[0].mxu0
      %v1197 = vadd.f32 %v1020, %v1196
      %v1198 = vpop.f32.mrb[0].mxu0
      %v1199 = vpop.f32.mrb[0].mxu0
      %1200 = vdwg.mxu0
      %1201 = vmatprep.subr.bf16.mxu0 %v1072
      %1202 = vmatpush1.bf16.msra.mxu0 %v1071
      %1203 = vmatprep.subr.bf16.mxu0 %v1078
      %1204 = vmatpush1.bf16.msra.mxu0 %v1077
      %1205 = vmatprep.subr.bf16.mxu0 %v1117
      %1206 = vmatpush1.bf16.msra.mxu0 %v1114
      %1207 = vmatprep.subr.bf16.mxu0 0
      %1208 = vmatpush1.bf16.msra.mxu0 0
      %1209 = vmatprep.subr.bf16.mxu0 0
      %1210 = vmatpush1.bf16.msra.mxu0 0
      %1211 = vmatprep.subr.bf16.mxu0 0
      %1212 = vmatpush1.bf16.msra.mxu0 0
      %1213 = vmatprep.subr.bf16.mxu0 0
      %1214 = vmatpush1.bf16.msra.mxu0 0
      %1215 = vmatprep.subr.bf16.mxu0 0
      %1216 = vmatpush1.bf16.msra.mxu0 0
      %1217 = vmatprep.subr.bf16.mxu0 0
      %1218 = vmatpush1.bf16.msra.mxu0 0
      %1219 = vmatprep.subr.bf16.mxu0 0
      %1220 = vmatpush1.bf16.msra.mxu0 0
      %1221 = vmatprep.subr.bf16.mxu0 0
      %1222 = vmatpush1.bf16.msra.mxu0 0
      %1223 = vmatprep.subr.bf16.mxu0 0
      %1224 = vmatpush1.bf16.msra.mxu0 0
      %1225 = vmatprep.subr.bf16.mxu0 0
      %1226 = vmatpush1.bf16.msra.mxu0 0
      %1227 = vmatprep.subr.bf16.mxu0 0
      %1228 = vmatpush1.bf16.msra.mxu0 0
      %1229 = vmatprep.subr.bf16.mxu0 0
      %1230 = vmatpush1.bf16.msra.mxu0 0
      %1231 = vmatprep.subr.bf16.mxu0 0
      %1232 = vmatpush1.bf16.msra.mxu0 0
      %1233 = vmatprep.mubr.bf16.mxu0 0
      %1234 = vmatmul.mubr.bf16.gmra.mrb[0].mxu0 %v1099
      %v1235 = vpop.f32.mrb[0].mxu0
      %v1236 = vadd.f32 %v1020, %v1235
      %v1237 = vpop.f32.mrb[0].mxu0
      %v1238 = vadd.f32 %v1020, %v1237
      %v1239 = vpop.f32.mrb[0].mxu0
      %v1240 = vpop.f32.mrb[0].mxu0
      %1241 = vdwg.mxu0
      %1243 = vrot.lane.b32.xlu0 %v1154, 109
      %v1244 = vpop.permute.xlu0 %1243
      %vm1246 = vcmask 125952
      %1247 = vst.msk [vmem:[#allocation4] sm:$0xf] %vm1246, %v1244
      %1248 = vrot.lane.b32.xlu0 %v1154, 107
      %v1249 = vpop.permute.xlu0 %1248
      %vm1251 = vcmask 257152
      %1252 = vst.msk [vmem:[#allocation4] sm:$0xf] %vm1251, %v1249
      %1253 = vrot.lane.b32.xlu0 %v1154, 105
      %v1254 = vpop.permute.xlu0 %1253
      %vm1256 = vcmask 388352
      %1257 = vst.msk [vmem:[#allocation4] sm:$0xf] %vm1256, %v1254
      %1258 = vrot.lane.b32.xlu0 %v1154, 103
      %v1259 = vpop.permute.xlu0 %1258
      %vm1261 = vcmask 519552
      %1262 = vst.msk [vmem:[#allocation4] sm:$0xf] %vm1261, %v1259
      %1263 = vrot.lane.b32.xlu0 %v1154, 101
      %v1264 = vpop.permute.xlu0 %1263
      %vm1266 = vcmask 650752
      %1267 = vst.msk [vmem:[#allocation4] sm:$0xf] %vm1266, %v1264
      %1268 = vrot.lane.b32.xlu0 %v1154, 99
      %v1269 = vpop.permute.xlu0 %1268
      %vm1271 = vcmask 781952
      %1272 = vst.msk [vmem:[#allocation4] sm:$0xf] %vm1271, %v1269
      %v1274 = vcombine.low %v1154, %v1156
      %1275 = vrot.lane.b32.xlu0 %v1274, 97
      %v1276 = vpop.permute.xlu0 %1275
      %v1277 = vrot.slane %v1276, 4
      %vm1278 = vcmask 793600
      %v1279 = vsel %vm1278, %v1276, %v1277
      %vm1281 = vcmask 913152
      %1282 = vst.msk [vmem:[#allocation4] sm:$0xf] %vm1281, %v1279
      %1283 = vrot.lane.b32.xlu0 %v1156, 95
      %v1284 = vpop.permute.xlu0 %1283
      %vm1286 = vcmask 1044352
      %1287 = vst.msk [vmem:[#allocation4] sm:$0xf] %vm1286, %v1284
      %1288 = vrot.lane.b32.xlu0 %v1156, 93
      %v1289 = vpop.permute.xlu0 %1288
      %1291 = vst.msk [vmem:[#allocation4 + $0x4] sm:$0xf] %vm1246, %v1289
      %1292 = vrot.lane.b32.xlu0 %v1156, 91
      %v1293 = vpop.permute.xlu0 %1292
      %1295 = vst.msk [vmem:[#allocation4 + $0x4] sm:$0xf] %vm1251, %v1293
      %1296 = vrot.lane.b32.xlu0 %v1156, 89
      %v1297 = vpop.permute.xlu0 %1296
      %1299 = vst.msk [vmem:[#allocation4 + $0x4] sm:$0xf] %vm1256, %v1297
      %1300 = vrot.lane.b32.xlu0 %v1156, 87
      %v1301 = vpop.permute.xlu0 %1300
      %1303 = vst.msk [vmem:[#allocation4 + $0x4] sm:$0xf] %vm1261, %v1301
      %1304 = vrot.lane.b32.xlu0 %v1156, 85
      %v1305 = vpop.permute.xlu0 %1304
      %1307 = vst.msk [vmem:[#allocation4 + $0x4] sm:$0xf] %vm1266, %v1305
      %v1309 = vcombine.low %v1156, %v1195
      %1310 = vrot.lane.b32.xlu0 %v1309, 83
      %v1311 = vpop.permute.xlu0 %1310
      %v1312 = vrot.slane %v1311, 4
      %vm1313 = vcmask 678912
      %v1314 = vsel %vm1313, %v1311, %v1312
      %1316 = vst.msk [vmem:[#allocation4 + $0x4] sm:$0xf] %vm1271, %v1314
      %1317 = vrot.lane.b32.xlu0 %v1195, 81
      %v1318 = vpop.permute.xlu0 %1317
      %1320 = vst.msk [vmem:[#allocation4 + $0x4] sm:$0xf] %vm1281, %v1318
      %1321 = vrot.lane.b32.xlu0 %v1195, 79
      %v1322 = vpop.permute.xlu0 %1321
      %1324 = vst.msk [vmem:[#allocation4 + $0x4] sm:$0xf] %vm1286, %v1322
      %v1326 = vcombine.low %v1195, %v1197
      %1327 = vrot.lane.b32.xlu0 %v1326, 3
      %v1328 = vpop.permute.xlu0 %1327
      %v1329 = vrot.slane %v1328, 4
      %vm1330 = vcmask 23552
      %v1331 = vsel %vm1330, %v1328, %v1329
      %1333 = vst.msk [vmem:[#allocation4 + $0x8] sm:$0xf] %vm1246, %v1331
      %1334 = vrot.lane.b32.xlu0 %v1197, 1
      %v1335 = vpop.permute.xlu0 %1334
      %1337 = vst.msk [vmem:[#allocation4 + $0x8] sm:$0xf] %vm1251, %v1335
      %1338 = vrot.lane.b32.xlu0 %v1197, 127
      %v1339 = vpop.permute.xlu0 %1338
      %1341 = vst.msk [vmem:[#allocation4 + $0x8] sm:$0xf] %vm1256, %v1339
      %1342 = vrot.lane.b32.xlu0 %v1197, 125
      %v1343 = vpop.permute.xlu0 %1342
      %1345 = vst.msk [vmem:[#allocation4 + $0x8] sm:$0xf] %vm1261, %v1343
      %1346 = vrot.lane.b32.xlu0 %v1197, 123
      %v1347 = vpop.permute.xlu0 %1346
      %1349 = vst.msk [vmem:[#allocation4 + $0x8] sm:$0xf] %vm1266, %v1347
      %1350 = vrot.lane.b32.xlu0 %v1197, 121
      %v1351 = vpop.permute.xlu0 %1350
      %1353 = vst.msk [vmem:[#allocation4 + $0x8] sm:$0xf] %vm1271, %v1351
      %1354 = vrot.lane.b32.xlu0 %v1197, 119
      %v1355 = vpop.permute.xlu0 %1354
      %1357 = vst.msk [vmem:[#allocation4 + $0x8] sm:$0xf] %vm1281, %v1355
      %v1359 = vcombine.low %v1197, %v1236
      %1360 = vrot.lane.b32.xlu0 %v1359, 117
      %v1361 = vpop.permute.xlu0 %1360
      %v1362 = vrot.slane %v1361, 4
      %vm1363 = vcmask 957440
      %v1364 = vsel %vm1363, %v1361, %v1362
      %1366 = vst.msk [vmem:[#allocation4 + $0x8] sm:$0xf] %vm1286, %v1364
      %1367 = vrot.lane.b32.xlu0 %v1236, 115
      %v1368 = vpop.permute.xlu0 %1367
      %1370 = vst.msk [vmem:[#allocation4 + $0xc] sm:$0xf] %vm1246, %v1368
      %1371 = vrot.lane.b32.xlu0 %v1236, 113
      %v1372 = vpop.permute.xlu0 %1371
      %1374 = vst.msk [vmem:[#allocation4 + $0xc] sm:$0xf] %vm1251, %v1372
      %1375 = vrot.lane.b32.xlu0 %v1236, 111
      %v1376 = vpop.permute.xlu0 %1375
      %1378 = vst.msk [vmem:[#allocation4 + $0xc] sm:$0xf] %vm1256, %v1376
      %1379 = vrot.lane.b32.xlu0 %v1236, 109
      %v1380 = vpop.permute.xlu0 %1379
      %1382 = vst.msk [vmem:[#allocation4 + $0xc] sm:$0xf] %vm1261, %v1380
      %1383 = vrot.lane.b32.xlu0 %v1236, 107
      %v1384 = vpop.permute.xlu0 %1383
      %1386 = vst.msk [vmem:[#allocation4 + $0xc] sm:$0xf] %vm1266, %v1384
      %1387 = vrot.lane.b32.xlu0 %v1236, 105
      %v1388 = vpop.permute.xlu0 %1387
      %1390 = vst.msk [vmem:[#allocation4 + $0xc] sm:$0xf] %vm1271, %v1388
      %v1392 = vcombine.low %v1236, %v1238
      %1393 = vrot.lane.b32.xlu0 %v1392, 103
      %v1394 = vpop.permute.xlu0 %1393
      %v1395 = vrot.slane %v1394, 4
      %vm1396 = vcmask 842752
      %v1397 = vsel %vm1396, %v1394, %v1395
      %1399 = vst.msk [vmem:[#allocation4 + $0xc] sm:$0xf] %vm1281, %v1397
      %1400 = vrot.lane.b32.xlu0 %v1238, 101
      %v1401 = vpop.permute.xlu0 %1400
      %1403 = vst.msk [vmem:[#allocation4 + $0xc] sm:$0xf] %vm1286, %v1401
      %v1404 = vld [vmem:[#allocation4] sm:$0xff]
      %v1405 = vld [vmem:[#allocation4 + $0x8] sm:$0xff]
      %v1408 = vcombine.high %v1404, %v1404
      %v1409 = vcombine.high %v1405, %v1405
      %vm1412 = vcmask 1043456
      %v1413 = vsel %vm1412, %v1404, 0.0
      %v1414 = vsel %vm1412, %v1408, 0.0
      %v1415 = vadd.f32 %v1413, %v1414
      %v1416 = vsel %vm1412, %v1405, 0.0
      %v1417 = vadd.f32 %v1415, %v1416
      %v1418 = vsel %vm1412, %v1409, 0.0
      %v1419 = vadd.f32 %v1417, %v1418
      %1420 = vadd.xlane.f32.xlu0 %v1419
      %v1421 = vpop.xlane.xlu0 %1420
      %vm1422 = vcmask 3072
      %1423 = vst.msk [vmem:[%s265] sm:$0xf] %vm1422, %v1421
      %v1424 = vmul.f32 %v1404, %v1404
      %v1425 = vmul.f32 %v1405, %v1405
      %v1428 = vcombine.high %v1424, %v1424
      %v1429 = vcombine.high %v1425, %v1425
      %v1432 = vsel %vm1412, %v1424, 0.0
      %v1433 = vsel %vm1412, %v1428, 0.0
      %v1434 = vadd.f32 %v1432, %v1433
      %v1435 = vsel %vm1412, %v1425, 0.0
      %v1436 = vadd.f32 %v1434, %v1435
      %v1437 = vsel %vm1412, %v1429, 0.0
      %v1438 = vadd.f32 %v1436, %v1437
      %1439 = vadd.xlane.f32.xlu0 %v1438
      %v1440 = vpop.xlane.xlu0 %1439
      %vm1441 = vcmask 11272
      %1442 = vst.msk [vmem:[%s265] sm:$0xf] %vm1441, %v1440
      %v1443 = vpack.c.bf16 %v1404, %v1404
      %v1444 = vpack.c.bf16 %v1408, %v1408
      %v1445 = vpack.c.bf16 %v1405, %v1405
      %v1446 = vpack.c.bf16 %v1409, %v1409
      %v1451 = vcombine.low %v1443, %v1444
      %v1452 = vcombine.low %v1445, %v1446
      %v1454 = vunpack.c.l.s4 1983009808
      %v1455 = vunpack.c.0.s8 %v1454
      %v1456 = vlaneseq
      %v1457 = vshrl.u32 %v1456, 7
      %v1458 = vsub.s32 %v1455, %v1457
      %v1459 = vrot.slane %v1451, %v1458
      %v1461 = vunpack.c.l.s4 1983009808
      %v1462 = vunpack.c.0.s8 %v1461
      %v1463 = vlaneseq
      %v1464 = vshrl.u32 %v1463, 7
      %v1465 = vsub.s32 %v1462, %v1464
      %v1466 = vrot.slane %v1452, %v1465
      %v1467 = vcombine.low %v1459, %v1466
      %1469 = vst [vmem:[%s260] sm:$0xff] %v1467
      %s1470 = smul.u32 4, %s18
      %p1471 = scmp.lt.s32.totalorder %s1470, 7
      %s1472 = scalar_select %p1471, %s1470, 7
      %s1473 = smul.addr %s1472, 2
      %s1474 = scalar_lea.vmem %s5, %s1473
      %p1475 = scmp.lt.s32.totalorder %s18, 1
      %s1476 = scalar_select %p1475, %s18, 1
      %s1477 = smul.addr %s1476, 4
      %s1478 = scalar_lea.vmem %s6, %s1477
      // Predicated region
      $region41: #{residual_block_pallas.4} parent=39 // pred_check
        %p1479 = pneg %p146
      $region42: #{residual_block_pallas.4} parent=39 // pred_check_branch
        %1481 = sbr.rel (%p1479) target = $region44
      $region43: #{residual_block_pallas.4} parent=39 // pred_region
        %s1482 = smul.u32 4, %s18
      $region44: #{residual_block_pallas.4} parent=39 // pred_fallthru
        _
      // Predicated region
      $region45: #{residual_block_pallas.4} parent=39 // pred_check
        %p1483 = pneg %p172
      $region46: #{residual_block_pallas.4} parent=39 // pred_check_branch
        %1485 = sbr.rel (%p1483) target = $region48
      $region47: #{residual_block_pallas.4} parent=39 // pred_region
        _
      $region48: #{residual_block_pallas.4} parent=39 // pred_fallthru
        _
    $region40: #{residual_block_pallas.4} parent=5 // pred_fallthru
      _
    %p1486 = scmp.le.s32.totalorder 2, %s13
    // Predicated region
    $region49: #{residual_block_pallas.4} parent=5 // pred_check
      %p1487 = pneg %p1486
    $region50: #{residual_block_pallas.4} parent=5 // pred_check_branch
      %1489 = sbr.rel (%p1487) target = $region52
    $region51: #{residual_block_pallas.4} parent=5 // pred_region
      %s1490 = ssub.s32 %s13, 2
      // Predicated region
      $region53: #{residual_block_pallas.4} parent=51 // pred_check
        %p1491 = pneg %p152
      $region54: #{residual_block_pallas.4} parent=51 // pred_check_branch
        %1493 = sbr.rel (%p1491) target = $region56
      $region55: #{residual_block_pallas.4} parent=51 // pred_region
        %s1494 = smul.u32 4, %s19
        %p1495 = scmp.lt.s32.totalorder %s1494, 7
        %s1496 = scalar_select %p1495, %s1494, 7
        %s1497 = smul.addr %s1496, 2
        %s1498 = scalar_lea.vmem %s5, %s1497
      $region56: #{residual_block_pallas.4} parent=51 // pred_fallthru
        _
      // Predicated region
      $region57: #{residual_block_pallas.4} parent=51 // pred_check
        %p1499 = pneg %p178
      $region58: #{residual_block_pallas.4} parent=51 // pred_check_branch
        %1501 = sbr.rel (%p1499) target = $region60
      $region59: #{residual_block_pallas.4} parent=51 // pred_region
        %p1502 = scmp.lt.s32.totalorder %s19, 1
        %s1503 = scalar_select %p1502, %s19, 1
        %s1504 = smul.addr %s1503, 4
        %s1505 = scalar_lea.vmem %s6, %s1504
      $region60: #{residual_block_pallas.4} parent=51 // pred_fallthru
        _
    $region52: #{residual_block_pallas.4} parent=5 // pred_fallthru
      _
  $region6: #{residual_block_pallas.4} parent=0 // loop_footer
    %s17 = sadd.s32 1, %s13
  $region7: #{residual_block_pallas.4} parent=0 // loop_footer_branch
    %12 = sbr.rel target = $region3
  $region8: #{residual_block_pallas.4} parent=0 // loop_exit
    _

</llo_original>
